<compile_context>
chip_gen: v6e
topology: v6e:2x2x1
jax: 0.10.0
libtpu: 0.0.40
codegen_flags: <defaults>
</compile_context>

<pallas_src>
import functools

import jax
import jax.numpy as jnp
from jax import lax
from jax.experimental import pallas as pl
from jax.experimental.pallas import tpu as pltpu


def bottleneck_kernel(x_ref, halo_ref, w1_ref, w2_ref, w3_ref,
                      b1_ref, b2_ref, b3_ref, o_ref, pad_ref):
    # Block shapes:
    #   x_ref    : (1, TH, W, C)     C = inplanes = 4*planes, f32
    #   halo_ref : (1, 1, 2, W, C)   row above / row below this block, f32
    #   w1_ref   : (C, P)            bf16, BN1 scale folded in
    #   w2_ref   : (9, P, P)         bf16, 3x3 taps, BN2 scale folded in
    #   w3_ref   : (P, CO)           bf16, BN3 scale folded in, CO = 4*planes
    #   b*_ref   : (1, ch)           f32 folded BN biases
    #   o_ref    : (1, TH, W, CO)    f32
    #   pad_ref  : VMEM scratch (TH+2, W+2, P) bf16 (padded h1 for the 3x3)
    TH = x_ref.shape[1]
    W = x_ref.shape[2]
    C = x_ref.shape[3]
    P = w1_ref.shape[1]
    CO = w3_ref.shape[1]

    i = pl.program_id(1)
    n_i = pl.num_programs(1)

    x2d = x_ref[...].reshape(TH * W, C)          # f32, kept for residual add
    x_bf = x2d.astype(jnp.bfloat16)

    # ---- conv1 (1x1) + bn1 + relu (scale folded into w1) ----
    h1 = jnp.dot(x_bf, w1_ref[...], preferred_element_type=jnp.float32)
    h1 = jnp.maximum(h1 + b1_ref[...], 0.0)                     # (TH*W, P) f32

    # conv1 on the two halo rows (needed by the 3x3 conv); rows that fall
    # outside the image are zeroed, matching conv2's zero padding.
    xh = halo_ref[...].reshape(2 * W, C).astype(jnp.bfloat16)
    h1h = jnp.dot(xh, w1_ref[...], preferred_element_type=jnp.float32)
    h1h = jnp.maximum(h1h + b1_ref[...], 0.0).reshape(2, W, P)
    top = jnp.where(i > 0, h1h[0], 0.0).astype(pad_ref.dtype)
    bot = jnp.where(i < n_i - 1, h1h[1], 0.0).astype(pad_ref.dtype)

    # ---- assemble padded h1 in VMEM scratch ----
    # Zero only the left/right halo columns; every other element is written.
    zcol = jnp.zeros((TH + 2, 1, P), pad_ref.dtype)
    pad_ref[pl.ds(0, TH + 2), pl.ds(0, 1), :] = zcol
    pad_ref[pl.ds(0, TH + 2), pl.ds(W + 1, 1), :] = zcol
    pad_ref[pl.ds(0, 1), pl.ds(1, W), :] = top.reshape(1, W, P)
    pad_ref[pl.ds(TH + 1, 1), pl.ds(1, W), :] = bot.reshape(1, W, P)
    pad_ref[pl.ds(1, TH), pl.ds(1, W), :] = (
        h1.astype(pad_ref.dtype).reshape(TH, W, P))

    # ---- conv2 (3x3, stride=1, pad=1) + bn2 + relu ----
    # Nine shifted (TH*W, P) x (P, P) bf16 matmuls, single f32 accumulation
    # chain (keeps partial sums in the MXU result buffer on v7x).
    acc = jnp.zeros((TH * W, P), jnp.float32)
    for dy in range(3):
        for dx in range(3):
            patch = pad_ref[pl.ds(dy, TH), pl.ds(dx, W), :].reshape(TH * W, P)
            acc = acc + jnp.dot(patch, w2_ref[dy * 3 + dx],
                                preferred_element_type=jnp.float32)
    h2 = jnp.maximum(acc + b2_ref[...], 0.0)

    # ---- conv3 (1x1) + bn3 + residual add + relu (f32) ----
    h3 = jnp.dot(h2.astype(jnp.bfloat16), w3_ref[...],
                 preferred_element_type=jnp.float32)
    out = jnp.maximum(h3 + b3_ref[...] + x2d, 0.0)
    o_ref[...] = out.reshape(1, TH, W, CO).astype(o_ref.dtype)


@functools.partial(jax.jit, static_argnames=("tile_h",))
def bottleneck_pallas(x, w1, w2, w3, s1, b1, s2, b2, s3, b3, *, tile_h=8):
    """x: (N, H, W, C) NHWC float32.  Returns (N, H, W, 4*planes) float32."""
    N, H, W, C = x.shape
    P = w1.shape[1]
    CO = w3.shape[1]
    assert C == CO, "stride=1 / downsample=None requires inplanes == planes*4"

    # Pick a row-block height that divides H (prefer ~tile_h; shrink on v7x /
    # large images so double-buffered blocks + scratch stay well under VMEM).
    TH = max(1, min(tile_h, H))
    while H % TH:
        TH -= 1
    nH = H // TH

    # Fold BN scales into the conv weights (offline, free at run time), cast
    # weights to bf16 for full-rate MXU on v6e/v7x.
    w1f = (w1 * s1).astype(jnp.bfloat16)                        # (C, P)
    w2f = (w2 * s2.reshape(1, 1, 1, P)).reshape(9, P, P).astype(jnp.bfloat16)
    w3f = (w3 * s3).astype(jnp.bfloat16)                        # (P, CO)

    # Per-row-block halo rows (row above / below each block), built with cheap
    # XLA slicing so every Pallas BlockSpec stays non-overlapping.
    xp = jnp.pad(x, ((0, 0), (1, 1), (0, 0), (0, 0)))
    top = xp[:, 0:H:TH]                                         # (N, nH, W, C)
    bot = xp[:, TH + 1::TH]                                     # (N, nH, W, C)
    halo = jnp.stack([top, bot], axis=2)                        # (N, nH, 2, W, C)

    grid_spec = pltpu.PrefetchScalarGridSpec(
        num_scalar_prefetch=0,
        grid=(N, nH),
        in_specs=[
            pl.BlockSpec((1, TH, W, C), lambda b, i: (b, i, 0, 0)),
            pl.BlockSpec((1, 1, 2, W, C), lambda b, i: (b, i, 0, 0, 0)),
            pl.BlockSpec((C, P), lambda b, i: (0, 0)),
            pl.BlockSpec((9, P, P), lambda b, i: (0, 0, 0)),
            pl.BlockSpec((P, CO), lambda b, i: (0, 0)),
            pl.BlockSpec((1, P), lambda b, i: (0, 0)),
            pl.BlockSpec((1, P), lambda b, i: (0, 0)),
            pl.BlockSpec((1, CO), lambda b, i: (0, 0)),
        ],
        out_specs=pl.BlockSpec((1, TH, W, CO), lambda b, i: (b, i, 0, 0)),
        scratch_shapes=[pltpu.VMEM((TH + 2, W + 2, P), jnp.bfloat16)],
    )
    return pl.pallas_call(
        bottleneck_kernel,
        out_shape=jax.ShapeDtypeStruct((N, H, W, CO), jnp.float32),
        grid_spec=grid_spec,
        compiler_params=pltpu.CompilerParams(
            dimension_semantics=("parallel", "parallel"),
            vmem_limit_bytes=64 * 1024 * 1024),
    )(x, halo, w1f, w2f, w3f, b1, b2, b3)


def ref_bottleneck(x, w1, w2, w3, s1, b1, s2, b2, s3, b3):
    """Pure-JAX reference (NHWC) mirroring the kernel's bf16-matmul / f32-else
    numerics (BN scale folded into weights, zero padding for the 3x3)."""
    dn = ('NHWC', 'HWIO', 'NHWC')
    bf = jnp.bfloat16
    w1f = (w1 * s1).astype(bf).reshape(1, 1, *w1.shape)
    w2f = (w2 * s2.reshape(1, 1, 1, -1)).astype(bf)
    w3f = (w3 * s3).astype(bf).reshape(1, 1, *w3.shape)
    h = lax.conv_general_dilated(x.astype(bf), w1f, (1, 1), 'VALID',
                                 dimension_numbers=dn,
                                 preferred_element_type=jnp.float32)
    h = jnp.maximum(h + b1, 0.0)
    h = lax.conv_general_dilated(h.astype(bf), w2f, (1, 1), 'SAME',
                                 dimension_numbers=dn,
                                 preferred_element_type=jnp.float32)
    h = jnp.maximum(h + b2, 0.0)
    h = lax.conv_general_dilated(h.astype(bf), w3f, (1, 1), 'VALID',
                                 dimension_numbers=dn,
                                 preferred_element_type=jnp.float32)
    h = h + b3
    return jnp.maximum(h + x, 0.0)


if __name__ == "__main__":
    key = jax.random.PRNGKey(0)
    keys = jax.random.split(key, 16)

    # Small smoke-test shapes consistent with the module:
    # Bottleneck(inplanes=16, planes=4), stride=1, downsample=None
    # (so inplanes == planes * expansion = 16).
    N, H, W = 2, 16, 16
    planes = 4
    inplanes = planes * 4

    x = jax.random.normal(keys[0], (N, H, W, inplanes), jnp.float32)

    # Conv weights (no bias, as in the module).
    w1 = 0.1 * jax.random.normal(keys[1], (inplanes, planes), jnp.float32)
    w2 = 0.1 * jax.random.normal(keys[2], (3, 3, planes, planes), jnp.float32)
    w3 = 0.1 * jax.random.normal(keys[3], (planes, planes * 4), jnp.float32)

    # BatchNorm (eval mode) folded into per-channel scale & bias.
    def bn_fold(kg, kb, km, kv, ch, eps=1e-5):
        gamma = 1.0 + 0.1 * jax.random.normal(kg, (ch,), jnp.float32)
        beta = 0.1 * jax.random.normal(kb, (ch,), jnp.float32)
        mean = 0.1 * jax.random.normal(km, (ch,), jnp.float32)
        var = 1.0 + 0.1 * jnp.abs(jax.random.normal(kv, (ch,), jnp.float32))
        scale = gamma / jnp.sqrt(var + eps)
        bias = beta - mean * scale
        return scale.reshape(1, ch), bias.reshape(1, ch)

    s1, b1 = bn_fold(keys[4], keys[5], keys[6], keys[7], planes)
    s2, b2 = bn_fold(keys[8], keys[9], keys[10], keys[11], planes)
    s3, b3 = bn_fold(keys[12], keys[13], keys[14], keys[15], planes * 4)

    out = bottleneck_pallas(x, w1, w2, w3, s1, b1, s2, b2, s3, b3)
    out = jax.block_until_ready(out)

    ref = ref_bottleneck(x, w1, w2, w3, s1, b1, s2, b2, s3, b3)
    assert out.shape == (N, H, W, planes * 4)
    err = float(jnp.max(jnp.abs(out - ref)))
    assert jnp.allclose(out, ref, atol=1e-2, rtol=1e-2), err

    print("KERNEL_OK")
</pallas_src>

<mosaic_0001>
module attributes {stable_mosaic.version = 11 : i64} {
  func.func @bottleneck_kernel(%arg0: i32, %arg1: i32, %arg2: memref<1x8x16x16xf32, #tpu.memory_space<vmem>>, %arg3: memref<1x1x2x16x16xf32, #tpu.memory_space<vmem>>, %arg4: memref<16x4xbf16, #tpu.memory_space<vmem>>, %arg5: memref<9x4x4xbf16, #tpu.memory_space<vmem>>, %arg6: memref<4x16xbf16, #tpu.memory_space<vmem>>, %arg7: memref<1x4xf32, #tpu.memory_space<vmem>>, %arg8: memref<1x4xf32, #tpu.memory_space<vmem>>, %arg9: memref<1x16xf32, #tpu.memory_space<vmem>>, %arg10: memref<1x8x16x16xf32, #tpu.memory_space<vmem>>, %arg11: memref<10x18x4xbf16, #tpu.memory_space<vmem>>) attributes {dimension_semantics = [#tpu.dimension_semantics<parallel>, #tpu.dimension_semantics<parallel>], iteration_bounds = array<i64: 2, 2>, scalar_prefetch = 0 : i64, scratch_operands = 1 : i64, tpu.core_type = #tpu.core_type<tc>, window_params = [{transform_indices = @transform_0, window_bounds = array<i64: 1, 8, 16, 16>}, {transform_indices = @transform_1, window_bounds = array<i64: 1, 1, 2, 16, 16>}, {pipeline_mode = #tpu.pipeline_mode<synchronous>, transform_indices = @transform_2, window_bounds = array<i64: 16, 4>}, {pipeline_mode = #tpu.pipeline_mode<synchronous>, transform_indices = @transform_3, window_bounds = array<i64: 9, 4, 4>}, {pipeline_mode = #tpu.pipeline_mode<synchronous>, transform_indices = @transform_4, window_bounds = array<i64: 4, 16>}, {pipeline_mode = #tpu.pipeline_mode<synchronous>, transform_indices = @transform_5, window_bounds = array<i64: 1, 4>}, {pipeline_mode = #tpu.pipeline_mode<synchronous>, transform_indices = @transform_6, window_bounds = array<i64: 1, 4>}, {pipeline_mode = #tpu.pipeline_mode<synchronous>, transform_indices = @transform_7, window_bounds = array<i64: 1, 16>}, {transform_indices = @transform_8, window_bounds = array<i64: 1, 8, 16, 16>}]} {
    %c0 = arith.constant 0 : index
    %c0_0 = arith.constant 0 : index
    %c0_1 = arith.constant 0 : index
    %c0_2 = arith.constant 0 : index
    %0 = vector.load %arg2[%c0, %c0_0, %c0_1, %c0_2] : memref<1x8x16x16xf32, #tpu.memory_space<vmem>>, vector<1x8x16x16xf32>
    %1 = vector.shape_cast %0 : vector<1x8x16x16xf32> to vector<128x16xf32>
    %2 = arith.truncf %1 : vector<128x16xf32> to vector<128x16xbf16>
    %c0_3 = arith.constant 0 : index
    %c0_4 = arith.constant 0 : index
    %3 = vector.load %arg4[%c0_3, %c0_4] : memref<16x4xbf16, #tpu.memory_space<vmem>>, vector<16x4xbf16>
    %cst = arith.constant dense<0.000000e+00> : vector<128x4xf32>
    %4 = tpu.matmul %2, %3, %cst {dimension_numbers = #tpu.dot_dimension_numbers<[1], [0], [0], [1], [0, 0, 1, 1], [], []>} : vector<128x16xbf16>, vector<16x4xbf16>, vector<128x4xf32> -> vector<128x4xf32>
    %c0_5 = arith.constant 0 : index
    %c0_6 = arith.constant 0 : index
    %5 = vector.load %arg7[%c0_5, %c0_6] : memref<1x4xf32, #tpu.memory_space<vmem>>, vector<1x4xf32>
    %6 = vector.broadcast %5 : vector<1x4xf32> to vector<128x4xf32>
    %7 = arith.addf %4, %6 : vector<128x4xf32>
    %cst_7 = arith.constant 0.000000e+00 : f32
    %8 = vector.broadcast %cst_7 : f32 to vector<128x4xf32>
    %9 = arith.maximumf %7, %8 : vector<128x4xf32>
    %c0_8 = arith.constant 0 : index
    %c0_9 = arith.constant 0 : index
    %c0_10 = arith.constant 0 : index
    %c0_11 = arith.constant 0 : index
    %c0_12 = arith.constant 0 : index
    %10 = vector.load %arg3[%c0_8, %c0_9, %c0_10, %c0_11, %c0_12] : memref<1x1x2x16x16xf32, #tpu.memory_space<vmem>>, vector<1x1x2x16x16xf32>
    %11 = vector.shape_cast %10 : vector<1x1x2x16x16xf32> to vector<32x16xf32>
    %12 = arith.truncf %11 : vector<32x16xf32> to vector<32x16xbf16>
    %c0_13 = arith.constant 0 : index
    %c0_14 = arith.constant 0 : index
    %13 = vector.load %arg4[%c0_13, %c0_14] : memref<16x4xbf16, #tpu.memory_space<vmem>>, vector<16x4xbf16>
    %cst_15 = arith.constant dense<0.000000e+00> : vector<32x4xf32>
    %14 = tpu.matmul %12, %13, %cst_15 {dimension_numbers = #tpu.dot_dimension_numbers<[1], [0], [0], [1], [0, 0, 1, 1], [], []>} : vector<32x16xbf16>, vector<16x4xbf16>, vector<32x4xf32> -> vector<32x4xf32>
    %c0_16 = arith.constant 0 : index
    %c0_17 = arith.constant 0 : index
    %15 = vector.load %arg7[%c0_16, %c0_17] : memref<1x4xf32, #tpu.memory_space<vmem>>, vector<1x4xf32>
    %16 = vector.broadcast %15 : vector<1x4xf32> to vector<32x4xf32>
    %17 = arith.addf %14, %16 : vector<32x4xf32>
    %cst_18 = arith.constant 0.000000e+00 : f32
    %18 = vector.broadcast %cst_18 : f32 to vector<32x4xf32>
    %19 = arith.maximumf %17, %18 : vector<32x4xf32>
    %20 = vector.shape_cast %19 : vector<32x4xf32> to vector<2x16x4xf32>
    %c0_i32 = arith.constant 0 : i32
    %21 = arith.cmpi sgt, %arg1, %c0_i32 : i32
    %22 = vector.extract_strided_slice %20 {offsets = [0, 0, 0], sizes = [1, 16, 4], strides = [1, 1, 1]} : vector<2x16x4xf32> to vector<1x16x4xf32>
    %23 = vector.shape_cast %22 : vector<1x16x4xf32> to vector<16x4xf32>
    %cst_19 = arith.constant 0.000000e+00 : f32
    %24 = vector.broadcast %cst_19 : f32 to vector<16x4xf32>
    %25 = arith.select %21, %23, %24 : vector<16x4xf32>
    %26 = arith.truncf %25 : vector<16x4xf32> to vector<16x4xbf16>
    %c1_i32 = arith.constant 1 : i32
    %27 = arith.cmpi slt, %arg1, %c1_i32 : i32
    %28 = vector.extract_strided_slice %20 {offsets = [1, 0, 0], sizes = [1, 16, 4], strides = [1, 1, 1]} : vector<2x16x4xf32> to vector<1x16x4xf32>
    %29 = vector.shape_cast %28 : vector<1x16x4xf32> to vector<16x4xf32>
    %cst_20 = arith.constant 0.000000e+00 : f32
    %30 = vector.broadcast %cst_20 : f32 to vector<16x4xf32>
    %31 = arith.select %27, %29, %30 : vector<16x4xf32>
    %32 = arith.truncf %31 : vector<16x4xf32> to vector<16x4xbf16>
    %cst_21 = arith.constant 0.000000e+00 : bf16
    %33 = vector.broadcast %cst_21 : bf16 to vector<10x1x4xbf16>
    %c0_22 = arith.constant 0 : index
    %c0_23 = arith.constant 0 : index
    %c0_24 = arith.constant 0 : index
    %34 = vector.load %arg11[%c0_22, %c0_23, %c0_24] : memref<10x18x4xbf16, #tpu.memory_space<vmem>>, vector<10x1x4xbf16>
    tpu.vector_store %arg11[%c0_22, %c0_23, %c0_24], %33 {strides = array<i32>} : memref<10x18x4xbf16, #tpu.memory_space<vmem>>, vector<10x1x4xbf16>,
    %c0_25 = arith.constant 0 : index
    %c17 = arith.constant 17 : index
    %c0_26 = arith.constant 0 : index
    %35 = vector.load %arg11[%c0_25, %c17, %c0_26] : memref<10x18x4xbf16, #tpu.memory_space<vmem>>, vector<10x1x4xbf16>
    tpu.vector_store %arg11[%c0_25, %c17, %c0_26], %33 {strides = array<i32>} : memref<10x18x4xbf16, #tpu.memory_space<vmem>>, vector<10x1x4xbf16>,
    %36 = vector.shape_cast %26 : vector<16x4xbf16> to vector<1x16x4xbf16>
    %c0_27 = arith.constant 0 : index
    %c1 = arith.constant 1 : index
    %c0_28 = arith.constant 0 : index
    %37 = vector.load %arg11[%c0_27, %c1, %c0_28] : memref<10x18x4xbf16, #tpu.memory_space<vmem>>, vector<1x16x4xbf16>
    tpu.vector_store %arg11[%c0_27, %c1, %c0_28], %36 {strides = array<i32>} : memref<10x18x4xbf16, #tpu.memory_space<vmem>>, vector<1x16x4xbf16>,
    %38 = vector.shape_cast %32 : vector<16x4xbf16> to vector<1x16x4xbf16>
    %c9 = arith.constant 9 : index
    %c1_29 = arith.constant 1 : index
    %c0_30 = arith.constant 0 : index
    %39 = vector.load %arg11[%c9, %c1_29, %c0_30] : memref<10x18x4xbf16, #tpu.memory_space<vmem>>, vector<1x16x4xbf16>
    tpu.vector_store %arg11[%c9, %c1_29, %c0_30], %38 {strides = array<i32>} : memref<10x18x4xbf16, #tpu.memory_space<vmem>>, vector<1x16x4xbf16>,
    %40 = arith.truncf %9 : vector<128x4xf32> to vector<128x4xbf16>
    %41 = vector.shape_cast %40 : vector<128x4xbf16> to vector<8x16x4xbf16>
    %c1_31 = arith.constant 1 : index
    %c1_32 = arith.constant 1 : index
    %c0_33 = arith.constant 0 : index
    %42 = vector.load %arg11[%c1_31, %c1_32, %c0_33] : memref<10x18x4xbf16, #tpu.memory_space<vmem>>, vector<8x16x4xbf16>
    tpu.vector_store %arg11[%c1_31, %c1_32, %c0_33], %41 {strides = array<i32>} : memref<10x18x4xbf16, #tpu.memory_space<vmem>>, vector<8x16x4xbf16>,
    %cst_34 = arith.constant 0.000000e+00 : f32
    %43 = vector.broadcast %cst_34 : f32 to vector<128x4xf32>
    %c0_35 = arith.constant 0 : index
    %c0_36 = arith.constant 0 : index
    %c0_37 = arith.constant 0 : index
    %44 = vector.load %arg11[%c0_35, %c0_36, %c0_37] : memref<10x18x4xbf16, #tpu.memory_space<vmem>>, vector<8x16x4xbf16>
    %45 = vector.shape_cast %44 : vector<8x16x4xbf16> to vector<128x4xbf16>
    %c0_38 = arith.constant 0 : index
    %c0_39 = arith.constant 0 : index
    %c0_40 = arith.constant 0 : index
    %46 = vector.load %arg5[%c0_38, %c0_39, %c0_40] : memref<9x4x4xbf16, #tpu.memory_space<vmem>>, vector<1x4x4xbf16>
    %47 = vector.shape_cast %46 : vector<1x4x4xbf16> to vector<4x4xbf16>
    %cst_41 = arith.constant dense<0.000000e+00> : vector<128x4xf32>
    %48 = tpu.matmul %45, %47, %cst_41 {dimension_numbers = #tpu.dot_dimension_numbers<[1], [0], [0], [1], [0, 0, 1, 1], [], []>} : vector<128x4xbf16>, vector<4x4xbf16>, vector<128x4xf32> -> vector<128x4xf32>
    %49 = arith.addf %43, %48 : vector<128x4xf32>
    %c0_42 = arith.constant 0 : index
    %c1_43 = arith.constant 1 : index
    %c0_44 = arith.constant 0 : index
    %50 = vector.load %arg11[%c0_42, %c1_43, %c0_44] : memref<10x18x4xbf16, #tpu.memory_space<vmem>>, vector<8x16x4xbf16>
    %51 = vector.shape_cast %50 : vector<8x16x4xbf16> to vector<128x4xbf16>
    %c1_45 = arith.constant 1 : index
    %c0_46 = arith.constant 0 : index
    %c0_47 = arith.constant 0 : index
    %52 = vector.load %arg5[%c1_45, %c0_46, %c0_47] : memref<9x4x4xbf16, #tpu.memory_space<vmem>>, vector<1x4x4xbf16>
    %53 = vector.shape_cast %52 : vector<1x4x4xbf16> to vector<4x4xbf16>
    %cst_48 = arith.constant dense<0.000000e+00> : vector<128x4xf32>
    %54 = tpu.matmul %51, %53, %cst_48 {dimension_numbers = #tpu.dot_dimension_numbers<[1], [0], [0], [1], [0, 0, 1, 1], [], []>} : vector<128x4xbf16>, vector<4x4xbf16>, vector<128x4xf32> -> vector<128x4xf32>
    %55 = arith.addf %49, %54 : vector<128x4xf32>
    %c0_49 = arith.constant 0 : index
    %c2 = arith.constant 2 : index
    %c0_50 = arith.constant 0 : index
    %56 = vector.load %arg11[%c0_49, %c2, %c0_50] : memref<10x18x4xbf16, #tpu.memory_space<vmem>>, vector<8x16x4xbf16>
    %57 = vector.shape_cast %56 : vector<8x16x4xbf16> to vector<128x4xbf16>
    %c2_51 = arith.constant 2 : index
    %c0_52 = arith.constant 0 : index
    %c0_53 = arith.constant 0 : index
    %58 = vector.load %arg5[%c2_51, %c0_52, %c0_53] : memref<9x4x4xbf16, #tpu.memory_space<vmem>>, vector<1x4x4xbf16>
    %59 = vector.shape_cast %58 : vector<1x4x4xbf16> to vector<4x4xbf16>
    %cst_54 = arith.constant dense<0.000000e+00> : vector<128x4xf32>
    %60 = tpu.matmul %57, %59, %cst_54 {dimension_numbers = #tpu.dot_dimension_numbers<[1], [0], [0], [1], [0, 0, 1, 1], [], []>} : vector<128x4xbf16>, vector<4x4xbf16>, vector<128x4xf32> -> vector<128x4xf32>
    %61 = arith.addf %55, %60 : vector<128x4xf32>
    %c1_55 = arith.constant 1 : index
    %c0_56 = arith.constant 0 : index
    %c0_57 = arith.constant 0 : index
    %62 = vector.load %arg11[%c1_55, %c0_56, %c0_57] : memref<10x18x4xbf16, #tpu.memory_space<vmem>>, vector<8x16x4xbf16>
    %63 = vector.shape_cast %62 : vector<8x16x4xbf16> to vector<128x4xbf16>
    %c3 = arith.constant 3 : index
    %c0_58 = arith.constant 0 : index
    %c0_59 = arith.constant 0 : index
    %64 = vector.load %arg5[%c3, %c0_58, %c0_59] : memref<9x4x4xbf16, #tpu.memory_space<vmem>>, vector<1x4x4xbf16>
    %65 = vector.shape_cast %64 : vector<1x4x4xbf16> to vector<4x4xbf16>
    %cst_60 = arith.constant dense<0.000000e+00> : vector<128x4xf32>
    %66 = tpu.matmul %63, %65, %cst_60 {dimension_numbers = #tpu.dot_dimension_numbers<[1], [0], [0], [1], [0, 0, 1, 1], [], []>} : vector<128x4xbf16>, vector<4x4xbf16>, vector<128x4xf32> -> vector<128x4xf32>
    %67 = arith.addf %61, %66 : vector<128x4xf32>
    %c1_61 = arith.constant 1 : index
    %c1_62 = arith.constant 1 : index
    %c0_63 = arith.constant 0 : index
    %68 = vector.load %arg11[%c1_61, %c1_62, %c0_63] : memref<10x18x4xbf16, #tpu.memory_space<vmem>>, vector<8x16x4xbf16>
    %69 = vector.shape_cast %68 : vector<8x16x4xbf16> to vector<128x4xbf16>
    %c4 = arith.constant 4 : index
    %c0_64 = arith.constant 0 : index
    %c0_65 = arith.constant 0 : index
    %70 = vector.load %arg5[%c4, %c0_64, %c0_65] : memref<9x4x4xbf16, #tpu.memory_space<vmem>>, vector<1x4x4xbf16>
    %71 = vector.shape_cast %70 : vector<1x4x4xbf16> to vector<4x4xbf16>
    %cst_66 = arith.constant dense<0.000000e+00> : vector<128x4xf32>
    %72 = tpu.matmul %69, %71, %cst_66 {dimension_numbers = #tpu.dot_dimension_numbers<[1], [0], [0], [1], [0, 0, 1, 1], [], []>} : vector<128x4xbf16>, vector<4x4xbf16>, vector<128x4xf32> -> vector<128x4xf32>
    %73 = arith.addf %67, %72 : vector<128x4xf32>
    %c1_67 = arith.constant 1 : index
    %c2_68 = arith.constant 2 : index
    %c0_69 = arith.constant 0 : index
    %74 = vector.load %arg11[%c1_67, %c2_68, %c0_69] : memref<10x18x4xbf16, #tpu.memory_space<vmem>>, vector<8x16x4xbf16>
    %75 = vector.shape_cast %74 : vector<8x16x4xbf16> to vector<128x4xbf16>
    %c5 = arith.constant 5 : index
    %c0_70 = arith.constant 0 : index
    %c0_71 = arith.constant 0 : index
    %76 = vector.load %arg5[%c5, %c0_70, %c0_71] : memref<9x4x4xbf16, #tpu.memory_space<vmem>>, vector<1x4x4xbf16>
    %77 = vector.shape_cast %76 : vector<1x4x4xbf16> to vector<4x4xbf16>
    %cst_72 = arith.constant dense<0.000000e+00> : vector<128x4xf32>
    %78 = tpu.matmul %75, %77, %cst_72 {dimension_numbers = #tpu.dot_dimension_numbers<[1], [0], [0], [1], [0, 0, 1, 1], [], []>} : vector<128x4xbf16>, vector<4x4xbf16>, vector<128x4xf32> -> vector<128x4xf32>
    %79 = arith.addf %73, %78 : vector<128x4xf32>
    %c2_73 = arith.constant 2 : index
    %c0_74 = arith.constant 0 : index
    %c0_75 = arith.constant 0 : index
    %80 = vector.load %arg11[%c2_73, %c0_74, %c0_75] : memref<10x18x4xbf16, #tpu.memory_space<vmem>>, vector<8x16x4xbf16>
    %81 = vector.shape_cast %80 : vector<8x16x4xbf16> to vector<128x4xbf16>
    %c6 = arith.constant 6 : index
    %c0_76 = arith.constant 0 : index
    %c0_77 = arith.constant 0 : index
    %82 = vector.load %arg5[%c6, %c0_76, %c0_77] : memref<9x4x4xbf16, #tpu.memory_space<vmem>>, vector<1x4x4xbf16>
    %83 = vector.shape_cast %82 : vector<1x4x4xbf16> to vector<4x4xbf16>
    %cst_78 = arith.constant dense<0.000000e+00> : vector<128x4xf32>
    %84 = tpu.matmul %81, %83, %cst_78 {dimension_numbers = #tpu.dot_dimension_numbers<[1], [0], [0], [1], [0, 0, 1, 1], [], []>} : vector<128x4xbf16>, vector<4x4xbf16>, vector<128x4xf32> -> vector<128x4xf32>
    %85 = arith.addf %79, %84 : vector<128x4xf32>
    %c2_79 = arith.constant 2 : index
    %c1_80 = arith.constant 1 : index
    %c0_81 = arith.constant 0 : index
    %86 = vector.load %arg11[%c2_79, %c1_80, %c0_81] : memref<10x18x4xbf16, #tpu.memory_space<vmem>>, vector<8x16x4xbf16>
    %87 = vector.shape_cast %86 : vector<8x16x4xbf16> to vector<128x4xbf16>
    %c7 = arith.constant 7 : index
    %c0_82 = arith.constant 0 : index
    %c0_83 = arith.constant 0 : index
    %88 = vector.load %arg5[%c7, %c0_82, %c0_83] : memref<9x4x4xbf16, #tpu.memory_space<vmem>>, vector<1x4x4xbf16>
    %89 = vector.shape_cast %88 : vector<1x4x4xbf16> to vector<4x4xbf16>
    %cst_84 = arith.constant dense<0.000000e+00> : vector<128x4xf32>
    %90 = tpu.matmul %87, %89, %cst_84 {dimension_numbers = #tpu.dot_dimension_numbers<[1], [0], [0], [1], [0, 0, 1, 1], [], []>} : vector<128x4xbf16>, vector<4x4xbf16>, vector<128x4xf32> -> vector<128x4xf32>
    %91 = arith.addf %85, %90 : vector<128x4xf32>
    %c2_85 = arith.constant 2 : index
    %c2_86 = arith.constant 2 : index
    %c0_87 = arith.constant 0 : index
    %92 = vector.load %arg11[%c2_85, %c2_86, %c0_87] : memref<10x18x4xbf16, #tpu.memory_space<vmem>>, vector<8x16x4xbf16>
    %93 = vector.shape_cast %92 : vector<8x16x4xbf16> to vector<128x4xbf16>
    %c8 = arith.constant 8 : index
    %c0_88 = arith.constant 0 : index
    %c0_89 = arith.constant 0 : index
    %94 = vector.load %arg5[%c8, %c0_88, %c0_89] : memref<9x4x4xbf16, #tpu.memory_space<vmem>>, vector<1x4x4xbf16>
    %95 = vector.shape_cast %94 : vector<1x4x4xbf16> to vector<4x4xbf16>
    %cst_90 = arith.constant dense<0.000000e+00> : vector<128x4xf32>
    %96 = tpu.matmul %93, %95, %cst_90 {dimension_numbers = #tpu.dot_dimension_numbers<[1], [0], [0], [1], [0, 0, 1, 1], [], []>} : vector<128x4xbf16>, vector<4x4xbf16>, vector<128x4xf32> -> vector<128x4xf32>
    %97 = arith.addf %91, %96 : vector<128x4xf32>
    %c0_91 = arith.constant 0 : index
    %c0_92 = arith.constant 0 : index
    %98 = vector.load %arg8[%c0_91, %c0_92] : memref<1x4xf32, #tpu.memory_space<vmem>>, vector<1x4xf32>
    %99 = vector.broadcast %98 : vector<1x4xf32> to vector<128x4xf32>
    %100 = arith.addf %97, %99 : vector<128x4xf32>
    %cst_93 = arith.constant 0.000000e+00 : f32
    %101 = vector.broadcast %cst_93 : f32 to vector<128x4xf32>
    %102 = arith.maximumf %100, %101 : vector<128x4xf32>
    %103 = arith.truncf %102 : vector<128x4xf32> to vector<128x4xbf16>
    %c0_94 = arith.constant 0 : index
    %c0_95 = arith.constant 0 : index
    %104 = vector.load %arg6[%c0_94, %c0_95] : memref<4x16xbf16, #tpu.memory_space<vmem>>, vector<4x16xbf16>
    %cst_96 = arith.constant dense<0.000000e+00> : vector<128x16xf32>
    %105 = tpu.matmul %103, %104, %cst_96 {dimension_numbers = #tpu.dot_dimension_numbers<[1], [0], [0], [1], [0, 0, 1, 1], [], []>} : vector<128x4xbf16>, vector<4x16xbf16>, vector<128x16xf32> -> vector<128x16xf32>
    %c0_97 = arith.constant 0 : index
    %c0_98 = arith.constant 0 : index
    %106 = vector.load %arg9[%c0_97, %c0_98] : memref<1x16xf32, #tpu.memory_space<vmem>>, vector<1x16xf32>
    %107 = vector.broadcast %106 : vector<1x16xf32> to vector<128x16xf32>
    %108 = arith.addf %105, %107 : vector<128x16xf32>
    %109 = arith.addf %108, %1 : vector<128x16xf32>
    %cst_99 = arith.constant 0.000000e+00 : f32
    %110 = vector.broadcast %cst_99 : f32 to vector<128x16xf32>
    %111 = arith.maximumf %109, %110 : vector<128x16xf32>
    %112 = vector.shape_cast %111 : vector<128x16xf32> to vector<1x8x16x16xf32>
    %c0_100 = arith.constant 0 : index
    %c0_101 = arith.constant 0 : index
    %c0_102 = arith.constant 0 : index
    %c0_103 = arith.constant 0 : index
    %113 = vector.load %arg10[%c0_100, %c0_101, %c0_102, %c0_103] : memref<1x8x16x16xf32, #tpu.memory_space<vmem>>, vector<1x8x16x16xf32>
    tpu.vector_store %arg10[%c0_100, %c0_101, %c0_102, %c0_103], %112 {strides = array<i32>} : memref<1x8x16x16xf32, #tpu.memory_space<vmem>>, vector<1x8x16x16xf32>,
    return
  }
  func.func @transform_0(%arg0: i32, %arg1: i32) -> (i32, i32, i32, i32) {
    %c0_i32 = arith.constant 0 : i32
    %c0_i32_0 = arith.constant 0 : i32
    %c0_i32_1 = arith.constant 0 : i32
    return %arg0, %arg1, %c0_i32, %c0_i32_0 : i32, i32, i32, i32
  }
  func.func @transform_1(%arg0: i32, %arg1: i32) -> (i32, i32, i32, i32, i32) {
    %c0_i32 = arith.constant 0 : i32
    %c0_i32_0 = arith.constant 0 : i32
    %c0_i32_1 = arith.constant 0 : i32
    %c0_i32_2 = arith.constant 0 : i32
    return %arg0, %arg1, %c0_i32, %c0_i32_0, %c0_i32_1 : i32, i32, i32, i32, i32
  }
  func.func @transform_2(%arg0: i32, %arg1: i32) -> (i32, i32) {
    %c0_i32 = arith.constant 0 : i32
    %c0_i32_0 = arith.constant 0 : i32
    %c0_i32_1 = arith.constant 0 : i32
    return %c0_i32, %c0_i32_0 : i32, i32
  }
  func.func @transform_3(%arg0: i32, %arg1: i32) -> (i32, i32, i32) {
    %c0_i32 = arith.constant 0 : i32
    %c0_i32_0 = arith.constant 0 : i32
    %c0_i32_1 = arith.constant 0 : i32
    %c0_i32_2 = arith.constant 0 : i32
    return %c0_i32, %c0_i32_0, %c0_i32_1 : i32, i32, i32
  }
  func.func @transform_4(%arg0: i32, %arg1: i32) -> (i32, i32) {
    %c0_i32 = arith.constant 0 : i32
    %c0_i32_0 = arith.constant 0 : i32
    %c0_i32_1 = arith.constant 0 : i32
    return %c0_i32, %c0_i32_0 : i32, i32
  }
  func.func @transform_5(%arg0: i32, %arg1: i32) -> (i32, i32) {
    %c0_i32 = arith.constant 0 : i32
    %c0_i32_0 = arith.constant 0 : i32
    %c0_i32_1 = arith.constant 0 : i32
    return %c0_i32, %c0_i32_0 : i32, i32
  }
  func.func @transform_6(%arg0: i32, %arg1: i32) -> (i32, i32) {
    %c0_i32 = arith.constant 0 : i32
    %c0_i32_0 = arith.constant 0 : i32
    %c0_i32_1 = arith.constant 0 : i32
    return %c0_i32, %c0_i32_0 : i32, i32
  }
  func.func @transform_7(%arg0: i32, %arg1: i32) -> (i32, i32) {
    %c0_i32 = arith.constant 0 : i32
    %c0_i32_0 = arith.constant 0 : i32
    %c0_i32_1 = arith.constant 0 : i32
    return %c0_i32, %c0_i32_0 : i32, i32
  }
  func.func @transform_8(%arg0: i32, %arg1: i32) -> (i32, i32, i32, i32) {
    %c0_i32 = arith.constant 0 : i32
    %c0_i32_0 = arith.constant 0 : i32
    %c0_i32_1 = arith.constant 0 : i32
    return %arg0, %arg1, %c0_i32, %c0_i32_0 : i32, i32, i32, i32
  }
}

</mosaic_0001>

<llo_original>
// kernel: bottleneck_pallas.1
$region0: #{bottleneck_pallas.1}
  #allocation0 [shape = 'u32[]', space=smem, size = 0x4, offset = 0x4, fixed_abs, tag = 'smem constant byte address 0x4 - core index']
  #allocation1 [shape = 'u32[144,128]{1,0:T(1,128)}', space=vmem, size = 0x12000, scoped, tag = 'internal scratch']
  #allocation2 [shape = 'bf16[10,18,4]{2,1,0:T(8,128)(2,1)}', space=vmem, size = 0xf000, scoped, tag = 'scratch operand']
  %s0 = inlined_call_operand.vmem [shape: f32[2,16,16,16], index: 0, kind: input, shape index: {}]
  %s1 = inlined_call_operand.vmem [shape: f32[2,2,2,16,16], index: 1, kind: input, shape index: {}]
  %s2 = inlined_call_operand.vmem [shape: bf16[16,4], index: 2, kind: input, shape index: {}]
  %s3 = inlined_call_operand.vmem [shape: bf16[9,4,4], index: 3, kind: input, shape index: {}]
  %s4 = inlined_call_operand.vmem [shape: bf16[4,16], index: 4, kind: input, shape index: {}]
  %s5 = inlined_call_operand.vmem [shape: f32[1,4], index: 5, kind: input, shape index: {}]
  %s6 = inlined_call_operand.vmem [shape: f32[1,4], index: 6, kind: input, shape index: {}]
  %s7 = inlined_call_operand.vmem [shape: f32[1,16], index: 7, kind: input, shape index: {}]
  %s8 = inlined_call_operand.hbm [shape: f32[2,16,16,16], index: 8, kind: output, shape index: {}]
  %s9 = sld [smem:[#allocation0]]
  $region65: #{bottleneck_pallas.1} parent=0
    _
  %s11 = ssub.s32 1, %s9
  %s12 = scalar_select 0, %s11, %s9
  $region1: #{bottleneck_pallas.1} parent=0
    #allocation3 [shape = 'u8[131072]{0}', space=vmem, size = 0x20000, scoped, tag = 'output window, operand 0']
    #allocation4 [shape = 's32[2]{0}', space=sflag, size = 0x8, scoped, tag = 'scoped memory for bottleneck_pallas.1']
    %13 = vsyncpa [#allocation4], 0
    %s14 = scalar_lea.sflag [#allocation4], 1
    %15 = vsyncpa %s14, 0
    loop: start=0, step=1, limit=6
    $region2: #{bottleneck_pallas.1} parent=1 // loop_pre_header
      _
    $region3: #{bottleneck_pallas.1} parent=1 // loop_header
      %s17 = sphi 0, %s21
      %p18 = scmp.ge.s32.totalorder %s17, 6
      %s24 = sphi 0, %s36
      %s25 = sphi 0, %s32
      %s26 = sphi 0, %s24
      %s27 = sphi 0, %s25
      %s28 = sphi 0, %s26
      %s29 = sphi 0, %s27
      %s41 = sphi 0, %s43
      %s44 = sphi 0, %s41
      %s45 = sphi 0, %s44
      %s61 = sphi 0, %s45
      %s69 = sphi 0, %s71
      %s72 = sphi 0, %s69
      %s73 = sphi 0, %s72
      %s89 = sphi 0, %s73
      %s93 = sphi 0, %s93
      %s95 = sphi 0, %s93
      %s96 = sphi 0, %s95
      %s110 = sphi 0, %s96
      %s114 = sphi 0, %s114
      %s116 = sphi 0, %s114
      %s117 = sphi 0, %s116
      %s131 = sphi 0, %s117
      %s135 = sphi 0, %s135
      %s137 = sphi 0, %s135
      %s138 = sphi 0, %s137
      %s152 = sphi 0, %s138
      %s156 = sphi 0, %s156
      %s158 = sphi 0, %s156
      %s159 = sphi 0, %s158
      %s173 = sphi 0, %s159
      %s177 = sphi 0, %s177
      %s179 = sphi 0, %s177
      %s180 = sphi 0, %s179
      %s194 = sphi 0, %s180
      %s198 = sphi 0, %s198
      %s200 = sphi 0, %s198
      %s201 = sphi 0, %s200
      %s215 = sphi 0, %s201
      %s223 = sphi 0, %s225
      %s226 = sphi 0, %s223
      %s227 = sphi 0, %s226
      %s243 = sphi 0, %s227
    $region4: #{bottleneck_pallas.1} parent=1 // loop_header_branch
      %20 = sbr.rel (%p18) target = $region8
    $region5: #{bottleneck_pallas.1} parent=1 // loop_body
      %s22 = ssub.s32 %s17, 1
      %s23 = ssub.s32 %s17, 2
      %s30 = sadd.s32 1, %s25
      %p31 = scmp.ge.s32.totalorder %s30, 2
      %s32 = scalar_select %p31, 0, %s30
      %s33 = sadd.s32 1, %s24
      %s34 = scalar_select %p31, %s33, %s24
      %p35 = scmp.ge.s32.totalorder %s34, 2
      %s36 = scalar_select %p35, 0, %s34
      %s37 = ssub.s32 %s24, %s36
      %s38 = ssub.s32 %s25, %s32
      %s39 = sor.u32 %s37, %s38
      %p40 = scmp.eq.s32.totalorder %s39, 0
      %s42 = sadd.s32 %s41, 1
      %s43 = scalar_select %p40, %s41, %s42
      %p46 = pneg %p40
      %p47 = scmp.eq.s32.totalorder %s17, 3
      %p48 = por %p46, %p47
      %p49 = scmp.ne.s32.totalorder %s41, %s44
      %p50 = scmp.eq.s32.totalorder %s17, 0
      %p51 = por %p49, %p50
      %p52 = scmp.ne.s32.totalorder %s41, %s44
      %p53 = scmp.eq.s32.totalorder %s22, 3
      %p54 = por %p52, %p53
      %p55 = scmp.ne.s32.totalorder %s44, %s45
      %p56 = scmp.eq.s32.totalorder %s22, 0
      %p57 = por %p55, %p56
      %p58 = scmp.ne.s32.totalorder %s44, %s45
      %p59 = scmp.eq.s32.totalorder %s23, 3
      %p60 = por %p58, %p59
      %p62 = scmp.ne.s32.totalorder %s45, %s61
      %p63 = scmp.eq.s32.totalorder %s23, 0
      %p64 = por %p62, %p63
      %s65 = ssub.s32 %s24, %s36
      %s66 = ssub.s32 %s25, %s32
      %s67 = sor.u32 %s65, %s66
      %p68 = scmp.eq.s32.totalorder %s67, 0
      %s70 = sadd.s32 %s69, 1
      %s71 = scalar_select %p68, %s69, %s70
      %p74 = pneg %p68
      %p75 = scmp.eq.s32.totalorder %s17, 3
      %p76 = por %p74, %p75
      %p77 = scmp.ne.s32.totalorder %s69, %s72
      %p78 = scmp.eq.s32.totalorder %s17, 0
      %p79 = por %p77, %p78
      %p80 = scmp.ne.s32.totalorder %s69, %s72
      %p81 = scmp.eq.s32.totalorder %s22, 3
      %p82 = por %p80, %p81
      %p83 = scmp.ne.s32.totalorder %s72, %s73
      %p84 = scmp.eq.s32.totalorder %s22, 0
      %p85 = por %p83, %p84
      %p86 = scmp.ne.s32.totalorder %s72, %s73
      %p87 = scmp.eq.s32.totalorder %s23, 3
      %p88 = por %p86, %p87
      %p90 = scmp.ne.s32.totalorder %s73, %s89
      %p91 = scmp.eq.s32.totalorder %s23, 0
      %p92 = por %p90, %p91
      %s94 = sadd.s32 %s93, 1
      %p97 = scmp.eq.s32.totalorder %s17, 3
      %p98 = scmp.ne.s32.totalorder %s93, %s95
      %p99 = scmp.eq.s32.totalorder %s17, 0
      %p100 = por %p98, %p99
      %p101 = scmp.ne.s32.totalorder %s93, %s95
      %p102 = scmp.eq.s32.totalorder %s22, 3
      %p103 = por %p101, %p102
      %p104 = scmp.ne.s32.totalorder %s95, %s96
      %p105 = scmp.eq.s32.totalorder %s22, 0
      %p106 = por %p104, %p105
      %p107 = scmp.ne.s32.totalorder %s95, %s96
      %p108 = scmp.eq.s32.totalorder %s23, 3
      %p109 = por %p107, %p108
      %p111 = scmp.ne.s32.totalorder %s96, %s110
      %p112 = scmp.eq.s32.totalorder %s23, 0
      %p113 = por %p111, %p112
      %s115 = sadd.s32 %s114, 1
      %p118 = scmp.eq.s32.totalorder %s17, 3
      %p119 = scmp.ne.s32.totalorder %s114, %s116
      %p120 = scmp.eq.s32.totalorder %s17, 0
      %p121 = por %p119, %p120
      %p122 = scmp.ne.s32.totalorder %s114, %s116
      %p123 = scmp.eq.s32.totalorder %s22, 3
      %p124 = por %p122, %p123
      %p125 = scmp.ne.s32.totalorder %s116, %s117
      %p126 = scmp.eq.s32.totalorder %s22, 0
      %p127 = por %p125, %p126
      %p128 = scmp.ne.s32.totalorder %s116, %s117
      %p129 = scmp.eq.s32.totalorder %s23, 3
      %p130 = por %p128, %p129
      %p132 = scmp.ne.s32.totalorder %s117, %s131
      %p133 = scmp.eq.s32.totalorder %s23, 0
      %p134 = por %p132, %p133
      %s136 = sadd.s32 %s135, 1
      %p139 = scmp.eq.s32.totalorder %s17, 3
      %p140 = scmp.ne.s32.totalorder %s135, %s137
      %p141 = scmp.eq.s32.totalorder %s17, 0
      %p142 = por %p140, %p141
      %p143 = scmp.ne.s32.totalorder %s135, %s137
      %p144 = scmp.eq.s32.totalorder %s22, 3
      %p145 = por %p143, %p144
      %p146 = scmp.ne.s32.totalorder %s137, %s138
      %p147 = scmp.eq.s32.totalorder %s22, 0
      %p148 = por %p146, %p147
      %p149 = scmp.ne.s32.totalorder %s137, %s138
      %p150 = scmp.eq.s32.totalorder %s23, 3
      %p151 = por %p149, %p150
      %p153 = scmp.ne.s32.totalorder %s138, %s152
      %p154 = scmp.eq.s32.totalorder %s23, 0
      %p155 = por %p153, %p154
      %s157 = sadd.s32 %s156, 1
      %p160 = scmp.eq.s32.totalorder %s17, 3
      %p161 = scmp.ne.s32.totalorder %s156, %s158
      %p162 = scmp.eq.s32.totalorder %s17, 0
      %p163 = por %p161, %p162
      %p164 = scmp.ne.s32.totalorder %s156, %s158
      %p165 = scmp.eq.s32.totalorder %s22, 3
      %p166 = por %p164, %p165
      %p167 = scmp.ne.s32.totalorder %s158, %s159
      %p168 = scmp.eq.s32.totalorder %s22, 0
      %p169 = por %p167, %p168
      %p170 = scmp.ne.s32.totalorder %s158, %s159
      %p171 = scmp.eq.s32.totalorder %s23, 3
      %p172 = por %p170, %p171
      %p174 = scmp.ne.s32.totalorder %s159, %s173
      %p175 = scmp.eq.s32.totalorder %s23, 0
      %p176 = por %p174, %p175
      %s178 = sadd.s32 %s177, 1
      %p181 = scmp.eq.s32.totalorder %s17, 3
      %p182 = scmp.ne.s32.totalorder %s177, %s179
      %p183 = scmp.eq.s32.totalorder %s17, 0
      %p184 = por %p182, %p183
      %p185 = scmp.ne.s32.totalorder %s177, %s179
      %p186 = scmp.eq.s32.totalorder %s22, 3
      %p187 = por %p185, %p186
      %p188 = scmp.ne.s32.totalorder %s179, %s180
      %p189 = scmp.eq.s32.totalorder %s22, 0
      %p190 = por %p188, %p189
      %p191 = scmp.ne.s32.totalorder %s179, %s180
      %p192 = scmp.eq.s32.totalorder %s23, 3
      %p193 = por %p191, %p192
      %p195 = scmp.ne.s32.totalorder %s180, %s194
      %p196 = scmp.eq.s32.totalorder %s23, 0
      %p197 = por %p195, %p196
      %s199 = sadd.s32 %s198, 1
      %p202 = scmp.eq.s32.totalorder %s17, 3
      %p203 = scmp.ne.s32.totalorder %s198, %s200
      %p204 = scmp.eq.s32.totalorder %s17, 0
      %p205 = por %p203, %p204
      %p206 = scmp.ne.s32.totalorder %s198, %s200
      %p207 = scmp.eq.s32.totalorder %s22, 3
      %p208 = por %p206, %p207
      %p209 = scmp.ne.s32.totalorder %s200, %s201
      %p210 = scmp.eq.s32.totalorder %s22, 0
      %p211 = por %p209, %p210
      %p212 = scmp.ne.s32.totalorder %s200, %s201
      %p213 = scmp.eq.s32.totalorder %s23, 3
      %p214 = por %p212, %p213
      %p216 = scmp.ne.s32.totalorder %s201, %s215
      %p217 = scmp.eq.s32.totalorder %s23, 0
      %p218 = por %p216, %p217
      %s219 = ssub.s32 %s24, %s36
      %s220 = ssub.s32 %s25, %s32
      %s221 = sor.u32 %s219, %s220
      %p222 = scmp.eq.s32.totalorder %s221, 0
      %s224 = sadd.s32 %s223, 1
      %s225 = scalar_select %p222, %s223, %s224
      %p228 = pneg %p222
      %p229 = scmp.eq.s32.totalorder %s17, 3
      %p230 = por %p228, %p229
      %p231 = scmp.ne.s32.totalorder %s223, %s226
      %p232 = scmp.eq.s32.totalorder %s17, 0
      %p233 = por %p231, %p232
      %p234 = scmp.ne.s32.totalorder %s223, %s226
      %p235 = scmp.eq.s32.totalorder %s22, 3
      %p236 = por %p234, %p235
      %p237 = scmp.ne.s32.totalorder %s226, %s227
      %p238 = scmp.eq.s32.totalorder %s22, 0
      %p239 = por %p237, %p238
      %p240 = scmp.ne.s32.totalorder %s226, %s227
      %p241 = scmp.eq.s32.totalorder %s23, 3
      %p242 = por %p240, %p241
      %p244 = scmp.ne.s32.totalorder %s227, %s243
      %p245 = scmp.eq.s32.totalorder %s23, 0
      %p246 = por %p244, %p245
      %p247 = scmp.le.s32.totalorder 1, %s17
      %p248 = scmp.lt.s32.totalorder %s17, 5
      %p249 = pnand %p247, %p248
      %p250 = pneg %p249
      // Predicated region
      $region9: #{bottleneck_pallas.1} parent=5 // pred_check
        _
      $region10: #{bottleneck_pallas.1} parent=5 // pred_check_branch
        %252 = sbr.rel (%p249) target = $region12
      $region11: #{bottleneck_pallas.1} parent=5 // pred_region
        %s253 = ssub.s32 %s17, 1
        // Predicated region
        $region13: #{bottleneck_pallas.1} parent=11 // pred_check
          %p254 = pneg %p106
        $region14: #{bottleneck_pallas.1} parent=11 // pred_check_branch
          %256 = sbr.rel (%p254) target = $region16
        $region15: #{bottleneck_pallas.1} parent=11 // pred_region
          _
        $region16: #{bottleneck_pallas.1} parent=11 // pred_fallthru
          _
        // Predicated region
        $region17: #{bottleneck_pallas.1} parent=11 // pred_check
          %p257 = pneg %p127
        $region18: #{bottleneck_pallas.1} parent=11 // pred_check_branch
          %259 = sbr.rel (%p257) target = $region20
        $region19: #{bottleneck_pallas.1} parent=11 // pred_region
          _
        $region20: #{bottleneck_pallas.1} parent=11 // pred_fallthru
          _
        // Predicated region
        $region21: #{bottleneck_pallas.1} parent=11 // pred_check
          %p260 = pneg %p148
        $region22: #{bottleneck_pallas.1} parent=11 // pred_check_branch
          %262 = sbr.rel (%p260) target = $region24
        $region23: #{bottleneck_pallas.1} parent=11 // pred_region
          _
        $region24: #{bottleneck_pallas.1} parent=11 // pred_fallthru
          _
        // Predicated region
        $region25: #{bottleneck_pallas.1} parent=11 // pred_check
          %p263 = pneg %p169
        $region26: #{bottleneck_pallas.1} parent=11 // pred_check_branch
          %265 = sbr.rel (%p263) target = $region28
        $region27: #{bottleneck_pallas.1} parent=11 // pred_region
          _
        $region28: #{bottleneck_pallas.1} parent=11 // pred_fallthru
          _
        // Predicated region
        $region29: #{bottleneck_pallas.1} parent=11 // pred_check
          %p266 = pneg %p190
        $region30: #{bottleneck_pallas.1} parent=11 // pred_check_branch
          %268 = sbr.rel (%p266) target = $region32
        $region31: #{bottleneck_pallas.1} parent=11 // pred_region
          _
        $region32: #{bottleneck_pallas.1} parent=11 // pred_fallthru
          _
        // Predicated region
        $region33: #{bottleneck_pallas.1} parent=11 // pred_check
          %p269 = pneg %p211
        $region34: #{bottleneck_pallas.1} parent=11 // pred_check_branch
          %271 = sbr.rel (%p269) target = $region36
        $region35: #{bottleneck_pallas.1} parent=11 // pred_region
          _
        $region36: #{bottleneck_pallas.1} parent=11 // pred_fallthru
          _
      $region12: #{bottleneck_pallas.1} parent=5 // pred_fallthru
        _
      %p272 = scmp.lt.s32.totalorder %s17, 4
      // Predicated region
      $region37: #{bottleneck_pallas.1} parent=5 // pred_check
        %p273 = pneg %p272
      $region38: #{bottleneck_pallas.1} parent=5 // pred_check_branch
        %275 = sbr.rel (%p273) target = $region40
      $region39: #{bottleneck_pallas.1} parent=5 // pred_region
        // Predicated region
        $region41: #{bottleneck_pallas.1} parent=39 // pred_check
          %p276 = pneg %p51
        $region42: #{bottleneck_pallas.1} parent=39 // pred_check_branch
          %278 = sbr.rel (%p276) target = $region44
        $region43: #{bottleneck_pallas.1} parent=39 // pred_region
          %s279 = smul.u32 8, %s25
          %p280 = scmp.lt.s32.totalorder %s24, 1
          %s281 = scalar_select %p280, %s24, 1
          %p282 = scmp.lt.s32.totalorder %s279, 15
          %s283 = scalar_select %p282, %s279, 15
          %s284 = smul.addr %s283, 2
          %s285 = smul.addr %s281, 32
          %s286 = sadd.s32 %s284, %s285
          %s287 = smul.addr %s286, 8
          %s288 = scalar_lea.vmem %s0, %s287
          %s289 = smul.u32 8, %s25
        $region44: #{bottleneck_pallas.1} parent=39 // pred_fallthru
          _
        // Predicated region
        $region45: #{bottleneck_pallas.1} parent=39 // pred_check
          %p290 = pneg %p79
        $region46: #{bottleneck_pallas.1} parent=39 // pred_check_branch
          %292 = sbr.rel (%p290) target = $region48
        $region47: #{bottleneck_pallas.1} parent=39 // pred_region
          %p293 = scmp.lt.s32.totalorder %s24, 1
          %s294 = scalar_select %p293, %s24, 1
          %p295 = scmp.lt.s32.totalorder %s25, 1
          %s296 = scalar_select %p295, %s25, 1
          %s297 = smul.addr %s296, 4
          %s298 = smul.addr %s294, 8
          %s299 = sadd.s32 %s297, %s298
          %s300 = smul.addr %s299, 8
          %s301 = scalar_lea.vmem %s1, %s300
        $region48: #{bottleneck_pallas.1} parent=39 // pred_fallthru
          _
      $region40: #{bottleneck_pallas.1} parent=5 // pred_fallthru
        _
      %p302 = scmp.le.s32.totalorder 1, %s17
      %p303 = scmp.lt.s32.totalorder %s17, 5
      %p304 = pnand %p302, %p303
      %p305 = pneg %p304
      // Predicated region
      $region49: #{bottleneck_pallas.1} parent=5 // pred_check
        _
      $region50: #{bottleneck_pallas.1} parent=5 // pred_check_branch
        %307 = sbr.rel (%p304) target = $region52
      $region51: #{bottleneck_pallas.1} parent=5 // pred_region
        %s308 = ssub.s32 %s17, 1
        %s309 = smul.u32 8, %s27
        %p310 = scmp.lt.s32.totalorder %s26, 1
        %s311 = scalar_select %p310, %s26, 1
        %p312 = scmp.lt.s32.totalorder %s309, 15
        %s313 = scalar_select %p312, %s309, 15
        %s314 = smul.addr %s313, 2
        %s315 = smul.addr %s311, 32
        %s316 = sadd.s32 %s314, %s315
        %s317 = smul.addr %s316, 8
        %s318 = scalar_lea.vmem %s0, %s317
        %p319 = pneg %p57
        %p320 = pneg %p54
        %p321 = scmp.lt.s32.totalorder %s26, 1
        %s322 = scalar_select %p321, %s26, 1
        %p323 = scmp.lt.s32.totalorder %s27, 1
        %s324 = scalar_select %p323, %s27, 1
        %s325 = smul.addr %s324, 4
        %s326 = smul.addr %s322, 8
        %s327 = sadd.s32 %s325, %s326
        %s328 = smul.addr %s327, 8
        %s329 = scalar_lea.vmem %s1, %s328
        %p330 = pneg %p85
        %p331 = pneg %p82
        %p332 = pneg %p106
        %p333 = pneg %p103
        %p334 = pneg %p127
        %p335 = pneg %p124
        %p336 = pneg %p148
        %p337 = pneg %p145
        %p338 = pneg %p169
        %p339 = pneg %p166
        %p340 = pneg %p190
        %p341 = pneg %p187
        %p342 = pneg %p211
        %p343 = pneg %p208
        %p344 = pneg %p239
        %p345 = pneg %p236
        %s346 = sand.u32 %s226, 1
        %s347 = scalar_lea.sflag [#allocation4], %s346
        %s348 = sand.u32 %s226, 1
        %s349 = smul.addr %s348, 128
        %s350 = scalar_lea.vmem [#allocation3], %s349
        %s351 = smul.u32 8, %s27
        %p352 = scmp.lt.s32.totalorder %s26, 1
        %s353 = scalar_select %p352, %s26, 1
        %p354 = scmp.lt.s32.totalorder %s351, 15
        %s355 = scalar_select %p354, %s351, 15
        %s356 = smul.addr %s355, 2
        %s357 = smul.addr %s353, 32
        %s358 = sadd.s32 %s356, %s357
        %s359 = smul.addr %s358, 8
        %s360 = scalar_lea.vmem %s0, %s359
        %s361 = smul.u32 8, %s27
        %p362 = scmp.lt.s32.totalorder %s26, 1
        %s363 = scalar_select %p362, %s26, 1
        %p364 = scmp.lt.s32.totalorder %s27, 1
        %s365 = scalar_select %p364, %s27, 1
        %s366 = smul.addr %s365, 4
        %s367 = smul.addr %s363, 8
        %s368 = sadd.s32 %s366, %s367
        %s369 = smul.addr %s368, 8
        %s370 = scalar_lea.vmem %s1, %s369
        %s371 = smul.u32 8, %s27
        %v373 = vld [vmem:[%s360] sm:$0xff]
        %v374 = vld [vmem:[%s360 + $0x8] sm:$0xff]
        %v375 = vld [vmem:[%s360 + $0x10] sm:$0xff]
        %v376 = vld [vmem:[%s360 + $0x18] sm:$0xff]
        %v377 = vld [vmem:[%s360 + $0x20] sm:$0xff]
        %v378 = vld [vmem:[%s360 + $0x28] sm:$0xff]
        %v379 = vld [vmem:[%s360 + $0x30] sm:$0xff]
        %v380 = vld [vmem:[%s360 + $0x38] sm:$0xff]
        %v381 = vld [vmem:[%s360 + $0x40] sm:$0xff]
        %v382 = vld [vmem:[%s360 + $0x48] sm:$0xff]
        %v383 = vld [vmem:[%s360 + $0x50] sm:$0xff]
        %v384 = vld [vmem:[%s360 + $0x58] sm:$0xff]
        %v385 = vld [vmem:[%s360 + $0x60] sm:$0xff]
        %v386 = vld [vmem:[%s360 + $0x68] sm:$0xff]
        %v387 = vld [vmem:[%s360 + $0x70] sm:$0xff]
        %v388 = vld [vmem:[%s360 + $0x78] sm:$0xff]
        %v389 = vpack.c.bf16 %v374, %v373
        %v390 = vpack.c.bf16 %v376, %v375
        %v391 = vpack.c.bf16 %v378, %v377
        %v392 = vpack.c.bf16 %v380, %v379
        %v393 = vpack.c.bf16 %v382, %v381
        %v394 = vpack.c.bf16 %v384, %v383
        %v395 = vpack.c.bf16 %v386, %v385
        %v396 = vpack.c.bf16 %v388, %v387
        %v397 = vld [vmem:[%s2] sm:$0xf]
        %v398 = vld [vmem:[%s2 + $0x4] sm:$0xf]
        %v399 = vld [vmem:[%s5] sm:$0x1]
        %v401 = vlaneseq
        %v402 = vshrl.u32 %v401, 7
        %v403 = vsub.s32 0, %v402
        %v404 = vrot.slane %v399, %v403
        %v408 = vunpack.c.l.b16 %v397
        %v409 = vunpack.c.l.b16 %v398
        %v410 = vpack.c.b16 %v409, %v408
        %vm412 = vcmask 130048
        %v414 = vsel %vm412, %v389, 0
        %v417 = vsel %vm412, %v390, 0
        %v420 = vsel %vm412, %v391, 0
        %v423 = vsel %vm412, %v392, 0
        %v426 = vsel %vm412, %v393, 0
        %v429 = vsel %vm412, %v394, 0
        %v432 = vsel %vm412, %v395, 0
        %v435 = vsel %vm412, %v396, 0
        %437 = vmatprep.subr.bf16.mxu0 0
        %438 = vmatpush1.bf16.msra.mxu0 0
        %439 = vmatprep.subr.bf16.mxu0 0
        %440 = vmatpush1.bf16.msra.mxu0 0
        %441 = vmatprep.subr.bf16.mxu0 0
        %442 = vmatpush1.bf16.msra.mxu0 0
        %443 = vmatprep.subr.bf16.mxu0 0
        %444 = vmatpush1.bf16.msra.mxu0 0
        %445 = vmatprep.subr.bf16.mxu0 0
        %446 = vmatpush1.bf16.msra.mxu0 0
        %447 = vmatprep.subr.bf16.mxu0 0
        %448 = vmatpush1.bf16.msra.mxu0 0
        %449 = vmatprep.subr.bf16.mxu0 0
        %450 = vmatpush1.bf16.msra.mxu0 0
        %451 = vmatprep.subr.bf16.mxu0 0
        %452 = vmatpush1.bf16.msra.mxu0 %v410
        %453 = vmatprep.subr.bf16.mxu0 0
        %454 = vmatpush2.bf16.msra.mxu0 0
        %455 = vmatprep.subr.bf16.mxu0 0
        %456 = vmatpush2.bf16.msra.mxu0 0
        %457 = vmatprep.subr.bf16.mxu0 0
        %458 = vmatpush2.bf16.msra.mxu0 0
        %459 = vmatprep.subr.bf16.mxu0 0
        %460 = vmatpush2.bf16.msra.mxu0 0
        %461 = vmatprep.subr.bf16.mxu0 0
        %462 = vmatpush2.bf16.msra.mxu0 0
        %463 = vmatprep.subr.bf16.mxu0 0
        %464 = vmatpush2.bf16.msra.mxu0 0
        %465 = vmatprep.subr.bf16.mxu0 0
        %466 = vmatpush2.bf16.msra.mxu0 0
        %467 = vmatprep.subr.bf16.mxu0 0
        %468 = vmatpush2.bf16.msra.mxu0 0
        %469 = vmatprep.mubr.bf16.mxu0 0
        %470 = vmatmul.mubr.bf16.gmra.mxu0 %v414
        %v471 = vpop.f32.mrf.mxu0
        %v472 = vadd.f32 %v404, %v471
        %v473 = vpop.f32.mrf.mxu0
        %v474 = vpop.f32.mrf.mxu0
        %v475 = vadd.f32 %v404, %v474
        %v476 = vpop.f32.mrf.mxu0
        %477 = vmatprep.mubr.bf16.mxu0 0
        %478 = vmatmul.mubr.bf16.gmra.mxu0 %v417
        %v479 = vpop.f32.mrf.mxu0
        %v480 = vadd.f32 %v404, %v479
        %v481 = vpop.f32.mrf.mxu0
        %v482 = vpop.f32.mrf.mxu0
        %v483 = vadd.f32 %v404, %v482
        %v484 = vpop.f32.mrf.mxu0
        %485 = vmatprep.mubr.bf16.mxu0 0
        %486 = vmatmul.mubr.bf16.gmra.mxu0 %v420
        %v487 = vpop.f32.mrf.mxu0
        %v488 = vadd.f32 %v404, %v487
        %v489 = vpop.f32.mrf.mxu0
        %v490 = vpop.f32.mrf.mxu0
        %v491 = vadd.f32 %v404, %v490
        %v492 = vpop.f32.mrf.mxu0
        %493 = vmatprep.mubr.bf16.mxu0 0
        %494 = vmatmul.mubr.bf16.gmra.mxu0 %v423
        %v495 = vpop.f32.mrf.mxu0
        %v496 = vadd.f32 %v404, %v495
        %v497 = vpop.f32.mrf.mxu0
        %v498 = vpop.f32.mrf.mxu0
        %v499 = vadd.f32 %v404, %v498
        %v500 = vpop.f32.mrf.mxu0
        %501 = vmatprep.mubr.bf16.mxu0 0
        %502 = vmatmul.mubr.bf16.gmra.mxu0 %v426
        %v503 = vpop.f32.mrf.mxu0
        %v504 = vadd.f32 %v404, %v503
        %v505 = vpop.f32.mrf.mxu0
        %v506 = vpop.f32.mrf.mxu0
        %v507 = vadd.f32 %v404, %v506
        %v508 = vpop.f32.mrf.mxu0
        %509 = vmatprep.mubr.bf16.mxu0 0
        %510 = vmatmul.mubr.bf16.gmra.mxu0 %v429
        %v511 = vpop.f32.mrf.mxu0
        %v512 = vadd.f32 %v404, %v511
        %v513 = vpop.f32.mrf.mxu0
        %v514 = vpop.f32.mrf.mxu0
        %v515 = vadd.f32 %v404, %v514
        %v516 = vpop.f32.mrf.mxu0
        %517 = vmatprep.mubr.bf16.mxu0 0
        %518 = vmatmul.mubr.bf16.gmra.mxu0 %v432
        %v519 = vpop.f32.mrf.mxu0
        %v520 = vadd.f32 %v404, %v519
        %v521 = vpop.f32.mrf.mxu0
        %v522 = vpop.f32.mrf.mxu0
        %v523 = vadd.f32 %v404, %v522
        %v524 = vpop.f32.mrf.mxu0
        %525 = vmatprep.mubr.bf16.mxu0 0
        %526 = vmatmul.mubr.bf16.gmra.mxu0 %v435
        %v527 = vpop.f32.mrf.mxu0
        %v528 = vadd.f32 %v404, %v527
        %v529 = vpop.f32.mrf.mxu0
        %v530 = vpop.f32.mrf.mxu0
        %v531 = vadd.f32 %v404, %v530
        %v532 = vpop.f32.mrf.mxu0
        %533 = vdwg.mxu0
        %v534 = vmax.f32 %v472, 0.0
        %v535 = vmax.f32 %v475, 0.0
        %v536 = vmax.f32 %v480, 0.0
        %v537 = vmax.f32 %v483, 0.0
        %v538 = vmax.f32 %v488, 0.0
        %v539 = vmax.f32 %v491, 0.0
        %v540 = vmax.f32 %v496, 0.0
        %v541 = vmax.f32 %v499, 0.0
        %v542 = vmax.f32 %v504, 0.0
        %v543 = vmax.f32 %v507, 0.0
        %v544 = vmax.f32 %v512, 0.0
        %v545 = vmax.f32 %v515, 0.0
        %v546 = vmax.f32 %v520, 0.0
        %v547 = vmax.f32 %v523, 0.0
        %v548 = vmax.f32 %v528, 0.0
        %v549 = vmax.f32 %v531, 0.0
        %v550 = vld [vmem:[%s370] sm:$0xff]
        %v551 = vld [vmem:[%s370 + $0x8] sm:$0xff]
        %v552 = vld [vmem:[%s370 + $0x10] sm:$0xff]
        %v553 = vld [vmem:[%s370 + $0x18] sm:$0xff]
        %v554 = vpack.c.bf16 %v551, %v550
        %v555 = vpack.c.bf16 %v553, %v552
        %v557 = vsel %vm412, %v554, 0
        %v560 = vsel %vm412, %v555, 0
        %562 = vmatprep.subr.bf16.mxu0 0
        %563 = vmatpush1.bf16.msra.mxu0 0
        %564 = vmatprep.subr.bf16.mxu0 0
        %565 = vmatpush1.bf16.msra.mxu0 0
        %566 = vmatprep.subr.bf16.mxu0 0
        %567 = vmatpush1.bf16.msra.mxu0 0
        %568 = vmatprep.subr.bf16.mxu0 0
        %569 = vmatpush1.bf16.msra.mxu0 0
        %570 = vmatprep.subr.bf16.mxu0 0
        %571 = vmatpush1.bf16.msra.mxu0 0
        %572 = vmatprep.subr.bf16.mxu0 0
        %573 = vmatpush1.bf16.msra.mxu0 0
        %574 = vmatprep.subr.bf16.mxu0 0
        %575 = vmatpush1.bf16.msra.mxu0 0
        %576 = vmatprep.subr.bf16.mxu0 0
        %577 = vmatpush1.bf16.msra.mxu0 %v410
        %578 = vmatprep.subr.bf16.mxu0 0
        %579 = vmatpush2.bf16.msra.mxu0 0
        %580 = vmatprep.subr.bf16.mxu0 0
        %581 = vmatpush2.bf16.msra.mxu0 0
        %582 = vmatprep.subr.bf16.mxu0 0
        %583 = vmatpush2.bf16.msra.mxu0 0
        %584 = vmatprep.subr.bf16.mxu0 0
        %585 = vmatpush2.bf16.msra.mxu0 0
        %586 = vmatprep.subr.bf16.mxu0 0
        %587 = vmatpush2.bf16.msra.mxu0 0
        %588 = vmatprep.subr.bf16.mxu0 0
        %589 = vmatpush2.bf16.msra.mxu0 0
        %590 = vmatprep.subr.bf16.mxu0 0
        %591 = vmatpush2.bf16.msra.mxu0 0
        %592 = vmatprep.subr.bf16.mxu0 0
        %593 = vmatpush2.bf16.msra.mxu0 0
        %594 = vmatprep.mubr.bf16.mxu0 0
        %595 = vmatmul.mubr.bf16.gmra.mxu0 %v557
        %v596 = vpop.f32.mrf.mxu0
        %v597 = vadd.f32 %v404, %v596
        %v598 = vpop.f32.mrf.mxu0
        %v599 = vpop.f32.mrf.mxu0
        %v600 = vadd.f32 %v404, %v599
        %v601 = vpop.f32.mrf.mxu0
        %602 = vmatprep.mubr.bf16.mxu0 0
        %603 = vmatmul.mubr.bf16.gmra.mxu0 %v560
        %v604 = vpop.f32.mrf.mxu0
        %v605 = vadd.f32 %v404, %v604
        %v606 = vpop.f32.mrf.mxu0
        %v607 = vpop.f32.mrf.mxu0
        %v608 = vadd.f32 %v404, %v607
        %v609 = vpop.f32.mrf.mxu0
        %610 = vdwg.mxu0
        %v611 = vmax.f32 %v597, 0.0
        %v612 = vmax.f32 %v600, 0.0
        %v613 = vmax.f32 %v605, 0.0
        %v614 = vmax.f32 %v608, 0.0
        %p615 = scmp.gt.s32.totalorder %s27, 0
        %s616 = scalar_select %p615, 1, 0
        %v617 = vstv %s616
        %vm618 = vcmp.eq.s32.totalorder %v617, 1
        %v619 = vsel %vm618, %v611, 0.0
        %v620 = vsel %vm618, %v612, 0.0
        %v621 = vpack.c.bf16 %v620, %v619
        %p622 = scmp.lt.s32.totalorder %s27, 1
        %s623 = scalar_select %p622, 1, 0
        %v624 = vstv %s623
        %vm625 = vcmp.eq.s32.totalorder %v624, 1
        %v626 = vsel %vm625, %v613, 0.0
        %v627 = vsel %vm625, %v614, 0.0
        %v628 = vpack.c.bf16 %v627, %v626
        %vm629 = vcmask 24576
        %vm630 = vsmask.f32 256
        %vm631 = vmand %vm629, %vm630
        %v632 = vld [vmem:[#allocation2] sm:$0x1]
        %v633 = vsel %vm631, 0, %v632
        %634 = vst [vmem:[#allocation2] sm:$0x1] %v633
        %v635 = vld [vmem:[#allocation2 + $0xc] sm:$0x1]
        %v636 = vsel %vm631, 0, %v635
        %637 = vst [vmem:[#allocation2 + $0xc] sm:$0x1] %v636
        %v638 = vld [vmem:[#allocation2 + $0x18] sm:$0x1]
        %v639 = vsel %vm631, 0, %v638
        %640 = vst [vmem:[#allocation2 + $0x18] sm:$0x1] %v639
        %v641 = vld [vmem:[#allocation2 + $0x24] sm:$0x1]
        %v642 = vsel %vm631, 0, %v641
        %643 = vst [vmem:[#allocation2 + $0x24] sm:$0x1] %v642
        %v644 = vld [vmem:[#allocation2 + $0x30] sm:$0x1]
        %v645 = vsel %vm631, 0, %v644
        %646 = vst [vmem:[#allocation2 + $0x30] sm:$0x1] %v645
        %v647 = vld [vmem:[#allocation2 + $0x3c] sm:$0x1]
        %v648 = vsel %vm631, 0, %v647
        %649 = vst [vmem:[#allocation2 + $0x3c] sm:$0x1] %v648
        %v650 = vld [vmem:[#allocation2 + $0x48] sm:$0x1]
        %v651 = vsel %vm631, 0, %v650
        %652 = vst [vmem:[#allocation2 + $0x48] sm:$0x1] %v651
        %v653 = vld [vmem:[#allocation2 + $0x54] sm:$0x1]
        %v654 = vsel %vm631, 0, %v653
        %655 = vst [vmem:[#allocation2 + $0x54] sm:$0x1] %v654
        %v656 = vld [vmem:[#allocation2 + $0x60] sm:$0x1]
        %v657 = vsel %vm631, 0, %v656
        %658 = vst [vmem:[#allocation2 + $0x60] sm:$0x1] %v657
        %v659 = vld [vmem:[#allocation2 + $0x6c] sm:$0x1]
        %v660 = vsel %vm631, 0, %v659
        %661 = vst [vmem:[#allocation2 + $0x6c] sm:$0x1] %v660
        %vm662 = vsmask.f32 7938
        %vm663 = vmand %vm629, %vm662
        %v664 = vld [vmem:[#allocation2 + $0x8] sm:$0x1]
        %v665 = vsel %vm663, 0, %v664
        %666 = vst [vmem:[#allocation2 + $0x8] sm:$0x1] %v665
        %v667 = vld [vmem:[#allocation2 + $0x14] sm:$0x1]
        %v668 = vsel %vm663, 0, %v667
        %669 = vst [vmem:[#allocation2 + $0x14] sm:$0x1] %v668
        %v670 = vld [vmem:[#allocation2 + $0x20] sm:$0x1]
        %v671 = vsel %vm663, 0, %v670
        %672 = vst [vmem:[#allocation2 + $0x20] sm:$0x1] %v671
        %v673 = vld [vmem:[#allocation2 + $0x2c] sm:$0x1]
        %v674 = vsel %vm663, 0, %v673
        %675 = vst [vmem:[#allocation2 + $0x2c] sm:$0x1] %v674
        %v676 = vld [vmem:[#allocation2 + $0x38] sm:$0x1]
        %v677 = vsel %vm663, 0, %v676
        %678 = vst [vmem:[#allocation2 + $0x38] sm:$0x1] %v677
        %v679 = vld [vmem:[#allocation2 + $0x44] sm:$0x1]
        %v680 = vsel %vm663, 0, %v679
        %681 = vst [vmem:[#allocation2 + $0x44] sm:$0x1] %v680
        %v682 = vld [vmem:[#allocation2 + $0x50] sm:$0x1]
        %v683 = vsel %vm663, 0, %v682
        %684 = vst [vmem:[#allocation2 + $0x50] sm:$0x1] %v683
        %v685 = vld [vmem:[#allocation2 + $0x5c] sm:$0x1]
        %v686 = vsel %vm663, 0, %v685
        %687 = vst [vmem:[#allocation2 + $0x5c] sm:$0x1] %v686
        %v688 = vld [vmem:[#allocation2 + $0x68] sm:$0x1]
        %v689 = vsel %vm663, 0, %v688
        %690 = vst [vmem:[#allocation2 + $0x68] sm:$0x1] %v689
        %v691 = vld [vmem:[#allocation2 + $0x74] sm:$0x1]
        %v692 = vsel %vm663, 0, %v691
        %693 = vst [vmem:[#allocation2 + $0x74] sm:$0x1] %v692
        %v695 = vunpack.c.l.b16 %v621
        %v696 = vunpack.c.h.b16 %v621
        %v697 = vpack.c.b16 %v695, %v695
        %v698 = vpack.c.b16 %v696, %v696
        %vm699 = vsmask.f32 4368
        %vm700 = vmor %vm630, %vm699
        %v702 = vshrl.u32 %v697, 16
        %v704 = vrot.slane %v702, 7
        %v705 = vshll.u32 %v697, 16
        %v707 = vor.u32 %v704, %v705
        %v708 = vrot.slane %v704, 4
        %v710 = vshrl.u32 %v698, 16
        %v712 = vrot.slane %v710, 7
        %v713 = vshll.u32 %v698, 16
        %v715 = vor.u32 %v712, %v713
        %v716 = vsel %vm700, %v708, %v715
        %v717 = vrot.slane %v712, 4
        %vm721 = vcmask 27648
        %vm722 = vmand %vm721, %vm662
        %v723 = vld [vmem:[#allocation2] sm:$0xf]
        %v724 = vsel %vm722, %v707, %v723
        %725 = vst [vmem:[#allocation2] sm:$0xf] %v724
        %vm726 = vcmask 27648
        %727 = vst.msk [vmem:[#allocation2 + $0x4] sm:$0xf] %vm726, %v716
        %v728 = vld [vmem:[#allocation2 + $0x8] sm:$0x1]
        %v729 = vsel %vm631, %v717, %v728
        %730 = vst [vmem:[#allocation2 + $0x8] sm:$0x1] %v729
        %v732 = vunpack.c.l.b16 %v628
        %v733 = vunpack.c.h.b16 %v628
        %v734 = vpack.c.b16 %v732, %v732
        %v735 = vpack.c.b16 %v733, %v733
        %v737 = vshrl.u32 %v734, 16
        %v739 = vrot.slane %v737, 7
        %v740 = vshll.u32 %v734, 16
        %v742 = vor.u32 %v739, %v740
        %v743 = vrot.slane %v739, 4
        %v745 = vshrl.u32 %v735, 16
        %v747 = vrot.slane %v745, 7
        %v748 = vshll.u32 %v735, 16
        %v750 = vor.u32 %v747, %v748
        %v751 = vsel %vm700, %v743, %v750
        %v752 = vrot.slane %v747, 4
        %s756 = scalar_lea.vmem [#allocation2], 108
        %v757 = vld [vmem:[%s756] sm:$0xf]
        %v758 = vsel %vm722, %v742, %v757
        %759 = vst [vmem:[%s756] sm:$0xf] %v758
        %760 = vst.msk [vmem:[%s756 + $0x4] sm:$0xf] %vm726, %v751
        %v761 = vld [vmem:[%s756 + $0x8] sm:$0x1]
        %v762 = vsel %vm631, %v752, %v761
        %763 = vst [vmem:[%s756 + $0x8] sm:$0x1] %v762
        %v764 = vpack.c.bf16 %v535, %v534
        %v765 = vpack.c.bf16 %v537, %v536
        %v766 = vpack.c.bf16 %v539, %v538
        %v767 = vpack.c.bf16 %v541, %v540
        %v768 = vpack.c.bf16 %v543, %v542
        %v769 = vpack.c.bf16 %v545, %v544
        %v770 = vpack.c.bf16 %v547, %v546
        %v771 = vpack.c.bf16 %v549, %v548
        %v780 = vunpack.c.l.b16 %v764
        %v781 = vunpack.c.h.b16 %v764
        %v782 = vunpack.c.l.b16 %v765
        %v783 = vunpack.c.h.b16 %v765
        %v784 = vunpack.c.l.b16 %v766
        %v785 = vunpack.c.h.b16 %v766
        %v786 = vunpack.c.l.b16 %v767
        %v787 = vunpack.c.h.b16 %v767
        %v788 = vunpack.c.l.b16 %v768
        %v789 = vunpack.c.h.b16 %v768
        %v790 = vunpack.c.l.b16 %v769
        %v791 = vunpack.c.h.b16 %v769
        %v792 = vunpack.c.l.b16 %v770
        %v793 = vunpack.c.h.b16 %v770
        %v794 = vunpack.c.l.b16 %v771
        %v795 = vunpack.c.h.b16 %v771
        %v796 = vpack.c.b16 %v780, %v780
        %v797 = vpack.c.b16 %v781, %v781
        %v798 = vpack.c.b16 %v782, %v782
        %v799 = vpack.c.b16 %v783, %v783
        %v800 = vpack.c.b16 %v784, %v784
        %v801 = vpack.c.b16 %v785, %v785
        %v802 = vpack.c.b16 %v786, %v786
        %v803 = vpack.c.b16 %v787, %v787
        %v804 = vpack.c.b16 %v788, %v788
        %v805 = vpack.c.b16 %v789, %v789
        %v806 = vpack.c.b16 %v790, %v790
        %v807 = vpack.c.b16 %v791, %v791
        %v808 = vpack.c.b16 %v792, %v792
        %v809 = vpack.c.b16 %v793, %v793
        %v810 = vpack.c.b16 %v794, %v794
        %v811 = vpack.c.b16 %v795, %v795
        %v813 = vshrl.u32 %v796, 16
        %v815 = vrot.slane %v813, 7
        %v816 = vshll.u32 %v796, 16
        %v818 = vor.u32 %v815, %v816
        %v819 = vrot.slane %v815, 4
        %v821 = vshrl.u32 %v797, 16
        %v823 = vrot.slane %v821, 7
        %v824 = vshll.u32 %v797, 16
        %v826 = vor.u32 %v823, %v824
        %v827 = vsel %vm700, %v819, %v826
        %v828 = vrot.slane %v823, 4
        %v830 = vshrl.u32 %v798, 16
        %v832 = vrot.slane %v830, 7
        %v833 = vshll.u32 %v798, 16
        %v835 = vor.u32 %v832, %v833
        %v836 = vrot.slane %v832, 4
        %v838 = vshrl.u32 %v799, 16
        %v840 = vrot.slane %v838, 7
        %v841 = vshll.u32 %v799, 16
        %v843 = vor.u32 %v840, %v841
        %v844 = vsel %vm700, %v836, %v843
        %v845 = vrot.slane %v840, 4
        %v847 = vshrl.u32 %v800, 16
        %v849 = vrot.slane %v847, 7
        %v850 = vshll.u32 %v800, 16
        %v852 = vor.u32 %v849, %v850
        %v853 = vrot.slane %v849, 4
        %v855 = vshrl.u32 %v801, 16
        %v857 = vrot.slane %v855, 7
        %v858 = vshll.u32 %v801, 16
        %v860 = vor.u32 %v857, %v858
        %v861 = vsel %vm700, %v853, %v860
        %v862 = vrot.slane %v857, 4
        %v864 = vshrl.u32 %v802, 16
        %v866 = vrot.slane %v864, 7
        %v867 = vshll.u32 %v802, 16
        %v869 = vor.u32 %v866, %v867
        %v870 = vrot.slane %v866, 4
        %v872 = vshrl.u32 %v803, 16
        %v874 = vrot.slane %v872, 7
        %v875 = vshll.u32 %v803, 16
        %v877 = vor.u32 %v874, %v875
        %v878 = vsel %vm700, %v870, %v877
        %v879 = vrot.slane %v874, 4
        %v881 = vshrl.u32 %v804, 16
        %v883 = vrot.slane %v881, 7
        %v884 = vshll.u32 %v804, 16
        %v886 = vor.u32 %v883, %v884
        %v887 = vrot.slane %v883, 4
        %v889 = vshrl.u32 %v805, 16
        %v891 = vrot.slane %v889, 7
        %v892 = vshll.u32 %v805, 16
        %v894 = vor.u32 %v891, %v892
        %v895 = vsel %vm700, %v887, %v894
        %v896 = vrot.slane %v891, 4
        %v898 = vshrl.u32 %v806, 16
        %v900 = vrot.slane %v898, 7
        %v901 = vshll.u32 %v806, 16
        %v903 = vor.u32 %v900, %v901
        %v904 = vrot.slane %v900, 4
        %v906 = vshrl.u32 %v807, 16
        %v908 = vrot.slane %v906, 7
        %v909 = vshll.u32 %v807, 16
        %v911 = vor.u32 %v908, %v909
        %v912 = vsel %vm700, %v904, %v911
        %v913 = vrot.slane %v908, 4
        %v915 = vshrl.u32 %v808, 16
        %v917 = vrot.slane %v915, 7
        %v918 = vshll.u32 %v808, 16
        %v920 = vor.u32 %v917, %v918
        %v921 = vrot.slane %v917, 4
        %v923 = vshrl.u32 %v809, 16
        %v925 = vrot.slane %v923, 7
        %v926 = vshll.u32 %v809, 16
        %v928 = vor.u32 %v925, %v926
        %v929 = vsel %vm700, %v921, %v928
        %v930 = vrot.slane %v925, 4
        %v932 = vshrl.u32 %v810, 16
        %v934 = vrot.slane %v932, 7
        %v935 = vshll.u32 %v810, 16
        %v937 = vor.u32 %v934, %v935
        %v938 = vrot.slane %v934, 4
        %v940 = vshrl.u32 %v811, 16
        %v942 = vrot.slane %v940, 7
        %v943 = vshll.u32 %v811, 16
        %v945 = vor.u32 %v942, %v943
        %v946 = vsel %vm700, %v938, %v945
        %v947 = vrot.slane %v942, 4
        %s972 = scalar_lea.vmem [#allocation2], 12
        %v973 = vld [vmem:[%s972] sm:$0xf]
        %v974 = vsel %vm722, %v818, %v973
        %975 = vst [vmem:[%s972] sm:$0xf] %v974
        %976 = vst.msk [vmem:[%s972 + $0x4] sm:$0xf] %vm726, %v827
        %v977 = vld [vmem:[%s972 + $0x8] sm:$0x1]
        %v978 = vsel %vm631, %v828, %v977
        %979 = vst [vmem:[%s972 + $0x8] sm:$0x1] %v978
        %v980 = vld [vmem:[%s972 + $0xc] sm:$0xf]
        %v981 = vsel %vm722, %v835, %v980
        %982 = vst [vmem:[%s972 + $0xc] sm:$0xf] %v981
        %983 = vst.msk [vmem:[%s972 + $0x10] sm:$0xf] %vm726, %v844
        %v984 = vld [vmem:[%s972 + $0x14] sm:$0x1]
        %v985 = vsel %vm631, %v845, %v984
        %986 = vst [vmem:[%s972 + $0x14] sm:$0x1] %v985
        %v987 = vld [vmem:[%s972 + $0x18] sm:$0xf]
        %v988 = vsel %vm722, %v852, %v987
        %989 = vst [vmem:[%s972 + $0x18] sm:$0xf] %v988
        %990 = vst.msk [vmem:[%s972 + $0x1c] sm:$0xf] %vm726, %v861
        %v991 = vld [vmem:[%s972 + $0x20] sm:$0x1]
        %v992 = vsel %vm631, %v862, %v991
        %993 = vst [vmem:[%s972 + $0x20] sm:$0x1] %v992
        %v994 = vld [vmem:[%s972 + $0x24] sm:$0xf]
        %v995 = vsel %vm722, %v869, %v994
        %996 = vst [vmem:[%s972 + $0x24] sm:$0xf] %v995
        %997 = vst.msk [vmem:[%s972 + $0x28] sm:$0xf] %vm726, %v878
        %v998 = vld [vmem:[%s972 + $0x2c] sm:$0x1]
        %v999 = vsel %vm631, %v879, %v998
        %1000 = vst [vmem:[%s972 + $0x2c] sm:$0x1] %v999
        %v1001 = vld [vmem:[%s972 + $0x30] sm:$0xf]
        %v1002 = vsel %vm722, %v886, %v1001
        %1003 = vst [vmem:[%s972 + $0x30] sm:$0xf] %v1002
        %1004 = vst.msk [vmem:[%s972 + $0x34] sm:$0xf] %vm726, %v895
        %v1005 = vld [vmem:[%s972 + $0x38] sm:$0x1]
        %v1006 = vsel %vm631, %v896, %v1005
        %1007 = vst [vmem:[%s972 + $0x38] sm:$0x1] %v1006
        %v1008 = vld [vmem:[%s972 + $0x3c] sm:$0xf]
        %v1009 = vsel %vm722, %v903, %v1008
        %1010 = vst [vmem:[%s972 + $0x3c] sm:$0xf] %v1009
        %1011 = vst.msk [vmem:[%s972 + $0x40] sm:$0xf] %vm726, %v912
        %v1012 = vld [vmem:[%s972 + $0x44] sm:$0x1]
        %v1013 = vsel %vm631, %v913, %v1012
        %1014 = vst [vmem:[%s972 + $0x44] sm:$0x1] %v1013
        %v1015 = vld [vmem:[%s972 + $0x48] sm:$0xf]
        %v1016 = vsel %vm722, %v920, %v1015
        %1017 = vst [vmem:[%s972 + $0x48] sm:$0xf] %v1016
        %1018 = vst.msk [vmem:[%s972 + $0x4c] sm:$0xf] %vm726, %v929
        %v1019 = vld [vmem:[%s972 + $0x50] sm:$0x1]
        %v1020 = vsel %vm631, %v930, %v1019
        %1021 = vst [vmem:[%s972 + $0x50] sm:$0x1] %v1020
        %v1022 = vld [vmem:[%s972 + $0x54] sm:$0xf]
        %v1023 = vsel %vm722, %v937, %v1022
        %1024 = vst [vmem:[%s972 + $0x54] sm:$0xf] %v1023
        %1025 = vst.msk [vmem:[%s972 + $0x58] sm:$0xf] %vm726, %v946
        %v1026 = vld [vmem:[%s972 + $0x5c] sm:$0x1]
        %v1027 = vsel %vm631, %v947, %v1026
        %1028 = vst [vmem:[%s972 + $0x5c] sm:$0x1] %v1027
        %v1029 = vld [vmem:[#allocation2] sm:$0xf]
        %v1030 = vld [vmem:[#allocation2 + $0x4] sm:$0xf]
        %v1031 = vld [vmem:[#allocation2 + $0xc] sm:$0xf]
        %v1032 = vld [vmem:[#allocation2 + $0x10] sm:$0xf]
        %v1033 = vld [vmem:[#allocation2 + $0x18] sm:$0xf]
        %v1034 = vld [vmem:[#allocation2 + $0x1c] sm:$0xf]
        %v1035 = vld [vmem:[#allocation2 + $0x24] sm:$0xf]
        %v1036 = vld [vmem:[#allocation2 + $0x28] sm:$0xf]
        %v1037 = vld [vmem:[#allocation2 + $0x30] sm:$0xf]
        %v1038 = vld [vmem:[#allocation2 + $0x34] sm:$0xf]
        %v1039 = vld [vmem:[#allocation2 + $0x3c] sm:$0xf]
        %v1040 = vld [vmem:[#allocation2 + $0x40] sm:$0xf]
        %v1041 = vld [vmem:[#allocation2 + $0x48] sm:$0xf]
        %v1042 = vld [vmem:[#allocation2 + $0x4c] sm:$0xf]
        %v1043 = vld [vmem:[#allocation2 + $0x54] sm:$0xf]
        %v1044 = vld [vmem:[#allocation2 + $0x58] sm:$0xf]
        %v1045 = vld [vmem:[%s3] sm:$0x3]
        %v1046 = vld [vmem:[#allocation2 + $0x8] sm:$0x1]
        %v1047 = vld [vmem:[#allocation2 + $0x14] sm:$0x1]
        %v1048 = vld [vmem:[#allocation2 + $0x20] sm:$0x1]
        %v1049 = vld [vmem:[#allocation2 + $0x2c] sm:$0x1]
        %v1050 = vld [vmem:[#allocation2 + $0x38] sm:$0x1]
        %v1051 = vld [vmem:[#allocation2 + $0x44] sm:$0x1]
        %v1052 = vld [vmem:[#allocation2 + $0x50] sm:$0x1]
        %v1053 = vld [vmem:[#allocation2 + $0x5c] sm:$0x1]
        %vm1054 = vsmask.f32 3328
        %vm1055 = vsmask.f32 7440
        %vm1056 = vmor %vm1054, %vm1055
        %v1058 = vshrl.u32 %v1029, 16
        %v1060 = vrot.slane %v1058, 4
        %v1061 = vshll.u32 %v1029, 16
        %v1063 = vrot.slane %v1061, 5
        %v1064 = vor.u32 %v1060, %v1063
        %v1065 = vrot.slane %v1064, 4
        %v1067 = vshll.u32 %v1030, 16
        %v1069 = vrot.slane %v1067, 5
        %v1070 = vsel %vm1056, %v1065, %v1069
        %v1071 = vshrl.u32 %v1030, 16
        %v1073 = vrot.slane %v1071, 4
        %v1074 = vor.u32 %v1073, %v1069
        %v1075 = vrot.slane %v1074, 4
        %v1077 = vshll.u32 %v1046, 16
        %v1079 = vrot.slane %v1077, 5
        %v1080 = vsel %vm1056, %v1075, %v1079
        %v1082 = vshrl.u32 %v1031, 16
        %v1084 = vrot.slane %v1082, 4
        %v1085 = vshll.u32 %v1031, 16
        %v1087 = vrot.slane %v1085, 5
        %v1088 = vor.u32 %v1084, %v1087
        %v1089 = vrot.slane %v1088, 4
        %v1091 = vshll.u32 %v1032, 16
        %v1093 = vrot.slane %v1091, 5
        %v1094 = vsel %vm1056, %v1089, %v1093
        %v1095 = vshrl.u32 %v1032, 16
        %v1097 = vrot.slane %v1095, 4
        %v1098 = vor.u32 %v1097, %v1093
        %v1099 = vrot.slane %v1098, 4
        %v1101 = vshll.u32 %v1047, 16
        %v1103 = vrot.slane %v1101, 5
        %v1104 = vsel %vm1056, %v1099, %v1103
        %v1106 = vshrl.u32 %v1033, 16
        %v1108 = vrot.slane %v1106, 4
        %v1109 = vshll.u32 %v1033, 16
        %v1111 = vrot.slane %v1109, 5
        %v1112 = vor.u32 %v1108, %v1111
        %v1113 = vrot.slane %v1112, 4
        %v1115 = vshll.u32 %v1034, 16
        %v1117 = vrot.slane %v1115, 5
        %v1118 = vsel %vm1056, %v1113, %v1117
        %v1119 = vshrl.u32 %v1034, 16
        %v1121 = vrot.slane %v1119, 4
        %v1122 = vor.u32 %v1121, %v1117
        %v1123 = vrot.slane %v1122, 4
        %v1125 = vshll.u32 %v1048, 16
        %v1127 = vrot.slane %v1125, 5
        %v1128 = vsel %vm1056, %v1123, %v1127
        %v1130 = vshrl.u32 %v1035, 16
        %v1132 = vrot.slane %v1130, 4
        %v1133 = vshll.u32 %v1035, 16
        %v1135 = vrot.slane %v1133, 5
        %v1136 = vor.u32 %v1132, %v1135
        %v1137 = vrot.slane %v1136, 4
        %v1139 = vshll.u32 %v1036, 16
        %v1141 = vrot.slane %v1139, 5
        %v1142 = vsel %vm1056, %v1137, %v1141
        %v1143 = vshrl.u32 %v1036, 16
        %v1145 = vrot.slane %v1143, 4
        %v1146 = vor.u32 %v1145, %v1141
        %v1147 = vrot.slane %v1146, 4
        %v1149 = vshll.u32 %v1049, 16
        %v1151 = vrot.slane %v1149, 5
        %v1152 = vsel %vm1056, %v1147, %v1151
        %v1154 = vshrl.u32 %v1037, 16
        %v1156 = vrot.slane %v1154, 4
        %v1157 = vshll.u32 %v1037, 16
        %v1159 = vrot.slane %v1157, 5
        %v1160 = vor.u32 %v1156, %v1159
        %v1161 = vrot.slane %v1160, 4
        %v1163 = vshll.u32 %v1038, 16
        %v1165 = vrot.slane %v1163, 5
        %v1166 = vsel %vm1056, %v1161, %v1165
        %v1167 = vshrl.u32 %v1038, 16
        %v1169 = vrot.slane %v1167, 4
        %v1170 = vor.u32 %v1169, %v1165
        %v1171 = vrot.slane %v1170, 4
        %v1173 = vshll.u32 %v1050, 16
        %v1175 = vrot.slane %v1173, 5
        %v1176 = vsel %vm1056, %v1171, %v1175
        %v1178 = vshrl.u32 %v1039, 16
        %v1180 = vrot.slane %v1178, 4
        %v1181 = vshll.u32 %v1039, 16
        %v1183 = vrot.slane %v1181, 5
        %v1184 = vor.u32 %v1180, %v1183
        %v1185 = vrot.slane %v1184, 4
        %v1187 = vshll.u32 %v1040, 16
        %v1189 = vrot.slane %v1187, 5
        %v1190 = vsel %vm1056, %v1185, %v1189
        %v1191 = vshrl.u32 %v1040, 16
        %v1193 = vrot.slane %v1191, 4
        %v1194 = vor.u32 %v1193, %v1189
        %v1195 = vrot.slane %v1194, 4
        %v1197 = vshll.u32 %v1051, 16
        %v1199 = vrot.slane %v1197, 5
        %v1200 = vsel %vm1056, %v1195, %v1199
        %v1202 = vshrl.u32 %v1041, 16
        %v1204 = vrot.slane %v1202, 4
        %v1205 = vshll.u32 %v1041, 16
        %v1207 = vrot.slane %v1205, 5
        %v1208 = vor.u32 %v1204, %v1207
        %v1209 = vrot.slane %v1208, 4
        %v1211 = vshll.u32 %v1042, 16
        %v1213 = vrot.slane %v1211, 5
        %v1214 = vsel %vm1056, %v1209, %v1213
        %v1215 = vshrl.u32 %v1042, 16
        %v1217 = vrot.slane %v1215, 4
        %v1218 = vor.u32 %v1217, %v1213
        %v1219 = vrot.slane %v1218, 4
        %v1221 = vshll.u32 %v1052, 16
        %v1223 = vrot.slane %v1221, 5
        %v1224 = vsel %vm1056, %v1219, %v1223
        %v1226 = vshrl.u32 %v1043, 16
        %v1228 = vrot.slane %v1226, 4
        %v1229 = vshll.u32 %v1043, 16
        %v1231 = vrot.slane %v1229, 5
        %v1232 = vor.u32 %v1228, %v1231
        %v1233 = vrot.slane %v1232, 4
        %v1235 = vshll.u32 %v1044, 16
        %v1237 = vrot.slane %v1235, 5
        %v1238 = vsel %vm1056, %v1233, %v1237
        %v1239 = vshrl.u32 %v1044, 16
        %v1241 = vrot.slane %v1239, 4
        %v1242 = vor.u32 %v1241, %v1237
        %v1243 = vrot.slane %v1242, 4
        %v1245 = vshll.u32 %v1053, 16
        %v1247 = vrot.slane %v1245, 5
        %v1248 = vsel %vm1056, %v1243, %v1247
        %s1249 = scalar_lea.vmem %s3, 2
        %v1250 = vld [vmem:[%s1249] sm:$0x3]
        %v1251 = vunpack.c.l.b16 %v1070
        %v1252 = vunpack.c.l.b16 %v1080
        %v1253 = vunpack.c.l.b16 %v1094
        %v1254 = vunpack.c.l.b16 %v1104
        %v1255 = vunpack.c.l.b16 %v1118
        %v1256 = vunpack.c.l.b16 %v1128
        %v1257 = vunpack.c.l.b16 %v1142
        %v1258 = vunpack.c.l.b16 %v1152
        %v1259 = vunpack.c.l.b16 %v1166
        %v1260 = vunpack.c.l.b16 %v1176
        %v1261 = vunpack.c.l.b16 %v1190
        %v1262 = vunpack.c.l.b16 %v1200
        %v1263 = vunpack.c.l.b16 %v1214
        %v1264 = vunpack.c.l.b16 %v1224
        %v1265 = vunpack.c.l.b16 %v1238
        %v1266 = vunpack.c.l.b16 %v1248
        %v1267 = vpack.c.b16 %v1252, %v1251
        %v1268 = vpack.c.b16 %v1254, %v1253
        %v1269 = vpack.c.b16 %v1256, %v1255
        %v1270 = vpack.c.b16 %v1258, %v1257
        %v1271 = vpack.c.b16 %v1260, %v1259
        %v1272 = vpack.c.b16 %v1262, %v1261
        %v1273 = vpack.c.b16 %v1264, %v1263
        %v1274 = vpack.c.b16 %v1266, %v1265
        %vm1275 = vcmask 31744
        %v1277 = vsel %vm1275, %v1267, 0
        %v1280 = vsel %vm1275, %v1268, 0
        %v1283 = vsel %vm1275, %v1269, 0
        %v1286 = vsel %vm1275, %v1270, 0
        %v1289 = vsel %vm1275, %v1271, 0
        %v1292 = vsel %vm1275, %v1272, 0
        %v1295 = vsel %vm1275, %v1273, 0
        %v1298 = vsel %vm1275, %v1274, 0
        %vm1300 = vcmask 1041408
        %v1302 = vsel %vm1300, %v1250, 0
        %1304 = vmatprep.subr.bf16.mxu0 0
        %1305 = vmatpush1.bf16.msra.mxu0 0
        %1306 = vmatprep.subr.bf16.mxu0 0
        %1307 = vmatpush1.bf16.msra.mxu0 0
        %1308 = vmatprep.subr.bf16.mxu0 0
        %1309 = vmatpush1.bf16.msra.mxu0 0
        %1310 = vmatprep.subr.bf16.mxu0 0
        %1311 = vmatpush1.bf16.msra.mxu0 0
        %1312 = vmatprep.subr.bf16.mxu0 0
        %1313 = vmatpush1.bf16.msra.mxu0 0
        %1314 = vmatprep.subr.bf16.mxu0 0
        %1315 = vmatpush1.bf16.msra.mxu0 0
        %1316 = vmatprep.subr.bf16.mxu0 0
        %1317 = vmatpush1.bf16.msra.mxu0 0
        %1318 = vmatprep.subr.bf16.mxu0 0
        %1319 = vmatpush1.bf16.msra.mxu0 %v1302
        %1320 = vmatprep.subr.bf16.mxu0 0
        %1321 = vmatpush2.bf16.msra.mxu0 0
        %1322 = vmatprep.subr.bf16.mxu0 0
        %1323 = vmatpush2.bf16.msra.mxu0 0
        %1324 = vmatprep.subr.bf16.mxu0 0
        %1325 = vmatpush2.bf16.msra.mxu0 0
        %1326 = vmatprep.subr.bf16.mxu0 0
        %1327 = vmatpush2.bf16.msra.mxu0 0
        %1328 = vmatprep.subr.bf16.mxu0 0
        %1329 = vmatpush2.bf16.msra.mxu0 0
        %1330 = vmatprep.subr.bf16.mxu0 0
        %1331 = vmatpush2.bf16.msra.mxu0 0
        %1332 = vmatprep.subr.bf16.mxu0 0
        %1333 = vmatpush2.bf16.msra.mxu0 0
        %1334 = vmatprep.subr.bf16.mxu0 0
        %1335 = vmatpush2.bf16.msra.mxu0 0
        %1336 = vmatprep.mubr.bf16.mxu0 0
        %1337 = vmatmul.mubr.bf16.gmra.mxu0 %v1277
        %v1338 = vpop.f32.mrf.mxu0
        %v1339 = vadd.f32 0.0, %v1338
        %v1340 = vpop.f32.mrf.mxu0
        %v1341 = vpop.f32.mrf.mxu0
        %v1342 = vadd.f32 0.0, %v1341
        %v1343 = vpop.f32.mrf.mxu0
        %1344 = vmatprep.mubr.bf16.mxu0 0
        %1345 = vmatmul.mubr.bf16.gmra.mxu0 %v1280
        %v1346 = vpop.f32.mrf.mxu0
        %v1347 = vadd.f32 0.0, %v1346
        %v1348 = vpop.f32.mrf.mxu0
        %v1349 = vpop.f32.mrf.mxu0
        %v1350 = vadd.f32 0.0, %v1349
        %v1351 = vpop.f32.mrf.mxu0
        %1352 = vmatprep.mubr.bf16.mxu0 0
        %1353 = vmatmul.mubr.bf16.gmra.mxu0 %v1283
        %v1354 = vpop.f32.mrf.mxu0
        %v1355 = vadd.f32 0.0, %v1354
        %v1356 = vpop.f32.mrf.mxu0
        %v1357 = vpop.f32.mrf.mxu0
        %v1358 = vadd.f32 0.0, %v1357
        %v1359 = vpop.f32.mrf.mxu0
        %1360 = vmatprep.mubr.bf16.mxu0 0
        %1361 = vmatmul.mubr.bf16.gmra.mxu0 %v1286
        %v1362 = vpop.f32.mrf.mxu0
        %v1363 = vadd.f32 0.0, %v1362
        %v1364 = vpop.f32.mrf.mxu0
        %v1365 = vpop.f32.mrf.mxu0
        %v1366 = vadd.f32 0.0, %v1365
        %v1367 = vpop.f32.mrf.mxu0
        %1368 = vmatprep.mubr.bf16.mxu0 0
        %1369 = vmatmul.mubr.bf16.gmra.mxu0 %v1289
        %v1370 = vpop.f32.mrf.mxu0
        %v1371 = vadd.f32 0.0, %v1370
        %v1372 = vpop.f32.mrf.mxu0
        %v1373 = vpop.f32.mrf.mxu0
        %v1374 = vadd.f32 0.0, %v1373
        %v1375 = vpop.f32.mrf.mxu0
        %1376 = vmatprep.mubr.bf16.mxu0 0
        %1377 = vmatmul.mubr.bf16.gmra.mxu0 %v1292
        %v1378 = vpop.f32.mrf.mxu0
        %v1379 = vadd.f32 0.0, %v1378
        %v1380 = vpop.f32.mrf.mxu0
        %v1381 = vpop.f32.mrf.mxu0
        %v1382 = vadd.f32 0.0, %v1381
        %v1383 = vpop.f32.mrf.mxu0
        %1384 = vmatprep.mubr.bf16.mxu0 0
        %1385 = vmatmul.mubr.bf16.gmra.mxu0 %v1295
        %v1386 = vpop.f32.mrf.mxu0
        %v1387 = vadd.f32 0.0, %v1386
        %v1388 = vpop.f32.mrf.mxu0
        %v1389 = vpop.f32.mrf.mxu0
        %v1390 = vadd.f32 0.0, %v1389
        %v1391 = vpop.f32.mrf.mxu0
        %1392 = vmatprep.mubr.bf16.mxu0 0
        %1393 = vmatmul.mubr.bf16.gmra.mxu0 %v1298
        %v1394 = vpop.f32.mrf.mxu0
        %v1395 = vadd.f32 0.0, %v1394
        %v1396 = vpop.f32.mrf.mxu0
        %v1397 = vpop.f32.mrf.mxu0
        %v1398 = vadd.f32 0.0, %v1397
        %v1399 = vpop.f32.mrf.mxu0
        %1400 = vdwg.mxu0
        %v1417 = vunpack.c.l.b16 %v1029
        %v1418 = vunpack.c.l.b16 %v1030
        %v1419 = vunpack.c.l.b16 %v1031
        %v1420 = vunpack.c.l.b16 %v1032
        %v1421 = vunpack.c.l.b16 %v1033
        %v1422 = vunpack.c.l.b16 %v1034
        %v1423 = vunpack.c.l.b16 %v1035
        %v1424 = vunpack.c.l.b16 %v1036
        %v1425 = vunpack.c.l.b16 %v1037
        %v1426 = vunpack.c.l.b16 %v1038
        %v1427 = vunpack.c.l.b16 %v1039
        %v1428 = vunpack.c.l.b16 %v1040
        %v1429 = vunpack.c.l.b16 %v1041
        %v1430 = vunpack.c.l.b16 %v1042
        %v1431 = vunpack.c.l.b16 %v1043
        %v1432 = vunpack.c.l.b16 %v1044
        %v1433 = vpack.c.b16 %v1418, %v1417
        %v1434 = vpack.c.b16 %v1420, %v1419
        %v1435 = vpack.c.b16 %v1422, %v1421
        %v1436 = vpack.c.b16 %v1424, %v1423
        %v1437 = vpack.c.b16 %v1426, %v1425
        %v1438 = vpack.c.b16 %v1428, %v1427
        %v1439 = vpack.c.b16 %v1430, %v1429
        %v1440 = vpack.c.b16 %v1432, %v1431
        %v1442 = vsel %vm1275, %v1433, 0
        %v1445 = vsel %vm1275, %v1434, 0
        %v1448 = vsel %vm1275, %v1435, 0
        %v1451 = vsel %vm1275, %v1436, 0
        %v1454 = vsel %vm1275, %v1437, 0
        %v1457 = vsel %vm1275, %v1438, 0
        %v1460 = vsel %vm1275, %v1439, 0
        %v1463 = vsel %vm1275, %v1440, 0
        %v1466 = vsel %vm1300, %v1045, 0
        %1468 = vmatprep.subr.bf16.mxu0 0
        %1469 = vmatpush1.bf16.msra.mxu0 0
        %1470 = vmatprep.subr.bf16.mxu0 0
        %1471 = vmatpush1.bf16.msra.mxu0 0
        %1472 = vmatprep.subr.bf16.mxu0 0
        %1473 = vmatpush1.bf16.msra.mxu0 0
        %1474 = vmatprep.subr.bf16.mxu0 0
        %1475 = vmatpush1.bf16.msra.mxu0 0
        %1476 = vmatprep.subr.bf16.mxu0 0
        %1477 = vmatpush1.bf16.msra.mxu0 0
        %1478 = vmatprep.subr.bf16.mxu0 0
        %1479 = vmatpush1.bf16.msra.mxu0 0
        %1480 = vmatprep.subr.bf16.mxu0 0
        %1481 = vmatpush1.bf16.msra.mxu0 0
        %1482 = vmatprep.subr.bf16.mxu0 0
        %1483 = vmatpush1.bf16.msra.mxu0 %v1466
        %1484 = vmatprep.subr.bf16.mxu0 0
        %1485 = vmatpush2.bf16.msra.mxu0 0
        %1486 = vmatprep.subr.bf16.mxu0 0
        %1487 = vmatpush2.bf16.msra.mxu0 0
        %1488 = vmatprep.subr.bf16.mxu0 0
        %1489 = vmatpush2.bf16.msra.mxu0 0
        %1490 = vmatprep.subr.bf16.mxu0 0
        %1491 = vmatpush2.bf16.msra.mxu0 0
        %1492 = vmatprep.subr.bf16.mxu0 0
        %1493 = vmatpush2.bf16.msra.mxu0 0
        %1494 = vmatprep.subr.bf16.mxu0 0
        %1495 = vmatpush2.bf16.msra.mxu0 0
        %1496 = vmatprep.subr.bf16.mxu0 0
        %1497 = vmatpush2.bf16.msra.mxu0 0
        %1498 = vmatprep.subr.bf16.mxu0 0
        %1499 = vmatpush2.bf16.msra.mxu0 0
        %1500 = vmatprep.mubr.bf16.mxu0 0
        %1501 = vmatmul.mubr.bf16.gmra.mxu0 %v1442
        %v1502 = vpop.f32.mrf.mxu0
        %v1503 = vadd.f32 %v1339, %v1502
        %v1504 = vpop.f32.mrf.mxu0
        %v1505 = vpop.f32.mrf.mxu0
        %v1506 = vadd.f32 %v1342, %v1505
        %v1507 = vpop.f32.mrf.mxu0
        %1508 = vmatprep.mubr.bf16.mxu0 0
        %1509 = vmatmul.mubr.bf16.gmra.mxu0 %v1445
        %v1510 = vpop.f32.mrf.mxu0
        %v1511 = vadd.f32 %v1347, %v1510
        %v1512 = vpop.f32.mrf.mxu0
        %v1513 = vpop.f32.mrf.mxu0
        %v1514 = vadd.f32 %v1350, %v1513
        %v1515 = vpop.f32.mrf.mxu0
        %1516 = vmatprep.mubr.bf16.mxu0 0
        %1517 = vmatmul.mubr.bf16.gmra.mxu0 %v1448
        %v1518 = vpop.f32.mrf.mxu0
        %v1519 = vadd.f32 %v1355, %v1518
        %v1520 = vpop.f32.mrf.mxu0
        %v1521 = vpop.f32.mrf.mxu0
        %v1522 = vadd.f32 %v1358, %v1521
        %v1523 = vpop.f32.mrf.mxu0
        %1524 = vmatprep.mubr.bf16.mxu0 0
        %1525 = vmatmul.mubr.bf16.gmra.mxu0 %v1451
        %v1526 = vpop.f32.mrf.mxu0
        %v1527 = vadd.f32 %v1363, %v1526
        %v1528 = vpop.f32.mrf.mxu0
        %v1529 = vpop.f32.mrf.mxu0
        %v1530 = vadd.f32 %v1366, %v1529
        %v1531 = vpop.f32.mrf.mxu0
        %1532 = vmatprep.mubr.bf16.mxu0 0
        %1533 = vmatmul.mubr.bf16.gmra.mxu0 %v1454
        %v1534 = vpop.f32.mrf.mxu0
        %v1535 = vadd.f32 %v1371, %v1534
        %v1536 = vpop.f32.mrf.mxu0
        %v1537 = vpop.f32.mrf.mxu0
        %v1538 = vadd.f32 %v1374, %v1537
        %v1539 = vpop.f32.mrf.mxu0
        %1540 = vmatprep.mubr.bf16.mxu0 0
        %1541 = vmatmul.mubr.bf16.gmra.mxu0 %v1457
        %v1542 = vpop.f32.mrf.mxu0
        %v1543 = vadd.f32 %v1379, %v1542
        %v1544 = vpop.f32.mrf.mxu0
        %v1545 = vpop.f32.mrf.mxu0
        %v1546 = vadd.f32 %v1382, %v1545
        %v1547 = vpop.f32.mrf.mxu0
        %1548 = vmatprep.mubr.bf16.mxu0 0
        %1549 = vmatmul.mubr.bf16.gmra.mxu0 %v1460
        %v1550 = vpop.f32.mrf.mxu0
        %v1551 = vadd.f32 %v1387, %v1550
        %v1552 = vpop.f32.mrf.mxu0
        %v1553 = vpop.f32.mrf.mxu0
        %v1554 = vadd.f32 %v1390, %v1553
        %v1555 = vpop.f32.mrf.mxu0
        %1556 = vmatprep.mubr.bf16.mxu0 0
        %1557 = vmatmul.mubr.bf16.gmra.mxu0 %v1463
        %v1558 = vpop.f32.mrf.mxu0
        %v1559 = vadd.f32 %v1395, %v1558
        %v1560 = vpop.f32.mrf.mxu0
        %v1561 = vpop.f32.mrf.mxu0
        %v1562 = vadd.f32 %v1398, %v1561
        %v1563 = vpop.f32.mrf.mxu0
        %1564 = vdwg.mxu0
        %v1565 = vld [vmem:[#allocation2] sm:$0xe]
        %v1566 = vld [vmem:[#allocation2 + $0xc] sm:$0xe]
        %v1567 = vld [vmem:[#allocation2 + $0x18] sm:$0xe]
        %v1568 = vld [vmem:[#allocation2 + $0x24] sm:$0xe]
        %v1569 = vld [vmem:[#allocation2 + $0x30] sm:$0xe]
        %v1570 = vld [vmem:[#allocation2 + $0x3c] sm:$0xe]
        %v1571 = vld [vmem:[#allocation2 + $0x48] sm:$0xe]
        %v1572 = vld [vmem:[#allocation2 + $0x54] sm:$0xe]
        %vm1589 = vcmask 1042432
        %vm1590 = vcmask 1046532
        %vm1591 = vmor %vm1589, %vm1590
        %v1592 = vrot.slane %v1565, 5
        %v1593 = vrot.slane %v1592, 4
        %v1594 = vrot.slane %v1030, 5
        %v1595 = vsel %vm1591, %v1593, %v1594
        %v1596 = vrot.slane %v1594, 4
        %v1597 = vrot.slane %v1046, 5
        %v1598 = vsel %vm1591, %v1596, %v1597
        %v1599 = vrot.slane %v1566, 5
        %v1600 = vrot.slane %v1599, 4
        %v1601 = vrot.slane %v1032, 5
        %v1602 = vsel %vm1591, %v1600, %v1601
        %v1603 = vrot.slane %v1601, 4
        %v1604 = vrot.slane %v1047, 5
        %v1605 = vsel %vm1591, %v1603, %v1604
        %v1606 = vrot.slane %v1567, 5
        %v1607 = vrot.slane %v1606, 4
        %v1608 = vrot.slane %v1034, 5
        %v1609 = vsel %vm1591, %v1607, %v1608
        %v1610 = vrot.slane %v1608, 4
        %v1611 = vrot.slane %v1048, 5
        %v1612 = vsel %vm1591, %v1610, %v1611
        %v1613 = vrot.slane %v1568, 5
        %v1614 = vrot.slane %v1613, 4
        %v1615 = vrot.slane %v1036, 5
        %v1616 = vsel %vm1591, %v1614, %v1615
        %v1617 = vrot.slane %v1615, 4
        %v1618 = vrot.slane %v1049, 5
        %v1619 = vsel %vm1591, %v1617, %v1618
        %v1620 = vrot.slane %v1569, 5
        %v1621 = vrot.slane %v1620, 4
        %v1622 = vrot.slane %v1038, 5
        %v1623 = vsel %vm1591, %v1621, %v1622
        %v1624 = vrot.slane %v1622, 4
        %v1625 = vrot.slane %v1050, 5
        %v1626 = vsel %vm1591, %v1624, %v1625
        %v1627 = vrot.slane %v1570, 5
        %v1628 = vrot.slane %v1627, 4
        %v1629 = vrot.slane %v1040, 5
        %v1630 = vsel %vm1591, %v1628, %v1629
        %v1631 = vrot.slane %v1629, 4
        %v1632 = vrot.slane %v1051, 5
        %v1633 = vsel %vm1591, %v1631, %v1632
        %v1634 = vrot.slane %v1571, 5
        %v1635 = vrot.slane %v1634, 4
        %v1636 = vrot.slane %v1042, 5
        %v1637 = vsel %vm1591, %v1635, %v1636
        %v1638 = vrot.slane %v1636, 4
        %v1639 = vrot.slane %v1052, 5
        %v1640 = vsel %vm1591, %v1638, %v1639
        %v1641 = vrot.slane %v1572, 5
        %v1642 = vrot.slane %v1641, 4
        %v1643 = vrot.slane %v1044, 5
        %v1644 = vsel %vm1591, %v1642, %v1643
        %v1645 = vrot.slane %v1643, 4
        %v1646 = vrot.slane %v1053, 5
        %v1647 = vsel %vm1591, %v1645, %v1646
        %s1648 = scalar_lea.vmem %s3, 4
        %v1649 = vld [vmem:[%s1648] sm:$0x3]
        %v1650 = vunpack.c.l.b16 %v1595
        %v1651 = vunpack.c.l.b16 %v1598
        %v1652 = vunpack.c.l.b16 %v1602
        %v1653 = vunpack.c.l.b16 %v1605
        %v1654 = vunpack.c.l.b16 %v1609
        %v1655 = vunpack.c.l.b16 %v1612
        %v1656 = vunpack.c.l.b16 %v1616
        %v1657 = vunpack.c.l.b16 %v1619
        %v1658 = vunpack.c.l.b16 %v1623
        %v1659 = vunpack.c.l.b16 %v1626
        %v1660 = vunpack.c.l.b16 %v1630
        %v1661 = vunpack.c.l.b16 %v1633
        %v1662 = vunpack.c.l.b16 %v1637
        %v1663 = vunpack.c.l.b16 %v1640
        %v1664 = vunpack.c.l.b16 %v1644
        %v1665 = vunpack.c.l.b16 %v1647
        %v1666 = vpack.c.b16 %v1651, %v1650
        %v1667 = vpack.c.b16 %v1653, %v1652
        %v1668 = vpack.c.b16 %v1655, %v1654
        %v1669 = vpack.c.b16 %v1657, %v1656
        %v1670 = vpack.c.b16 %v1659, %v1658
        %v1671 = vpack.c.b16 %v1661, %v1660
        %v1672 = vpack.c.b16 %v1663, %v1662
        %v1673 = vpack.c.b16 %v1665, %v1664
        %v1675 = vsel %vm1275, %v1666, 0
        %v1678 = vsel %vm1275, %v1667, 0
        %v1681 = vsel %vm1275, %v1668, 0
        %v1684 = vsel %vm1275, %v1669, 0
        %v1687 = vsel %vm1275, %v1670, 0
        %v1690 = vsel %vm1275, %v1671, 0
        %v1693 = vsel %vm1275, %v1672, 0
        %v1696 = vsel %vm1275, %v1673, 0
        %v1699 = vsel %vm1300, %v1649, 0
        %1701 = vmatprep.subr.bf16.mxu0 0
        %1702 = vmatpush1.bf16.msra.mxu0 0
        %1703 = vmatprep.subr.bf16.mxu0 0
        %1704 = vmatpush1.bf16.msra.mxu0 0
        %1705 = vmatprep.subr.bf16.mxu0 0
        %1706 = vmatpush1.bf16.msra.mxu0 0
        %1707 = vmatprep.subr.bf16.mxu0 0
        %1708 = vmatpush1.bf16.msra.mxu0 0
        %1709 = vmatprep.subr.bf16.mxu0 0
        %1710 = vmatpush1.bf16.msra.mxu0 0
        %1711 = vmatprep.subr.bf16.mxu0 0
        %1712 = vmatpush1.bf16.msra.mxu0 0
        %1713 = vmatprep.subr.bf16.mxu0 0
        %1714 = vmatpush1.bf16.msra.mxu0 0
        %1715 = vmatprep.subr.bf16.mxu0 0
        %1716 = vmatpush1.bf16.msra.mxu0 %v1699
        %1717 = vmatprep.subr.bf16.mxu0 0
        %1718 = vmatpush2.bf16.msra.mxu0 0
        %1719 = vmatprep.subr.bf16.mxu0 0
        %1720 = vmatpush2.bf16.msra.mxu0 0
        %1721 = vmatprep.subr.bf16.mxu0 0
        %1722 = vmatpush2.bf16.msra.mxu0 0
        %1723 = vmatprep.subr.bf16.mxu0 0
        %1724 = vmatpush2.bf16.msra.mxu0 0
        %1725 = vmatprep.subr.bf16.mxu0 0
        %1726 = vmatpush2.bf16.msra.mxu0 0
        %1727 = vmatprep.subr.bf16.mxu0 0
        %1728 = vmatpush2.bf16.msra.mxu0 0
        %1729 = vmatprep.subr.bf16.mxu0 0
        %1730 = vmatpush2.bf16.msra.mxu0 0
        %1731 = vmatprep.subr.bf16.mxu0 0
        %1732 = vmatpush2.bf16.msra.mxu0 0
        %1733 = vmatprep.mubr.bf16.mxu0 0
        %1734 = vmatmul.mubr.bf16.gmra.mxu0 %v1675
        %v1735 = vpop.f32.mrf.mxu0
        %v1736 = vadd.f32 0.0, %v1735
        %v1737 = vpop.f32.mrf.mxu0
        %v1738 = vpop.f32.mrf.mxu0
        %v1739 = vadd.f32 0.0, %v1738
        %v1740 = vpop.f32.mrf.mxu0
        %1741 = vmatprep.mubr.bf16.mxu0 0
        %1742 = vmatmul.mubr.bf16.gmra.mxu0 %v1678
        %v1743 = vpop.f32.mrf.mxu0
        %v1744 = vadd.f32 0.0, %v1743
        %v1745 = vpop.f32.mrf.mxu0
        %v1746 = vpop.f32.mrf.mxu0
        %v1747 = vadd.f32 0.0, %v1746
        %v1748 = vpop.f32.mrf.mxu0
        %1749 = vmatprep.mubr.bf16.mxu0 0
        %1750 = vmatmul.mubr.bf16.gmra.mxu0 %v1681
        %v1751 = vpop.f32.mrf.mxu0
        %v1752 = vadd.f32 0.0, %v1751
        %v1753 = vpop.f32.mrf.mxu0
        %v1754 = vpop.f32.mrf.mxu0
        %v1755 = vadd.f32 0.0, %v1754
        %v1756 = vpop.f32.mrf.mxu0
        %1757 = vmatprep.mubr.bf16.mxu0 0
        %1758 = vmatmul.mubr.bf16.gmra.mxu0 %v1684
        %v1759 = vpop.f32.mrf.mxu0
        %v1760 = vadd.f32 0.0, %v1759
        %v1761 = vpop.f32.mrf.mxu0
        %v1762 = vpop.f32.mrf.mxu0
        %v1763 = vadd.f32 0.0, %v1762
        %v1764 = vpop.f32.mrf.mxu0
        %1765 = vmatprep.mubr.bf16.mxu0 0
        %1766 = vmatmul.mubr.bf16.gmra.mxu0 %v1687
        %v1767 = vpop.f32.mrf.mxu0
        %v1768 = vadd.f32 0.0, %v1767
        %v1769 = vpop.f32.mrf.mxu0
        %v1770 = vpop.f32.mrf.mxu0
        %v1771 = vadd.f32 0.0, %v1770
        %v1772 = vpop.f32.mrf.mxu0
        %1773 = vmatprep.mubr.bf16.mxu0 0
        %1774 = vmatmul.mubr.bf16.gmra.mxu0 %v1690
        %v1775 = vpop.f32.mrf.mxu0
        %v1776 = vadd.f32 0.0, %v1775
        %v1777 = vpop.f32.mrf.mxu0
        %v1778 = vpop.f32.mrf.mxu0
        %v1779 = vadd.f32 0.0, %v1778
        %v1780 = vpop.f32.mrf.mxu0
        %1781 = vmatprep.mubr.bf16.mxu0 0
        %1782 = vmatmul.mubr.bf16.gmra.mxu0 %v1693
        %v1783 = vpop.f32.mrf.mxu0
        %v1784 = vadd.f32 0.0, %v1783
        %v1785 = vpop.f32.mrf.mxu0
        %v1786 = vpop.f32.mrf.mxu0
        %v1787 = vadd.f32 0.0, %v1786
        %v1788 = vpop.f32.mrf.mxu0
        %1789 = vmatprep.mubr.bf16.mxu0 0
        %1790 = vmatmul.mubr.bf16.gmra.mxu0 %v1696
        %v1791 = vpop.f32.mrf.mxu0
        %v1792 = vadd.f32 0.0, %v1791
        %v1793 = vpop.f32.mrf.mxu0
        %v1794 = vpop.f32.mrf.mxu0
        %v1795 = vadd.f32 0.0, %v1794
        %v1796 = vpop.f32.mrf.mxu0
        %1797 = vdwg.mxu0
        %v1798 = vadd.f32 %v1503, %v1736
        %v1799 = vadd.f32 %v1506, %v1739
        %v1800 = vadd.f32 %v1511, %v1744
        %v1801 = vadd.f32 %v1514, %v1747
        %v1802 = vadd.f32 %v1519, %v1752
        %v1803 = vadd.f32 %v1522, %v1755
        %v1804 = vadd.f32 %v1527, %v1760
        %v1805 = vadd.f32 %v1530, %v1763
        %v1806 = vadd.f32 %v1535, %v1768
        %v1807 = vadd.f32 %v1538, %v1771
        %v1808 = vadd.f32 %v1543, %v1776
        %v1809 = vadd.f32 %v1546, %v1779
        %v1810 = vadd.f32 %v1551, %v1784
        %v1811 = vadd.f32 %v1554, %v1787
        %v1812 = vadd.f32 %v1559, %v1792
        %v1813 = vadd.f32 %v1562, %v1795
        %v1814 = vld [vmem:[%s972] sm:$0xf]
        %v1815 = vld [vmem:[%s972 + $0x4] sm:$0xf]
        %v1816 = vld [vmem:[%s972 + $0xc] sm:$0xf]
        %v1817 = vld [vmem:[%s972 + $0x10] sm:$0xf]
        %v1818 = vld [vmem:[%s972 + $0x18] sm:$0xf]
        %v1819 = vld [vmem:[%s972 + $0x1c] sm:$0xf]
        %v1820 = vld [vmem:[%s972 + $0x24] sm:$0xf]
        %v1821 = vld [vmem:[%s972 + $0x28] sm:$0xf]
        %v1822 = vld [vmem:[%s972 + $0x30] sm:$0xf]
        %v1823 = vld [vmem:[%s972 + $0x34] sm:$0xf]
        %v1824 = vld [vmem:[%s972 + $0x3c] sm:$0xf]
        %v1825 = vld [vmem:[%s972 + $0x40] sm:$0xf]
        %v1826 = vld [vmem:[%s972 + $0x48] sm:$0xf]
        %v1827 = vld [vmem:[%s972 + $0x4c] sm:$0xf]
        %v1828 = vld [vmem:[%s972 + $0x54] sm:$0xf]
        %v1829 = vld [vmem:[%s972 + $0x58] sm:$0xf]
        %s1830 = scalar_lea.vmem %s3, 6
        %v1831 = vld [vmem:[%s1830] sm:$0x3]
        %v1848 = vunpack.c.l.b16 %v1814
        %v1849 = vunpack.c.l.b16 %v1815
        %v1850 = vunpack.c.l.b16 %v1816
        %v1851 = vunpack.c.l.b16 %v1817
        %v1852 = vunpack.c.l.b16 %v1818
        %v1853 = vunpack.c.l.b16 %v1819
        %v1854 = vunpack.c.l.b16 %v1820
        %v1855 = vunpack.c.l.b16 %v1821
        %v1856 = vunpack.c.l.b16 %v1822
        %v1857 = vunpack.c.l.b16 %v1823
        %v1858 = vunpack.c.l.b16 %v1824
        %v1859 = vunpack.c.l.b16 %v1825
        %v1860 = vunpack.c.l.b16 %v1826
        %v1861 = vunpack.c.l.b16 %v1827
        %v1862 = vunpack.c.l.b16 %v1828
        %v1863 = vunpack.c.l.b16 %v1829
        %v1864 = vpack.c.b16 %v1849, %v1848
        %v1865 = vpack.c.b16 %v1851, %v1850
        %v1866 = vpack.c.b16 %v1853, %v1852
        %v1867 = vpack.c.b16 %v1855, %v1854
        %v1868 = vpack.c.b16 %v1857, %v1856
        %v1869 = vpack.c.b16 %v1859, %v1858
        %v1870 = vpack.c.b16 %v1861, %v1860
        %v1871 = vpack.c.b16 %v1863, %v1862
        %v1873 = vsel %vm1275, %v1864, 0
        %v1876 = vsel %vm1275, %v1865, 0
        %v1879 = vsel %vm1275, %v1866, 0
        %v1882 = vsel %vm1275, %v1867, 0
        %v1885 = vsel %vm1275, %v1868, 0
        %v1888 = vsel %vm1275, %v1869, 0
        %v1891 = vsel %vm1275, %v1870, 0
        %v1894 = vsel %vm1275, %v1871, 0
        %v1897 = vsel %vm1300, %v1831, 0
        %1899 = vmatprep.subr.bf16.mxu0 0
        %1900 = vmatpush1.bf16.msra.mxu0 0
        %1901 = vmatprep.subr.bf16.mxu0 0
        %1902 = vmatpush1.bf16.msra.mxu0 0
        %1903 = vmatprep.subr.bf16.mxu0 0
        %1904 = vmatpush1.bf16.msra.mxu0 0
        %1905 = vmatprep.subr.bf16.mxu0 0
        %1906 = vmatpush1.bf16.msra.mxu0 0
        %1907 = vmatprep.subr.bf16.mxu0 0
        %1908 = vmatpush1.bf16.msra.mxu0 0
        %1909 = vmatprep.subr.bf16.mxu0 0
        %1910 = vmatpush1.bf16.msra.mxu0 0
        %1911 = vmatprep.subr.bf16.mxu0 0
        %1912 = vmatpush1.bf16.msra.mxu0 0
        %1913 = vmatprep.subr.bf16.mxu0 0
        %1914 = vmatpush1.bf16.msra.mxu0 %v1897
        %1915 = vmatprep.subr.bf16.mxu0 0
        %1916 = vmatpush2.bf16.msra.mxu0 0
        %1917 = vmatprep.subr.bf16.mxu0 0
        %1918 = vmatpush2.bf16.msra.mxu0 0
        %1919 = vmatprep.subr.bf16.mxu0 0
        %1920 = vmatpush2.bf16.msra.mxu0 0
        %1921 = vmatprep.subr.bf16.mxu0 0
        %1922 = vmatpush2.bf16.msra.mxu0 0
        %1923 = vmatprep.subr.bf16.mxu0 0
        %1924 = vmatpush2.bf16.msra.mxu0 0
        %1925 = vmatprep.subr.bf16.mxu0 0
        %1926 = vmatpush2.bf16.msra.mxu0 0
        %1927 = vmatprep.subr.bf16.mxu0 0
        %1928 = vmatpush2.bf16.msra.mxu0 0
        %1929 = vmatprep.subr.bf16.mxu0 0
        %1930 = vmatpush2.bf16.msra.mxu0 0
        %1931 = vmatprep.mubr.bf16.mxu0 0
        %1932 = vmatmul.mubr.bf16.gmra.mxu0 %v1873
        %v1933 = vpop.f32.mrf.mxu0
        %v1934 = vadd.f32 0.0, %v1933
        %v1935 = vpop.f32.mrf.mxu0
        %v1936 = vpop.f32.mrf.mxu0
        %v1937 = vadd.f32 0.0, %v1936
        %v1938 = vpop.f32.mrf.mxu0
        %1939 = vmatprep.mubr.bf16.mxu0 0
        %1940 = vmatmul.mubr.bf16.gmra.mxu0 %v1876
        %v1941 = vpop.f32.mrf.mxu0
        %v1942 = vadd.f32 0.0, %v1941
        %v1943 = vpop.f32.mrf.mxu0
        %v1944 = vpop.f32.mrf.mxu0
        %v1945 = vadd.f32 0.0, %v1944
        %v1946 = vpop.f32.mrf.mxu0
        %1947 = vmatprep.mubr.bf16.mxu0 0
        %1948 = vmatmul.mubr.bf16.gmra.mxu0 %v1879
        %v1949 = vpop.f32.mrf.mxu0
        %v1950 = vadd.f32 0.0, %v1949
        %v1951 = vpop.f32.mrf.mxu0
        %v1952 = vpop.f32.mrf.mxu0
        %v1953 = vadd.f32 0.0, %v1952
        %v1954 = vpop.f32.mrf.mxu0
        %1955 = vmatprep.mubr.bf16.mxu0 0
        %1956 = vmatmul.mubr.bf16.gmra.mxu0 %v1882
        %v1957 = vpop.f32.mrf.mxu0
        %v1958 = vadd.f32 0.0, %v1957
        %v1959 = vpop.f32.mrf.mxu0
        %v1960 = vpop.f32.mrf.mxu0
        %v1961 = vadd.f32 0.0, %v1960
        %v1962 = vpop.f32.mrf.mxu0
        %1963 = vmatprep.mubr.bf16.mxu0 0
        %1964 = vmatmul.mubr.bf16.gmra.mxu0 %v1885
        %v1965 = vpop.f32.mrf.mxu0
        %v1966 = vadd.f32 0.0, %v1965
        %v1967 = vpop.f32.mrf.mxu0
        %v1968 = vpop.f32.mrf.mxu0
        %v1969 = vadd.f32 0.0, %v1968
        %v1970 = vpop.f32.mrf.mxu0
        %1971 = vmatprep.mubr.bf16.mxu0 0
        %1972 = vmatmul.mubr.bf16.gmra.mxu0 %v1888
        %v1973 = vpop.f32.mrf.mxu0
        %v1974 = vadd.f32 0.0, %v1973
        %v1975 = vpop.f32.mrf.mxu0
        %v1976 = vpop.f32.mrf.mxu0
        %v1977 = vadd.f32 0.0, %v1976
        %v1978 = vpop.f32.mrf.mxu0
        %1979 = vmatprep.mubr.bf16.mxu0 0
        %1980 = vmatmul.mubr.bf16.gmra.mxu0 %v1891
        %v1981 = vpop.f32.mrf.mxu0
        %v1982 = vadd.f32 0.0, %v1981
        %v1983 = vpop.f32.mrf.mxu0
        %v1984 = vpop.f32.mrf.mxu0
        %v1985 = vadd.f32 0.0, %v1984
        %v1986 = vpop.f32.mrf.mxu0
        %1987 = vmatprep.mubr.bf16.mxu0 0
        %1988 = vmatmul.mubr.bf16.gmra.mxu0 %v1894
        %v1989 = vpop.f32.mrf.mxu0
        %v1990 = vadd.f32 0.0, %v1989
        %v1991 = vpop.f32.mrf.mxu0
        %v1992 = vpop.f32.mrf.mxu0
        %v1993 = vadd.f32 0.0, %v1992
        %v1994 = vpop.f32.mrf.mxu0
        %1995 = vdwg.mxu0
        %v1996 = vadd.f32 %v1798, %v1934
        %v1997 = vadd.f32 %v1799, %v1937
        %v1998 = vadd.f32 %v1800, %v1942
        %v1999 = vadd.f32 %v1801, %v1945
        %v2000 = vadd.f32 %v1802, %v1950
        %v2001 = vadd.f32 %v1803, %v1953
        %v2002 = vadd.f32 %v1804, %v1958
        %v2003 = vadd.f32 %v1805, %v1961
        %v2004 = vadd.f32 %v1806, %v1966
        %v2005 = vadd.f32 %v1807, %v1969
        %v2006 = vadd.f32 %v1808, %v1974
        %v2007 = vadd.f32 %v1809, %v1977
        %v2008 = vadd.f32 %v1810, %v1982
        %v2009 = vadd.f32 %v1811, %v1985
        %v2010 = vadd.f32 %v1812, %v1990
        %v2011 = vadd.f32 %v1813, %v1993
        %v2012 = vld [vmem:[%s972] sm:$0xf]
        %v2013 = vld [vmem:[%s972 + $0x4] sm:$0xf]
        %v2014 = vld [vmem:[%s972 + $0x8] sm:$0x1]
        %v2015 = vld [vmem:[%s972 + $0xc] sm:$0xf]
        %v2016 = vld [vmem:[%s972 + $0x10] sm:$0xf]
        %v2017 = vld [vmem:[%s972 + $0x14] sm:$0x1]
        %v2018 = vld [vmem:[%s972 + $0x18] sm:$0xf]
        %v2019 = vld [vmem:[%s972 + $0x1c] sm:$0xf]
        %v2020 = vld [vmem:[%s972 + $0x20] sm:$0x1]
        %v2021 = vld [vmem:[%s972 + $0x24] sm:$0xf]
        %v2022 = vld [vmem:[%s972 + $0x28] sm:$0xf]
        %v2023 = vld [vmem:[%s972 + $0x2c] sm:$0x1]
        %v2024 = vld [vmem:[%s972 + $0x30] sm:$0xf]
        %v2025 = vld [vmem:[%s972 + $0x34] sm:$0xf]
        %v2026 = vld [vmem:[%s972 + $0x38] sm:$0x1]
        %v2027 = vld [vmem:[%s972 + $0x3c] sm:$0xf]
        %v2028 = vld [vmem:[%s972 + $0x40] sm:$0xf]
        %v2029 = vld [vmem:[%s972 + $0x44] sm:$0x1]
        %v2030 = vld [vmem:[%s972 + $0x48] sm:$0xf]
        %v2031 = vld [vmem:[%s972 + $0x4c] sm:$0xf]
        %v2032 = vld [vmem:[%s972 + $0x50] sm:$0x1]
        %v2033 = vld [vmem:[%s972 + $0x54] sm:$0xf]
        %v2034 = vld [vmem:[%s972 + $0x58] sm:$0xf]
        %v2035 = vld [vmem:[%s972 + $0x5c] sm:$0x1]
        %v2037 = vshrl.u32 %v2012, 16
        %v2039 = vrot.slane %v2037, 4
        %v2040 = vshll.u32 %v2012, 16
        %v2042 = vrot.slane %v2040, 5
        %v2043 = vor.u32 %v2039, %v2042
        %v2044 = vrot.slane %v2043, 4
        %v2046 = vshll.u32 %v2013, 16
        %v2048 = vrot.slane %v2046, 5
        %v2049 = vsel %vm1056, %v2044, %v2048
        %v2050 = vshrl.u32 %v2013, 16
        %v2052 = vrot.slane %v2050, 4
        %v2053 = vor.u32 %v2052, %v2048
        %v2054 = vrot.slane %v2053, 4
        %v2056 = vshll.u32 %v2014, 16
        %v2058 = vrot.slane %v2056, 5
        %v2059 = vsel %vm1056, %v2054, %v2058
        %v2061 = vshrl.u32 %v2015, 16
        %v2063 = vrot.slane %v2061, 4
        %v2064 = vshll.u32 %v2015, 16
        %v2066 = vrot.slane %v2064, 5
        %v2067 = vor.u32 %v2063, %v2066
        %v2068 = vrot.slane %v2067, 4
        %v2070 = vshll.u32 %v2016, 16
        %v2072 = vrot.slane %v2070, 5
        %v2073 = vsel %vm1056, %v2068, %v2072
        %v2074 = vshrl.u32 %v2016, 16
        %v2076 = vrot.slane %v2074, 4
        %v2077 = vor.u32 %v2076, %v2072
        %v2078 = vrot.slane %v2077, 4
        %v2080 = vshll.u32 %v2017, 16
        %v2082 = vrot.slane %v2080, 5
        %v2083 = vsel %vm1056, %v2078, %v2082
        %v2085 = vshrl.u32 %v2018, 16
        %v2087 = vrot.slane %v2085, 4
        %v2088 = vshll.u32 %v2018, 16
        %v2090 = vrot.slane %v2088, 5
        %v2091 = vor.u32 %v2087, %v2090
        %v2092 = vrot.slane %v2091, 4
        %v2094 = vshll.u32 %v2019, 16
        %v2096 = vrot.slane %v2094, 5
        %v2097 = vsel %vm1056, %v2092, %v2096
        %v2098 = vshrl.u32 %v2019, 16
        %v2100 = vrot.slane %v2098, 4
        %v2101 = vor.u32 %v2100, %v2096
        %v2102 = vrot.slane %v2101, 4
        %v2104 = vshll.u32 %v2020, 16
        %v2106 = vrot.slane %v2104, 5
        %v2107 = vsel %vm1056, %v2102, %v2106
        %v2109 = vshrl.u32 %v2021, 16
        %v2111 = vrot.slane %v2109, 4
        %v2112 = vshll.u32 %v2021, 16
        %v2114 = vrot.slane %v2112, 5
        %v2115 = vor.u32 %v2111, %v2114
        %v2116 = vrot.slane %v2115, 4
        %v2118 = vshll.u32 %v2022, 16
        %v2120 = vrot.slane %v2118, 5
        %v2121 = vsel %vm1056, %v2116, %v2120
        %v2122 = vshrl.u32 %v2022, 16
        %v2124 = vrot.slane %v2122, 4
        %v2125 = vor.u32 %v2124, %v2120
        %v2126 = vrot.slane %v2125, 4
        %v2128 = vshll.u32 %v2023, 16
        %v2130 = vrot.slane %v2128, 5
        %v2131 = vsel %vm1056, %v2126, %v2130
        %v2133 = vshrl.u32 %v2024, 16
        %v2135 = vrot.slane %v2133, 4
        %v2136 = vshll.u32 %v2024, 16
        %v2138 = vrot.slane %v2136, 5
        %v2139 = vor.u32 %v2135, %v2138
        %v2140 = vrot.slane %v2139, 4
        %v2142 = vshll.u32 %v2025, 16
        %v2144 = vrot.slane %v2142, 5
        %v2145 = vsel %vm1056, %v2140, %v2144
        %v2146 = vshrl.u32 %v2025, 16
        %v2148 = vrot.slane %v2146, 4
        %v2149 = vor.u32 %v2148, %v2144
        %v2150 = vrot.slane %v2149, 4
        %v2152 = vshll.u32 %v2026, 16
        %v2154 = vrot.slane %v2152, 5
        %v2155 = vsel %vm1056, %v2150, %v2154
        %v2157 = vshrl.u32 %v2027, 16
        %v2159 = vrot.slane %v2157, 4
        %v2160 = vshll.u32 %v2027, 16
        %v2162 = vrot.slane %v2160, 5
        %v2163 = vor.u32 %v2159, %v2162
        %v2164 = vrot.slane %v2163, 4
        %v2166 = vshll.u32 %v2028, 16
        %v2168 = vrot.slane %v2166, 5
        %v2169 = vsel %vm1056, %v2164, %v2168
        %v2170 = vshrl.u32 %v2028, 16
        %v2172 = vrot.slane %v2170, 4
        %v2173 = vor.u32 %v2172, %v2168
        %v2174 = vrot.slane %v2173, 4
        %v2176 = vshll.u32 %v2029, 16
        %v2178 = vrot.slane %v2176, 5
        %v2179 = vsel %vm1056, %v2174, %v2178
        %v2181 = vshrl.u32 %v2030, 16
        %v2183 = vrot.slane %v2181, 4
        %v2184 = vshll.u32 %v2030, 16
        %v2186 = vrot.slane %v2184, 5
        %v2187 = vor.u32 %v2183, %v2186
        %v2188 = vrot.slane %v2187, 4
        %v2190 = vshll.u32 %v2031, 16
        %v2192 = vrot.slane %v2190, 5
        %v2193 = vsel %vm1056, %v2188, %v2192
        %v2194 = vshrl.u32 %v2031, 16
        %v2196 = vrot.slane %v2194, 4
        %v2197 = vor.u32 %v2196, %v2192
        %v2198 = vrot.slane %v2197, 4
        %v2200 = vshll.u32 %v2032, 16
        %v2202 = vrot.slane %v2200, 5
        %v2203 = vsel %vm1056, %v2198, %v2202
        %v2205 = vshrl.u32 %v2033, 16
        %v2207 = vrot.slane %v2205, 4
        %v2208 = vshll.u32 %v2033, 16
        %v2210 = vrot.slane %v2208, 5
        %v2211 = vor.u32 %v2207, %v2210
        %v2212 = vrot.slane %v2211, 4
        %v2214 = vshll.u32 %v2034, 16
        %v2216 = vrot.slane %v2214, 5
        %v2217 = vsel %vm1056, %v2212, %v2216
        %v2218 = vshrl.u32 %v2034, 16
        %v2220 = vrot.slane %v2218, 4
        %v2221 = vor.u32 %v2220, %v2216
        %v2222 = vrot.slane %v2221, 4
        %v2224 = vshll.u32 %v2035, 16
        %v2226 = vrot.slane %v2224, 5
        %v2227 = vsel %vm1056, %v2222, %v2226
        %s2228 = scalar_lea.vmem %s3, 8
        %v2229 = vld [vmem:[%s2228] sm:$0x3]
        %v2230 = vunpack.c.l.b16 %v2049
        %v2231 = vunpack.c.l.b16 %v2059
        %v2232 = vunpack.c.l.b16 %v2073
        %v2233 = vunpack.c.l.b16 %v2083
        %v2234 = vunpack.c.l.b16 %v2097
        %v2235 = vunpack.c.l.b16 %v2107
        %v2236 = vunpack.c.l.b16 %v2121
        %v2237 = vunpack.c.l.b16 %v2131
        %v2238 = vunpack.c.l.b16 %v2145
        %v2239 = vunpack.c.l.b16 %v2155
        %v2240 = vunpack.c.l.b16 %v2169
        %v2241 = vunpack.c.l.b16 %v2179
        %v2242 = vunpack.c.l.b16 %v2193
        %v2243 = vunpack.c.l.b16 %v2203
        %v2244 = vunpack.c.l.b16 %v2217
        %v2245 = vunpack.c.l.b16 %v2227
        %v2246 = vpack.c.b16 %v2231, %v2230
        %v2247 = vpack.c.b16 %v2233, %v2232
        %v2248 = vpack.c.b16 %v2235, %v2234
        %v2249 = vpack.c.b16 %v2237, %v2236
        %v2250 = vpack.c.b16 %v2239, %v2238
        %v2251 = vpack.c.b16 %v2241, %v2240
        %v2252 = vpack.c.b16 %v2243, %v2242
        %v2253 = vpack.c.b16 %v2245, %v2244
        %v2255 = vsel %vm1275, %v2246, 0
        %v2258 = vsel %vm1275, %v2247, 0
        %v2261 = vsel %vm1275, %v2248, 0
        %v2264 = vsel %vm1275, %v2249, 0
        %v2267 = vsel %vm1275, %v2250, 0
        %v2270 = vsel %vm1275, %v2251, 0
        %v2273 = vsel %vm1275, %v2252, 0
        %v2276 = vsel %vm1275, %v2253, 0
        %v2279 = vsel %vm1300, %v2229, 0
        %2281 = vmatprep.subr.bf16.mxu0 0
        %2282 = vmatpush1.bf16.msra.mxu0 0
        %2283 = vmatprep.subr.bf16.mxu0 0
        %2284 = vmatpush1.bf16.msra.mxu0 0
        %2285 = vmatprep.subr.bf16.mxu0 0
        %2286 = vmatpush1.bf16.msra.mxu0 0
        %2287 = vmatprep.subr.bf16.mxu0 0
        %2288 = vmatpush1.bf16.msra.mxu0 0
        %2289 = vmatprep.subr.bf16.mxu0 0
        %2290 = vmatpush1.bf16.msra.mxu0 0
        %2291 = vmatprep.subr.bf16.mxu0 0
        %2292 = vmatpush1.bf16.msra.mxu0 0
        %2293 = vmatprep.subr.bf16.mxu0 0
        %2294 = vmatpush1.bf16.msra.mxu0 0
        %2295 = vmatprep.subr.bf16.mxu0 0
        %2296 = vmatpush1.bf16.msra.mxu0 %v2279
        %2297 = vmatprep.subr.bf16.mxu0 0
        %2298 = vmatpush2.bf16.msra.mxu0 0
        %2299 = vmatprep.subr.bf16.mxu0 0
        %2300 = vmatpush2.bf16.msra.mxu0 0
        %2301 = vmatprep.subr.bf16.mxu0 0
        %2302 = vmatpush2.bf16.msra.mxu0 0
        %2303 = vmatprep.subr.bf16.mxu0 0
        %2304 = vmatpush2.bf16.msra.mxu0 0
        %2305 = vmatprep.subr.bf16.mxu0 0
        %2306 = vmatpush2.bf16.msra.mxu0 0
        %2307 = vmatprep.subr.bf16.mxu0 0
        %2308 = vmatpush2.bf16.msra.mxu0 0
        %2309 = vmatprep.subr.bf16.mxu0 0
        %2310 = vmatpush2.bf16.msra.mxu0 0
        %2311 = vmatprep.subr.bf16.mxu0 0
        %2312 = vmatpush2.bf16.msra.mxu0 0
        %2313 = vmatprep.mubr.bf16.mxu0 0
        %2314 = vmatmul.mubr.bf16.gmra.mxu0 %v2255
        %v2315 = vpop.f32.mrf.mxu0
        %v2316 = vadd.f32 0.0, %v2315
        %v2317 = vpop.f32.mrf.mxu0
        %v2318 = vpop.f32.mrf.mxu0
        %v2319 = vadd.f32 0.0, %v2318
        %v2320 = vpop.f32.mrf.mxu0
        %2321 = vmatprep.mubr.bf16.mxu0 0
        %2322 = vmatmul.mubr.bf16.gmra.mxu0 %v2258
        %v2323 = vpop.f32.mrf.mxu0
        %v2324 = vadd.f32 0.0, %v2323
        %v2325 = vpop.f32.mrf.mxu0
        %v2326 = vpop.f32.mrf.mxu0
        %v2327 = vadd.f32 0.0, %v2326
        %v2328 = vpop.f32.mrf.mxu0
        %2329 = vmatprep.mubr.bf16.mxu0 0
        %2330 = vmatmul.mubr.bf16.gmra.mxu0 %v2261
        %v2331 = vpop.f32.mrf.mxu0
        %v2332 = vadd.f32 0.0, %v2331
        %v2333 = vpop.f32.mrf.mxu0
        %v2334 = vpop.f32.mrf.mxu0
        %v2335 = vadd.f32 0.0, %v2334
        %v2336 = vpop.f32.mrf.mxu0
        %2337 = vmatprep.mubr.bf16.mxu0 0
        %2338 = vmatmul.mubr.bf16.gmra.mxu0 %v2264
        %v2339 = vpop.f32.mrf.mxu0
        %v2340 = vadd.f32 0.0, %v2339
        %v2341 = vpop.f32.mrf.mxu0
        %v2342 = vpop.f32.mrf.mxu0
        %v2343 = vadd.f32 0.0, %v2342
        %v2344 = vpop.f32.mrf.mxu0
        %2345 = vmatprep.mubr.bf16.mxu0 0
        %2346 = vmatmul.mubr.bf16.gmra.mxu0 %v2267
        %v2347 = vpop.f32.mrf.mxu0
        %v2348 = vadd.f32 0.0, %v2347
        %v2349 = vpop.f32.mrf.mxu0
        %v2350 = vpop.f32.mrf.mxu0
        %v2351 = vadd.f32 0.0, %v2350
        %v2352 = vpop.f32.mrf.mxu0
        %2353 = vmatprep.mubr.bf16.mxu0 0
        %2354 = vmatmul.mubr.bf16.gmra.mxu0 %v2270
        %v2355 = vpop.f32.mrf.mxu0
        %v2356 = vadd.f32 0.0, %v2355
        %v2357 = vpop.f32.mrf.mxu0
        %v2358 = vpop.f32.mrf.mxu0
        %v2359 = vadd.f32 0.0, %v2358
        %v2360 = vpop.f32.mrf.mxu0
        %2361 = vmatprep.mubr.bf16.mxu0 0
        %2362 = vmatmul.mubr.bf16.gmra.mxu0 %v2273
        %v2363 = vpop.f32.mrf.mxu0
        %v2364 = vadd.f32 0.0, %v2363
        %v2365 = vpop.f32.mrf.mxu0
        %v2366 = vpop.f32.mrf.mxu0
        %v2367 = vadd.f32 0.0, %v2366
        %v2368 = vpop.f32.mrf.mxu0
        %2369 = vmatprep.mubr.bf16.mxu0 0
        %2370 = vmatmul.mubr.bf16.gmra.mxu0 %v2276
        %v2371 = vpop.f32.mrf.mxu0
        %v2372 = vadd.f32 0.0, %v2371
        %v2373 = vpop.f32.mrf.mxu0
        %v2374 = vpop.f32.mrf.mxu0
        %v2375 = vadd.f32 0.0, %v2374
        %v2376 = vpop.f32.mrf.mxu0
        %2377 = vdwg.mxu0
        %v2378 = vadd.f32 %v1996, %v2316
        %v2379 = vadd.f32 %v1997, %v2319
        %v2380 = vadd.f32 %v1998, %v2324
        %v2381 = vadd.f32 %v1999, %v2327
        %v2382 = vadd.f32 %v2000, %v2332
        %v2383 = vadd.f32 %v2001, %v2335
        %v2384 = vadd.f32 %v2002, %v2340
        %v2385 = vadd.f32 %v2003, %v2343
        %v2386 = vadd.f32 %v2004, %v2348
        %v2387 = vadd.f32 %v2005, %v2351
        %v2388 = vadd.f32 %v2006, %v2356
        %v2389 = vadd.f32 %v2007, %v2359
        %v2390 = vadd.f32 %v2008, %v2364
        %v2391 = vadd.f32 %v2009, %v2367
        %v2392 = vadd.f32 %v2010, %v2372
        %v2393 = vadd.f32 %v2011, %v2375
        %v2394 = vld [vmem:[%s972] sm:$0xe]
        %v2395 = vld [vmem:[%s972 + $0xc] sm:$0xe]
        %v2396 = vld [vmem:[%s972 + $0x18] sm:$0xe]
        %v2397 = vld [vmem:[%s972 + $0x24] sm:$0xe]
        %v2398 = vld [vmem:[%s972 + $0x30] sm:$0xe]
        %v2399 = vld [vmem:[%s972 + $0x3c] sm:$0xe]
        %v2400 = vld [vmem:[%s972 + $0x48] sm:$0xe]
        %v2401 = vld [vmem:[%s972 + $0x54] sm:$0xe]
        %v2426 = vrot.slane %v2394, 5
        %v2427 = vrot.slane %v2426, 4
        %v2428 = vrot.slane %v2013, 5
        %v2429 = vsel %vm1591, %v2427, %v2428
        %v2430 = vrot.slane %v2428, 4
        %v2431 = vrot.slane %v2014, 5
        %v2432 = vsel %vm1591, %v2430, %v2431
        %v2433 = vrot.slane %v2395, 5
        %v2434 = vrot.slane %v2433, 4
        %v2435 = vrot.slane %v2016, 5
        %v2436 = vsel %vm1591, %v2434, %v2435
        %v2437 = vrot.slane %v2435, 4
        %v2438 = vrot.slane %v2017, 5
        %v2439 = vsel %vm1591, %v2437, %v2438
        %v2440 = vrot.slane %v2396, 5
        %v2441 = vrot.slane %v2440, 4
        %v2442 = vrot.slane %v2019, 5
        %v2443 = vsel %vm1591, %v2441, %v2442
        %v2444 = vrot.slane %v2442, 4
        %v2445 = vrot.slane %v2020, 5
        %v2446 = vsel %vm1591, %v2444, %v2445
        %v2447 = vrot.slane %v2397, 5
        %v2448 = vrot.slane %v2447, 4
        %v2449 = vrot.slane %v2022, 5
        %v2450 = vsel %vm1591, %v2448, %v2449
        %v2451 = vrot.slane %v2449, 4
        %v2452 = vrot.slane %v2023, 5
        %v2453 = vsel %vm1591, %v2451, %v2452
        %v2454 = vrot.slane %v2398, 5
        %v2455 = vrot.slane %v2454, 4
        %v2456 = vrot.slane %v2025, 5
        %v2457 = vsel %vm1591, %v2455, %v2456
        %v2458 = vrot.slane %v2456, 4
        %v2459 = vrot.slane %v2026, 5
        %v2460 = vsel %vm1591, %v2458, %v2459
        %v2461 = vrot.slane %v2399, 5
        %v2462 = vrot.slane %v2461, 4
        %v2463 = vrot.slane %v2028, 5
        %v2464 = vsel %vm1591, %v2462, %v2463
        %v2465 = vrot.slane %v2463, 4
        %v2466 = vrot.slane %v2029, 5
        %v2467 = vsel %vm1591, %v2465, %v2466
        %v2468 = vrot.slane %v2400, 5
        %v2469 = vrot.slane %v2468, 4
        %v2470 = vrot.slane %v2031, 5
        %v2471 = vsel %vm1591, %v2469, %v2470
        %v2472 = vrot.slane %v2470, 4
        %v2473 = vrot.slane %v2032, 5
        %v2474 = vsel %vm1591, %v2472, %v2473
        %v2475 = vrot.slane %v2401, 5
        %v2476 = vrot.slane %v2475, 4
        %v2477 = vrot.slane %v2034, 5
        %v2478 = vsel %vm1591, %v2476, %v2477
        %v2479 = vrot.slane %v2477, 4
        %v2480 = vrot.slane %v2035, 5
        %v2481 = vsel %vm1591, %v2479, %v2480
        %s2482 = scalar_lea.vmem %s3, 10
        %v2483 = vld [vmem:[%s2482] sm:$0x3]
        %v2484 = vunpack.c.l.b16 %v2429
        %v2485 = vunpack.c.l.b16 %v2432
        %v2486 = vunpack.c.l.b16 %v2436
        %v2487 = vunpack.c.l.b16 %v2439
        %v2488 = vunpack.c.l.b16 %v2443
        %v2489 = vunpack.c.l.b16 %v2446
        %v2490 = vunpack.c.l.b16 %v2450
        %v2491 = vunpack.c.l.b16 %v2453
        %v2492 = vunpack.c.l.b16 %v2457
        %v2493 = vunpack.c.l.b16 %v2460
        %v2494 = vunpack.c.l.b16 %v2464
        %v2495 = vunpack.c.l.b16 %v2467
        %v2496 = vunpack.c.l.b16 %v2471
        %v2497 = vunpack.c.l.b16 %v2474
        %v2498 = vunpack.c.l.b16 %v2478
        %v2499 = vunpack.c.l.b16 %v2481
        %v2500 = vpack.c.b16 %v2485, %v2484
        %v2501 = vpack.c.b16 %v2487, %v2486
        %v2502 = vpack.c.b16 %v2489, %v2488
        %v2503 = vpack.c.b16 %v2491, %v2490
        %v2504 = vpack.c.b16 %v2493, %v2492
        %v2505 = vpack.c.b16 %v2495, %v2494
        %v2506 = vpack.c.b16 %v2497, %v2496
        %v2507 = vpack.c.b16 %v2499, %v2498
        %v2509 = vsel %vm1275, %v2500, 0
        %v2512 = vsel %vm1275, %v2501, 0
        %v2515 = vsel %vm1275, %v2502, 0
        %v2518 = vsel %vm1275, %v2503, 0
        %v2521 = vsel %vm1275, %v2504, 0
        %v2524 = vsel %vm1275, %v2505, 0
        %v2527 = vsel %vm1275, %v2506, 0
        %v2530 = vsel %vm1275, %v2507, 0
        %v2533 = vsel %vm1300, %v2483, 0
        %2535 = vmatprep.subr.bf16.mxu0 0
        %2536 = vmatpush1.bf16.msra.mxu0 0
        %2537 = vmatprep.subr.bf16.mxu0 0
        %2538 = vmatpush1.bf16.msra.mxu0 0
        %2539 = vmatprep.subr.bf16.mxu0 0
        %2540 = vmatpush1.bf16.msra.mxu0 0
        %2541 = vmatprep.subr.bf16.mxu0 0
        %2542 = vmatpush1.bf16.msra.mxu0 0
        %2543 = vmatprep.subr.bf16.mxu0 0
        %2544 = vmatpush1.bf16.msra.mxu0 0
        %2545 = vmatprep.subr.bf16.mxu0 0
        %2546 = vmatpush1.bf16.msra.mxu0 0
        %2547 = vmatprep.subr.bf16.mxu0 0
        %2548 = vmatpush1.bf16.msra.mxu0 0
        %2549 = vmatprep.subr.bf16.mxu0 0
        %2550 = vmatpush1.bf16.msra.mxu0 %v2533
        %2551 = vmatprep.subr.bf16.mxu0 0
        %2552 = vmatpush2.bf16.msra.mxu0 0
        %2553 = vmatprep.subr.bf16.mxu0 0
        %2554 = vmatpush2.bf16.msra.mxu0 0
        %2555 = vmatprep.subr.bf16.mxu0 0
        %2556 = vmatpush2.bf16.msra.mxu0 0
        %2557 = vmatprep.subr.bf16.mxu0 0
        %2558 = vmatpush2.bf16.msra.mxu0 0
        %2559 = vmatprep.subr.bf16.mxu0 0
        %2560 = vmatpush2.bf16.msra.mxu0 0
        %2561 = vmatprep.subr.bf16.mxu0 0
        %2562 = vmatpush2.bf16.msra.mxu0 0
        %2563 = vmatprep.subr.bf16.mxu0 0
        %2564 = vmatpush2.bf16.msra.mxu0 0
        %2565 = vmatprep.subr.bf16.mxu0 0
        %2566 = vmatpush2.bf16.msra.mxu0 0
        %2567 = vmatprep.mubr.bf16.mxu0 0
        %2568 = vmatmul.mubr.bf16.gmra.mxu0 %v2509
        %v2569 = vpop.f32.mrf.mxu0
        %v2570 = vadd.f32 0.0, %v2569
        %v2571 = vpop.f32.mrf.mxu0
        %v2572 = vpop.f32.mrf.mxu0
        %v2573 = vadd.f32 0.0, %v2572
        %v2574 = vpop.f32.mrf.mxu0
        %2575 = vmatprep.mubr.bf16.mxu0 0
        %2576 = vmatmul.mubr.bf16.gmra.mxu0 %v2512
        %v2577 = vpop.f32.mrf.mxu0
        %v2578 = vadd.f32 0.0, %v2577
        %v2579 = vpop.f32.mrf.mxu0
        %v2580 = vpop.f32.mrf.mxu0
        %v2581 = vadd.f32 0.0, %v2580
        %v2582 = vpop.f32.mrf.mxu0
        %2583 = vmatprep.mubr.bf16.mxu0 0
        %2584 = vmatmul.mubr.bf16.gmra.mxu0 %v2515
        %v2585 = vpop.f32.mrf.mxu0
        %v2586 = vadd.f32 0.0, %v2585
        %v2587 = vpop.f32.mrf.mxu0
        %v2588 = vpop.f32.mrf.mxu0
        %v2589 = vadd.f32 0.0, %v2588
        %v2590 = vpop.f32.mrf.mxu0
        %2591 = vmatprep.mubr.bf16.mxu0 0
        %2592 = vmatmul.mubr.bf16.gmra.mxu0 %v2518
        %v2593 = vpop.f32.mrf.mxu0
        %v2594 = vadd.f32 0.0, %v2593
        %v2595 = vpop.f32.mrf.mxu0
        %v2596 = vpop.f32.mrf.mxu0
        %v2597 = vadd.f32 0.0, %v2596
        %v2598 = vpop.f32.mrf.mxu0
        %2599 = vmatprep.mubr.bf16.mxu0 0
        %2600 = vmatmul.mubr.bf16.gmra.mxu0 %v2521
        %v2601 = vpop.f32.mrf.mxu0
        %v2602 = vadd.f32 0.0, %v2601
        %v2603 = vpop.f32.mrf.mxu0
        %v2604 = vpop.f32.mrf.mxu0
        %v2605 = vadd.f32 0.0, %v2604
        %v2606 = vpop.f32.mrf.mxu0
        %2607 = vmatprep.mubr.bf16.mxu0 0
        %2608 = vmatmul.mubr.bf16.gmra.mxu0 %v2524
        %v2609 = vpop.f32.mrf.mxu0
        %v2610 = vadd.f32 0.0, %v2609
        %v2611 = vpop.f32.mrf.mxu0
        %v2612 = vpop.f32.mrf.mxu0
        %v2613 = vadd.f32 0.0, %v2612
        %v2614 = vpop.f32.mrf.mxu0
        %2615 = vmatprep.mubr.bf16.mxu0 0
        %2616 = vmatmul.mubr.bf16.gmra.mxu0 %v2527
        %v2617 = vpop.f32.mrf.mxu0
        %v2618 = vadd.f32 0.0, %v2617
        %v2619 = vpop.f32.mrf.mxu0
        %v2620 = vpop.f32.mrf.mxu0
        %v2621 = vadd.f32 0.0, %v2620
        %v2622 = vpop.f32.mrf.mxu0
        %2623 = vmatprep.mubr.bf16.mxu0 0
        %2624 = vmatmul.mubr.bf16.gmra.mxu0 %v2530
        %v2625 = vpop.f32.mrf.mxu0
        %v2626 = vadd.f32 0.0, %v2625
        %v2627 = vpop.f32.mrf.mxu0
        %v2628 = vpop.f32.mrf.mxu0
        %v2629 = vadd.f32 0.0, %v2628
        %v2630 = vpop.f32.mrf.mxu0
        %2631 = vdwg.mxu0
        %v2632 = vadd.f32 %v2378, %v2570
        %v2633 = vadd.f32 %v2379, %v2573
        %v2634 = vadd.f32 %v2380, %v2578
        %v2635 = vadd.f32 %v2381, %v2581
        %v2636 = vadd.f32 %v2382, %v2586
        %v2637 = vadd.f32 %v2383, %v2589
        %v2638 = vadd.f32 %v2384, %v2594
        %v2639 = vadd.f32 %v2385, %v2597
        %v2640 = vadd.f32 %v2386, %v2602
        %v2641 = vadd.f32 %v2387, %v2605
        %v2642 = vadd.f32 %v2388, %v2610
        %v2643 = vadd.f32 %v2389, %v2613
        %v2644 = vadd.f32 %v2390, %v2618
        %v2645 = vadd.f32 %v2391, %v2621
        %v2646 = vadd.f32 %v2392, %v2626
        %v2647 = vadd.f32 %v2393, %v2629
        %s2648 = scalar_lea.vmem [#allocation2], 24
        %v2649 = vld [vmem:[%s2648] sm:$0xf]
        %v2650 = vld [vmem:[%s2648 + $0x4] sm:$0xf]
        %v2651 = vld [vmem:[%s2648 + $0xc] sm:$0xf]
        %v2652 = vld [vmem:[%s2648 + $0x10] sm:$0xf]
        %v2653 = vld [vmem:[%s2648 + $0x18] sm:$0xf]
        %v2654 = vld [vmem:[%s2648 + $0x1c] sm:$0xf]
        %v2655 = vld [vmem:[%s2648 + $0x24] sm:$0xf]
        %v2656 = vld [vmem:[%s2648 + $0x28] sm:$0xf]
        %v2657 = vld [vmem:[%s2648 + $0x30] sm:$0xf]
        %v2658 = vld [vmem:[%s2648 + $0x34] sm:$0xf]
        %v2659 = vld [vmem:[%s2648 + $0x3c] sm:$0xf]
        %v2660 = vld [vmem:[%s2648 + $0x40] sm:$0xf]
        %v2661 = vld [vmem:[%s2648 + $0x48] sm:$0xf]
        %v2662 = vld [vmem:[%s2648 + $0x4c] sm:$0xf]
        %v2663 = vld [vmem:[%s2648 + $0x54] sm:$0xf]
        %v2664 = vld [vmem:[%s2648 + $0x58] sm:$0xf]
        %s2665 = scalar_lea.vmem %s3, 12
        %v2666 = vld [vmem:[%s2665] sm:$0x3]
        %v2683 = vunpack.c.l.b16 %v2649
        %v2684 = vunpack.c.l.b16 %v2650
        %v2685 = vunpack.c.l.b16 %v2651
        %v2686 = vunpack.c.l.b16 %v2652
        %v2687 = vunpack.c.l.b16 %v2653
        %v2688 = vunpack.c.l.b16 %v2654
        %v2689 = vunpack.c.l.b16 %v2655
        %v2690 = vunpack.c.l.b16 %v2656
        %v2691 = vunpack.c.l.b16 %v2657
        %v2692 = vunpack.c.l.b16 %v2658
        %v2693 = vunpack.c.l.b16 %v2659
        %v2694 = vunpack.c.l.b16 %v2660
        %v2695 = vunpack.c.l.b16 %v2661
        %v2696 = vunpack.c.l.b16 %v2662
        %v2697 = vunpack.c.l.b16 %v2663
        %v2698 = vunpack.c.l.b16 %v2664
        %v2699 = vpack.c.b16 %v2684, %v2683
        %v2700 = vpack.c.b16 %v2686, %v2685
        %v2701 = vpack.c.b16 %v2688, %v2687
        %v2702 = vpack.c.b16 %v2690, %v2689
        %v2703 = vpack.c.b16 %v2692, %v2691
        %v2704 = vpack.c.b16 %v2694, %v2693
        %v2705 = vpack.c.b16 %v2696, %v2695
        %v2706 = vpack.c.b16 %v2698, %v2697
        %v2708 = vsel %vm1275, %v2699, 0
        %v2711 = vsel %vm1275, %v2700, 0
        %v2714 = vsel %vm1275, %v2701, 0
        %v2717 = vsel %vm1275, %v2702, 0
        %v2720 = vsel %vm1275, %v2703, 0
        %v2723 = vsel %vm1275, %v2704, 0
        %v2726 = vsel %vm1275, %v2705, 0
        %v2729 = vsel %vm1275, %v2706, 0
        %v2732 = vsel %vm1300, %v2666, 0
        %2734 = vmatprep.subr.bf16.mxu0 0
        %2735 = vmatpush1.bf16.msra.mxu0 0
        %2736 = vmatprep.subr.bf16.mxu0 0
        %2737 = vmatpush1.bf16.msra.mxu0 0
        %2738 = vmatprep.subr.bf16.mxu0 0
        %2739 = vmatpush1.bf16.msra.mxu0 0
        %2740 = vmatprep.subr.bf16.mxu0 0
        %2741 = vmatpush1.bf16.msra.mxu0 0
        %2742 = vmatprep.subr.bf16.mxu0 0
        %2743 = vmatpush1.bf16.msra.mxu0 0
        %2744 = vmatprep.subr.bf16.mxu0 0
        %2745 = vmatpush1.bf16.msra.mxu0 0
        %2746 = vmatprep.subr.bf16.mxu0 0
        %2747 = vmatpush1.bf16.msra.mxu0 0
        %2748 = vmatprep.subr.bf16.mxu0 0
        %2749 = vmatpush1.bf16.msra.mxu0 %v2732
        %2750 = vmatprep.subr.bf16.mxu0 0
        %2751 = vmatpush2.bf16.msra.mxu0 0
        %2752 = vmatprep.subr.bf16.mxu0 0
        %2753 = vmatpush2.bf16.msra.mxu0 0
        %2754 = vmatprep.subr.bf16.mxu0 0
        %2755 = vmatpush2.bf16.msra.mxu0 0
        %2756 = vmatprep.subr.bf16.mxu0 0
        %2757 = vmatpush2.bf16.msra.mxu0 0
        %2758 = vmatprep.subr.bf16.mxu0 0
        %2759 = vmatpush2.bf16.msra.mxu0 0
        %2760 = vmatprep.subr.bf16.mxu0 0
        %2761 = vmatpush2.bf16.msra.mxu0 0
        %2762 = vmatprep.subr.bf16.mxu0 0
        %2763 = vmatpush2.bf16.msra.mxu0 0
        %2764 = vmatprep.subr.bf16.mxu0 0
        %2765 = vmatpush2.bf16.msra.mxu0 0
        %2766 = vmatprep.mubr.bf16.mxu0 0
        %2767 = vmatmul.mubr.bf16.gmra.mxu0 %v2708
        %v2768 = vpop.f32.mrf.mxu0
        %v2769 = vadd.f32 0.0, %v2768
        %v2770 = vpop.f32.mrf.mxu0
        %v2771 = vpop.f32.mrf.mxu0
        %v2772 = vadd.f32 0.0, %v2771
        %v2773 = vpop.f32.mrf.mxu0
        %2774 = vmatprep.mubr.bf16.mxu0 0
        %2775 = vmatmul.mubr.bf16.gmra.mxu0 %v2711
        %v2776 = vpop.f32.mrf.mxu0
        %v2777 = vadd.f32 0.0, %v2776
        %v2778 = vpop.f32.mrf.mxu0
        %v2779 = vpop.f32.mrf.mxu0
        %v2780 = vadd.f32 0.0, %v2779
        %v2781 = vpop.f32.mrf.mxu0
        %2782 = vmatprep.mubr.bf16.mxu0 0
        %2783 = vmatmul.mubr.bf16.gmra.mxu0 %v2714
        %v2784 = vpop.f32.mrf.mxu0
        %v2785 = vadd.f32 0.0, %v2784
        %v2786 = vpop.f32.mrf.mxu0
        %v2787 = vpop.f32.mrf.mxu0
        %v2788 = vadd.f32 0.0, %v2787
        %v2789 = vpop.f32.mrf.mxu0
        %2790 = vmatprep.mubr.bf16.mxu0 0
        %2791 = vmatmul.mubr.bf16.gmra.mxu0 %v2717
        %v2792 = vpop.f32.mrf.mxu0
        %v2793 = vadd.f32 0.0, %v2792
        %v2794 = vpop.f32.mrf.mxu0
        %v2795 = vpop.f32.mrf.mxu0
        %v2796 = vadd.f32 0.0, %v2795
        %v2797 = vpop.f32.mrf.mxu0
        %2798 = vmatprep.mubr.bf16.mxu0 0
        %2799 = vmatmul.mubr.bf16.gmra.mxu0 %v2720
        %v2800 = vpop.f32.mrf.mxu0
        %v2801 = vadd.f32 0.0, %v2800
        %v2802 = vpop.f32.mrf.mxu0
        %v2803 = vpop.f32.mrf.mxu0
        %v2804 = vadd.f32 0.0, %v2803
        %v2805 = vpop.f32.mrf.mxu0
        %2806 = vmatprep.mubr.bf16.mxu0 0
        %2807 = vmatmul.mubr.bf16.gmra.mxu0 %v2723
        %v2808 = vpop.f32.mrf.mxu0
        %v2809 = vadd.f32 0.0, %v2808
        %v2810 = vpop.f32.mrf.mxu0
        %v2811 = vpop.f32.mrf.mxu0
        %v2812 = vadd.f32 0.0, %v2811
        %v2813 = vpop.f32.mrf.mxu0
        %2814 = vmatprep.mubr.bf16.mxu0 0
        %2815 = vmatmul.mubr.bf16.gmra.mxu0 %v2726
        %v2816 = vpop.f32.mrf.mxu0
        %v2817 = vadd.f32 0.0, %v2816
        %v2818 = vpop.f32.mrf.mxu0
        %v2819 = vpop.f32.mrf.mxu0
        %v2820 = vadd.f32 0.0, %v2819
        %v2821 = vpop.f32.mrf.mxu0
        %2822 = vmatprep.mubr.bf16.mxu0 0
        %2823 = vmatmul.mubr.bf16.gmra.mxu0 %v2729
        %v2824 = vpop.f32.mrf.mxu0
        %v2825 = vadd.f32 0.0, %v2824
        %v2826 = vpop.f32.mrf.mxu0
        %v2827 = vpop.f32.mrf.mxu0
        %v2828 = vadd.f32 0.0, %v2827
        %v2829 = vpop.f32.mrf.mxu0
        %2830 = vdwg.mxu0
        %v2831 = vadd.f32 %v2632, %v2769
        %v2832 = vadd.f32 %v2633, %v2772
        %v2833 = vadd.f32 %v2634, %v2777
        %v2834 = vadd.f32 %v2635, %v2780
        %v2835 = vadd.f32 %v2636, %v2785
        %v2836 = vadd.f32 %v2637, %v2788
        %v2837 = vadd.f32 %v2638, %v2793
        %v2838 = vadd.f32 %v2639, %v2796
        %v2839 = vadd.f32 %v2640, %v2801
        %v2840 = vadd.f32 %v2641, %v2804
        %v2841 = vadd.f32 %v2642, %v2809
        %v2842 = vadd.f32 %v2643, %v2812
        %v2843 = vadd.f32 %v2644, %v2817
        %v2844 = vadd.f32 %v2645, %v2820
        %v2845 = vadd.f32 %v2646, %v2825
        %v2846 = vadd.f32 %v2647, %v2828
        %v2847 = vld [vmem:[%s2648] sm:$0xf]
        %v2848 = vld [vmem:[%s2648 + $0x4] sm:$0xf]
        %v2849 = vld [vmem:[%s2648 + $0x8] sm:$0x1]
        %v2850 = vld [vmem:[%s2648 + $0xc] sm:$0xf]
        %v2851 = vld [vmem:[%s2648 + $0x10] sm:$0xf]
        %v2852 = vld [vmem:[%s2648 + $0x14] sm:$0x1]
        %v2853 = vld [vmem:[%s2648 + $0x18] sm:$0xf]
        %v2854 = vld [vmem:[%s2648 + $0x1c] sm:$0xf]
        %v2855 = vld [vmem:[%s2648 + $0x20] sm:$0x1]
        %v2856 = vld [vmem:[%s2648 + $0x24] sm:$0xf]
        %v2857 = vld [vmem:[%s2648 + $0x28] sm:$0xf]
        %v2858 = vld [vmem:[%s2648 + $0x2c] sm:$0x1]
        %v2859 = vld [vmem:[%s2648 + $0x30] sm:$0xf]
        %v2860 = vld [vmem:[%s2648 + $0x34] sm:$0xf]
        %v2861 = vld [vmem:[%s2648 + $0x38] sm:$0x1]
        %v2862 = vld [vmem:[%s2648 + $0x3c] sm:$0xf]
        %v2863 = vld [vmem:[%s2648 + $0x40] sm:$0xf]
        %v2864 = vld [vmem:[%s2648 + $0x44] sm:$0x1]
        %v2865 = vld [vmem:[%s2648 + $0x48] sm:$0xf]
        %v2866 = vld [vmem:[%s2648 + $0x4c] sm:$0xf]
        %v2867 = vld [vmem:[%s2648 + $0x50] sm:$0x1]
        %v2868 = vld [vmem:[%s2648 + $0x54] sm:$0xf]
        %v2869 = vld [vmem:[%s2648 + $0x58] sm:$0xf]
        %v2870 = vld [vmem:[%s2648 + $0x5c] sm:$0x1]
        %v2872 = vshrl.u32 %v2847, 16
        %v2874 = vrot.slane %v2872, 4
        %v2875 = vshll.u32 %v2847, 16
        %v2877 = vrot.slane %v2875, 5
        %v2878 = vor.u32 %v2874, %v2877
        %v2879 = vrot.slane %v2878, 4
        %v2881 = vshll.u32 %v2848, 16
        %v2883 = vrot.slane %v2881, 5
        %v2884 = vsel %vm1056, %v2879, %v2883
        %v2885 = vshrl.u32 %v2848, 16
        %v2887 = vrot.slane %v2885, 4
        %v2888 = vor.u32 %v2887, %v2883
        %v2889 = vrot.slane %v2888, 4
        %v2891 = vshll.u32 %v2849, 16
        %v2893 = vrot.slane %v2891, 5
        %v2894 = vsel %vm1056, %v2889, %v2893
        %v2896 = vshrl.u32 %v2850, 16
        %v2898 = vrot.slane %v2896, 4
        %v2899 = vshll.u32 %v2850, 16
        %v2901 = vrot.slane %v2899, 5
        %v2902 = vor.u32 %v2898, %v2901
        %v2903 = vrot.slane %v2902, 4
        %v2905 = vshll.u32 %v2851, 16
        %v2907 = vrot.slane %v2905, 5
        %v2908 = vsel %vm1056, %v2903, %v2907
        %v2909 = vshrl.u32 %v2851, 16
        %v2911 = vrot.slane %v2909, 4
        %v2912 = vor.u32 %v2911, %v2907
        %v2913 = vrot.slane %v2912, 4
        %v2915 = vshll.u32 %v2852, 16
        %v2917 = vrot.slane %v2915, 5
        %v2918 = vsel %vm1056, %v2913, %v2917
        %v2920 = vshrl.u32 %v2853, 16
        %v2922 = vrot.slane %v2920, 4
        %v2923 = vshll.u32 %v2853, 16
        %v2925 = vrot.slane %v2923, 5
        %v2926 = vor.u32 %v2922, %v2925
        %v2927 = vrot.slane %v2926, 4
        %v2929 = vshll.u32 %v2854, 16
        %v2931 = vrot.slane %v2929, 5
        %v2932 = vsel %vm1056, %v2927, %v2931
        %v2933 = vshrl.u32 %v2854, 16
        %v2935 = vrot.slane %v2933, 4
        %v2936 = vor.u32 %v2935, %v2931
        %v2937 = vrot.slane %v2936, 4
        %v2939 = vshll.u32 %v2855, 16
        %v2941 = vrot.slane %v2939, 5
        %v2942 = vsel %vm1056, %v2937, %v2941
        %v2944 = vshrl.u32 %v2856, 16
        %v2946 = vrot.slane %v2944, 4
        %v2947 = vshll.u32 %v2856, 16
        %v2949 = vrot.slane %v2947, 5
        %v2950 = vor.u32 %v2946, %v2949
        %v2951 = vrot.slane %v2950, 4
        %v2953 = vshll.u32 %v2857, 16
        %v2955 = vrot.slane %v2953, 5
        %v2956 = vsel %vm1056, %v2951, %v2955
        %v2957 = vshrl.u32 %v2857, 16
        %v2959 = vrot.slane %v2957, 4
        %v2960 = vor.u32 %v2959, %v2955
        %v2961 = vrot.slane %v2960, 4
        %v2963 = vshll.u32 %v2858, 16
        %v2965 = vrot.slane %v2963, 5
        %v2966 = vsel %vm1056, %v2961, %v2965
        %v2968 = vshrl.u32 %v2859, 16
        %v2970 = vrot.slane %v2968, 4
        %v2971 = vshll.u32 %v2859, 16
        %v2973 = vrot.slane %v2971, 5
        %v2974 = vor.u32 %v2970, %v2973
        %v2975 = vrot.slane %v2974, 4
        %v2977 = vshll.u32 %v2860, 16
        %v2979 = vrot.slane %v2977, 5
        %v2980 = vsel %vm1056, %v2975, %v2979
        %v2981 = vshrl.u32 %v2860, 16
        %v2983 = vrot.slane %v2981, 4
        %v2984 = vor.u32 %v2983, %v2979
        %v2985 = vrot.slane %v2984, 4
        %v2987 = vshll.u32 %v2861, 16
        %v2989 = vrot.slane %v2987, 5
        %v2990 = vsel %vm1056, %v2985, %v2989
        %v2992 = vshrl.u32 %v2862, 16
        %v2994 = vrot.slane %v2992, 4
        %v2995 = vshll.u32 %v2862, 16
        %v2997 = vrot.slane %v2995, 5
        %v2998 = vor.u32 %v2994, %v2997
        %v2999 = vrot.slane %v2998, 4
        %v3001 = vshll.u32 %v2863, 16
        %v3003 = vrot.slane %v3001, 5
        %v3004 = vsel %vm1056, %v2999, %v3003
        %v3005 = vshrl.u32 %v2863, 16
        %v3007 = vrot.slane %v3005, 4
        %v3008 = vor.u32 %v3007, %v3003
        %v3009 = vrot.slane %v3008, 4
        %v3011 = vshll.u32 %v2864, 16
        %v3013 = vrot.slane %v3011, 5
        %v3014 = vsel %vm1056, %v3009, %v3013
        %v3016 = vshrl.u32 %v2865, 16
        %v3018 = vrot.slane %v3016, 4
        %v3019 = vshll.u32 %v2865, 16
        %v3021 = vrot.slane %v3019, 5
        %v3022 = vor.u32 %v3018, %v3021
        %v3023 = vrot.slane %v3022, 4
        %v3025 = vshll.u32 %v2866, 16
        %v3027 = vrot.slane %v3025, 5
        %v3028 = vsel %vm1056, %v3023, %v3027
        %v3029 = vshrl.u32 %v2866, 16
        %v3031 = vrot.slane %v3029, 4
        %v3032 = vor.u32 %v3031, %v3027
        %v3033 = vrot.slane %v3032, 4
        %v3035 = vshll.u32 %v2867, 16
        %v3037 = vrot.slane %v3035, 5
        %v3038 = vsel %vm1056, %v3033, %v3037
        %v3040 = vshrl.u32 %v2868, 16
        %v3042 = vrot.slane %v3040, 4
        %v3043 = vshll.u32 %v2868, 16
        %v3045 = vrot.slane %v3043, 5
        %v3046 = vor.u32 %v3042, %v3045
        %v3047 = vrot.slane %v3046, 4
        %v3049 = vshll.u32 %v2869, 16
        %v3051 = vrot.slane %v3049, 5
        %v3052 = vsel %vm1056, %v3047, %v3051
        %v3053 = vshrl.u32 %v2869, 16
        %v3055 = vrot.slane %v3053, 4
        %v3056 = vor.u32 %v3055, %v3051
        %v3057 = vrot.slane %v3056, 4
        %v3059 = vshll.u32 %v2870, 16
        %v3061 = vrot.slane %v3059, 5
        %v3062 = vsel %vm1056, %v3057, %v3061
        %s3063 = scalar_lea.vmem %s3, 14
        %v3064 = vld [vmem:[%s3063] sm:$0x3]
        %v3065 = vunpack.c.l.b16 %v2884
        %v3066 = vunpack.c.l.b16 %v2894
        %v3067 = vunpack.c.l.b16 %v2908
        %v3068 = vunpack.c.l.b16 %v2918
        %v3069 = vunpack.c.l.b16 %v2932
        %v3070 = vunpack.c.l.b16 %v2942
        %v3071 = vunpack.c.l.b16 %v2956
        %v3072 = vunpack.c.l.b16 %v2966
        %v3073 = vunpack.c.l.b16 %v2980
        %v3074 = vunpack.c.l.b16 %v2990
        %v3075 = vunpack.c.l.b16 %v3004
        %v3076 = vunpack.c.l.b16 %v3014
        %v3077 = vunpack.c.l.b16 %v3028
        %v3078 = vunpack.c.l.b16 %v3038
        %v3079 = vunpack.c.l.b16 %v3052
        %v3080 = vunpack.c.l.b16 %v3062
        %v3081 = vpack.c.b16 %v3066, %v3065
        %v3082 = vpack.c.b16 %v3068, %v3067
        %v3083 = vpack.c.b16 %v3070, %v3069
        %v3084 = vpack.c.b16 %v3072, %v3071
        %v3085 = vpack.c.b16 %v3074, %v3073
        %v3086 = vpack.c.b16 %v3076, %v3075
        %v3087 = vpack.c.b16 %v3078, %v3077
        %v3088 = vpack.c.b16 %v3080, %v3079
        %v3090 = vsel %vm1275, %v3081, 0
        %v3093 = vsel %vm1275, %v3082, 0
        %v3096 = vsel %vm1275, %v3083, 0
        %v3099 = vsel %vm1275, %v3084, 0
        %v3102 = vsel %vm1275, %v3085, 0
        %v3105 = vsel %vm1275, %v3086, 0
        %v3108 = vsel %vm1275, %v3087, 0
        %v3111 = vsel %vm1275, %v3088, 0
        %v3114 = vsel %vm1300, %v3064, 0
        %3116 = vmatprep.subr.bf16.mxu0 0
        %3117 = vmatpush1.bf16.msra.mxu0 0
        %3118 = vmatprep.subr.bf16.mxu0 0
        %3119 = vmatpush1.bf16.msra.mxu0 0
        %3120 = vmatprep.subr.bf16.mxu0 0
        %3121 = vmatpush1.bf16.msra.mxu0 0
        %3122 = vmatprep.subr.bf16.mxu0 0
        %3123 = vmatpush1.bf16.msra.mxu0 0
        %3124 = vmatprep.subr.bf16.mxu0 0
        %3125 = vmatpush1.bf16.msra.mxu0 0
        %3126 = vmatprep.subr.bf16.mxu0 0
        %3127 = vmatpush1.bf16.msra.mxu0 0
        %3128 = vmatprep.subr.bf16.mxu0 0
        %3129 = vmatpush1.bf16.msra.mxu0 0
        %3130 = vmatprep.subr.bf16.mxu0 0
        %3131 = vmatpush1.bf16.msra.mxu0 %v3114
        %3132 = vmatprep.subr.bf16.mxu0 0
        %3133 = vmatpush2.bf16.msra.mxu0 0
        %3134 = vmatprep.subr.bf16.mxu0 0
        %3135 = vmatpush2.bf16.msra.mxu0 0
        %3136 = vmatprep.subr.bf16.mxu0 0
        %3137 = vmatpush2.bf16.msra.mxu0 0
        %3138 = vmatprep.subr.bf16.mxu0 0
        %3139 = vmatpush2.bf16.msra.mxu0 0
        %3140 = vmatprep.subr.bf16.mxu0 0
        %3141 = vmatpush2.bf16.msra.mxu0 0
        %3142 = vmatprep.subr.bf16.mxu0 0
        %3143 = vmatpush2.bf16.msra.mxu0 0
        %3144 = vmatprep.subr.bf16.mxu0 0
        %3145 = vmatpush2.bf16.msra.mxu0 0
        %3146 = vmatprep.subr.bf16.mxu0 0
        %3147 = vmatpush2.bf16.msra.mxu0 0
        %3148 = vmatprep.mubr.bf16.mxu0 0
        %3149 = vmatmul.mubr.bf16.gmra.mxu0 %v3090
        %v3150 = vpop.f32.mrf.mxu0
        %v3151 = vadd.f32 0.0, %v3150
        %v3152 = vpop.f32.mrf.mxu0
        %v3153 = vpop.f32.mrf.mxu0
        %v3154 = vadd.f32 0.0, %v3153
        %v3155 = vpop.f32.mrf.mxu0
        %3156 = vmatprep.mubr.bf16.mxu0 0
        %3157 = vmatmul.mubr.bf16.gmra.mxu0 %v3093
        %v3158 = vpop.f32.mrf.mxu0
        %v3159 = vadd.f32 0.0, %v3158
        %v3160 = vpop.f32.mrf.mxu0
        %v3161 = vpop.f32.mrf.mxu0
        %v3162 = vadd.f32 0.0, %v3161
        %v3163 = vpop.f32.mrf.mxu0
        %3164 = vmatprep.mubr.bf16.mxu0 0
        %3165 = vmatmul.mubr.bf16.gmra.mxu0 %v3096
        %v3166 = vpop.f32.mrf.mxu0
        %v3167 = vadd.f32 0.0, %v3166
        %v3168 = vpop.f32.mrf.mxu0
        %v3169 = vpop.f32.mrf.mxu0
        %v3170 = vadd.f32 0.0, %v3169
        %v3171 = vpop.f32.mrf.mxu0
        %3172 = vmatprep.mubr.bf16.mxu0 0
        %3173 = vmatmul.mubr.bf16.gmra.mxu0 %v3099
        %v3174 = vpop.f32.mrf.mxu0
        %v3175 = vadd.f32 0.0, %v3174
        %v3176 = vpop.f32.mrf.mxu0
        %v3177 = vpop.f32.mrf.mxu0
        %v3178 = vadd.f32 0.0, %v3177
        %v3179 = vpop.f32.mrf.mxu0
        %3180 = vmatprep.mubr.bf16.mxu0 0
        %3181 = vmatmul.mubr.bf16.gmra.mxu0 %v3102
        %v3182 = vpop.f32.mrf.mxu0
        %v3183 = vadd.f32 0.0, %v3182
        %v3184 = vpop.f32.mrf.mxu0
        %v3185 = vpop.f32.mrf.mxu0
        %v3186 = vadd.f32 0.0, %v3185
        %v3187 = vpop.f32.mrf.mxu0
        %3188 = vmatprep.mubr.bf16.mxu0 0
        %3189 = vmatmul.mubr.bf16.gmra.mxu0 %v3105
        %v3190 = vpop.f32.mrf.mxu0
        %v3191 = vadd.f32 0.0, %v3190
        %v3192 = vpop.f32.mrf.mxu0
        %v3193 = vpop.f32.mrf.mxu0
        %v3194 = vadd.f32 0.0, %v3193
        %v3195 = vpop.f32.mrf.mxu0
        %3196 = vmatprep.mubr.bf16.mxu0 0
        %3197 = vmatmul.mubr.bf16.gmra.mxu0 %v3108
        %v3198 = vpop.f32.mrf.mxu0
        %v3199 = vadd.f32 0.0, %v3198
        %v3200 = vpop.f32.mrf.mxu0
        %v3201 = vpop.f32.mrf.mxu0
        %v3202 = vadd.f32 0.0, %v3201
        %v3203 = vpop.f32.mrf.mxu0
        %3204 = vmatprep.mubr.bf16.mxu0 0
        %3205 = vmatmul.mubr.bf16.gmra.mxu0 %v3111
        %v3206 = vpop.f32.mrf.mxu0
        %v3207 = vadd.f32 0.0, %v3206
        %v3208 = vpop.f32.mrf.mxu0
        %v3209 = vpop.f32.mrf.mxu0
        %v3210 = vadd.f32 0.0, %v3209
        %v3211 = vpop.f32.mrf.mxu0
        %3212 = vdwg.mxu0
        %v3213 = vadd.f32 %v2831, %v3151
        %v3214 = vadd.f32 %v2832, %v3154
        %v3215 = vadd.f32 %v2833, %v3159
        %v3216 = vadd.f32 %v2834, %v3162
        %v3217 = vadd.f32 %v2835, %v3167
        %v3218 = vadd.f32 %v2836, %v3170
        %v3219 = vadd.f32 %v2837, %v3175
        %v3220 = vadd.f32 %v2838, %v3178
        %v3221 = vadd.f32 %v2839, %v3183
        %v3222 = vadd.f32 %v2840, %v3186
        %v3223 = vadd.f32 %v2841, %v3191
        %v3224 = vadd.f32 %v2842, %v3194
        %v3225 = vadd.f32 %v2843, %v3199
        %v3226 = vadd.f32 %v2844, %v3202
        %v3227 = vadd.f32 %v2845, %v3207
        %v3228 = vadd.f32 %v2846, %v3210
        %v3229 = vld [vmem:[%s2648] sm:$0xe]
        %v3230 = vld [vmem:[%s2648 + $0xc] sm:$0xe]
        %v3231 = vld [vmem:[%s2648 + $0x18] sm:$0xe]
        %v3232 = vld [vmem:[%s2648 + $0x24] sm:$0xe]
        %v3233 = vld [vmem:[%s2648 + $0x30] sm:$0xe]
        %v3234 = vld [vmem:[%s2648 + $0x3c] sm:$0xe]
        %v3235 = vld [vmem:[%s2648 + $0x48] sm:$0xe]
        %v3236 = vld [vmem:[%s2648 + $0x54] sm:$0xe]
        %v3261 = vrot.slane %v3229, 5
        %v3262 = vrot.slane %v3261, 4
        %v3263 = vrot.slane %v2848, 5
        %v3264 = vsel %vm1591, %v3262, %v3263
        %v3265 = vrot.slane %v3263, 4
        %v3266 = vrot.slane %v2849, 5
        %v3267 = vsel %vm1591, %v3265, %v3266
        %v3268 = vrot.slane %v3230, 5
        %v3269 = vrot.slane %v3268, 4
        %v3270 = vrot.slane %v2851, 5
        %v3271 = vsel %vm1591, %v3269, %v3270
        %v3272 = vrot.slane %v3270, 4
        %v3273 = vrot.slane %v2852, 5
        %v3274 = vsel %vm1591, %v3272, %v3273
        %v3275 = vrot.slane %v3231, 5
        %v3276 = vrot.slane %v3275, 4
        %v3277 = vrot.slane %v2854, 5
        %v3278 = vsel %vm1591, %v3276, %v3277
        %v3279 = vrot.slane %v3277, 4
        %v3280 = vrot.slane %v2855, 5
        %v3281 = vsel %vm1591, %v3279, %v3280
        %v3282 = vrot.slane %v3232, 5
        %v3283 = vrot.slane %v3282, 4
        %v3284 = vrot.slane %v2857, 5
        %v3285 = vsel %vm1591, %v3283, %v3284
        %v3286 = vrot.slane %v3284, 4
        %v3287 = vrot.slane %v2858, 5
        %v3288 = vsel %vm1591, %v3286, %v3287
        %v3289 = vrot.slane %v3233, 5
        %v3290 = vrot.slane %v3289, 4
        %v3291 = vrot.slane %v2860, 5
        %v3292 = vsel %vm1591, %v3290, %v3291
        %v3293 = vrot.slane %v3291, 4
        %v3294 = vrot.slane %v2861, 5
        %v3295 = vsel %vm1591, %v3293, %v3294
        %v3296 = vrot.slane %v3234, 5
        %v3297 = vrot.slane %v3296, 4
        %v3298 = vrot.slane %v2863, 5
        %v3299 = vsel %vm1591, %v3297, %v3298
        %v3300 = vrot.slane %v3298, 4
        %v3301 = vrot.slane %v2864, 5
        %v3302 = vsel %vm1591, %v3300, %v3301
        %v3303 = vrot.slane %v3235, 5
        %v3304 = vrot.slane %v3303, 4
        %v3305 = vrot.slane %v2866, 5
        %v3306 = vsel %vm1591, %v3304, %v3305
        %v3307 = vrot.slane %v3305, 4
        %v3308 = vrot.slane %v2867, 5
        %v3309 = vsel %vm1591, %v3307, %v3308
        %v3310 = vrot.slane %v3236, 5
        %v3311 = vrot.slane %v3310, 4
        %v3312 = vrot.slane %v2869, 5
        %v3313 = vsel %vm1591, %v3311, %v3312
        %v3314 = vrot.slane %v3312, 4
        %v3315 = vrot.slane %v2870, 5
        %v3316 = vsel %vm1591, %v3314, %v3315
        %s3317 = scalar_lea.vmem %s3, 16
        %v3318 = vld [vmem:[%s3317] sm:$0x3]
        %v3319 = vunpack.c.l.b16 %v3264
        %v3320 = vunpack.c.l.b16 %v3267
        %v3321 = vunpack.c.l.b16 %v3271
        %v3322 = vunpack.c.l.b16 %v3274
        %v3323 = vunpack.c.l.b16 %v3278
        %v3324 = vunpack.c.l.b16 %v3281
        %v3325 = vunpack.c.l.b16 %v3285
        %v3326 = vunpack.c.l.b16 %v3288
        %v3327 = vunpack.c.l.b16 %v3292
        %v3328 = vunpack.c.l.b16 %v3295
        %v3329 = vunpack.c.l.b16 %v3299
        %v3330 = vunpack.c.l.b16 %v3302
        %v3331 = vunpack.c.l.b16 %v3306
        %v3332 = vunpack.c.l.b16 %v3309
        %v3333 = vunpack.c.l.b16 %v3313
        %v3334 = vunpack.c.l.b16 %v3316
        %v3335 = vpack.c.b16 %v3320, %v3319
        %v3336 = vpack.c.b16 %v3322, %v3321
        %v3337 = vpack.c.b16 %v3324, %v3323
        %v3338 = vpack.c.b16 %v3326, %v3325
        %v3339 = vpack.c.b16 %v3328, %v3327
        %v3340 = vpack.c.b16 %v3330, %v3329
        %v3341 = vpack.c.b16 %v3332, %v3331
        %v3342 = vpack.c.b16 %v3334, %v3333
        %v3344 = vsel %vm1275, %v3335, 0
        %v3347 = vsel %vm1275, %v3336, 0
        %v3350 = vsel %vm1275, %v3337, 0
        %v3353 = vsel %vm1275, %v3338, 0
        %v3356 = vsel %vm1275, %v3339, 0
        %v3359 = vsel %vm1275, %v3340, 0
        %v3362 = vsel %vm1275, %v3341, 0
        %v3365 = vsel %vm1275, %v3342, 0
        %v3368 = vsel %vm1300, %v3318, 0
        %3370 = vmatprep.subr.bf16.mxu0 0
        %3371 = vmatpush1.bf16.msra.mxu0 0
        %3372 = vmatprep.subr.bf16.mxu0 0
        %3373 = vmatpush1.bf16.msra.mxu0 0
        %3374 = vmatprep.subr.bf16.mxu0 0
        %3375 = vmatpush1.bf16.msra.mxu0 0
        %3376 = vmatprep.subr.bf16.mxu0 0
        %3377 = vmatpush1.bf16.msra.mxu0 0
        %3378 = vmatprep.subr.bf16.mxu0 0
        %3379 = vmatpush1.bf16.msra.mxu0 0
        %3380 = vmatprep.subr.bf16.mxu0 0
        %3381 = vmatpush1.bf16.msra.mxu0 0
        %3382 = vmatprep.subr.bf16.mxu0 0
        %3383 = vmatpush1.bf16.msra.mxu0 0
        %3384 = vmatprep.subr.bf16.mxu0 0
        %3385 = vmatpush1.bf16.msra.mxu0 %v3368
        %3386 = vmatprep.subr.bf16.mxu0 0
        %3387 = vmatpush2.bf16.msra.mxu0 0
        %3388 = vmatprep.subr.bf16.mxu0 0
        %3389 = vmatpush2.bf16.msra.mxu0 0
        %3390 = vmatprep.subr.bf16.mxu0 0
        %3391 = vmatpush2.bf16.msra.mxu0 0
        %3392 = vmatprep.subr.bf16.mxu0 0
        %3393 = vmatpush2.bf16.msra.mxu0 0
        %3394 = vmatprep.subr.bf16.mxu0 0
        %3395 = vmatpush2.bf16.msra.mxu0 0
        %3396 = vmatprep.subr.bf16.mxu0 0
        %3397 = vmatpush2.bf16.msra.mxu0 0
        %3398 = vmatprep.subr.bf16.mxu0 0
        %3399 = vmatpush2.bf16.msra.mxu0 0
        %3400 = vmatprep.subr.bf16.mxu0 0
        %3401 = vmatpush2.bf16.msra.mxu0 0
        %3402 = vmatprep.mubr.bf16.mxu0 0
        %3403 = vmatmul.mubr.bf16.gmra.mxu0 %v3344
        %v3404 = vpop.f32.mrf.mxu0
        %v3405 = vadd.f32 0.0, %v3404
        %v3406 = vpop.f32.mrf.mxu0
        %v3407 = vpop.f32.mrf.mxu0
        %v3408 = vadd.f32 0.0, %v3407
        %v3409 = vpop.f32.mrf.mxu0
        %3410 = vmatprep.mubr.bf16.mxu0 0
        %3411 = vmatmul.mubr.bf16.gmra.mxu0 %v3347
        %v3412 = vpop.f32.mrf.mxu0
        %v3413 = vadd.f32 0.0, %v3412
        %v3414 = vpop.f32.mrf.mxu0
        %v3415 = vpop.f32.mrf.mxu0
        %v3416 = vadd.f32 0.0, %v3415
        %v3417 = vpop.f32.mrf.mxu0
        %3418 = vmatprep.mubr.bf16.mxu0 0
        %3419 = vmatmul.mubr.bf16.gmra.mxu0 %v3350
        %v3420 = vpop.f32.mrf.mxu0
        %v3421 = vadd.f32 0.0, %v3420
        %v3422 = vpop.f32.mrf.mxu0
        %v3423 = vpop.f32.mrf.mxu0
        %v3424 = vadd.f32 0.0, %v3423
        %v3425 = vpop.f32.mrf.mxu0
        %3426 = vmatprep.mubr.bf16.mxu0 0
        %3427 = vmatmul.mubr.bf16.gmra.mxu0 %v3353
        %v3428 = vpop.f32.mrf.mxu0
        %v3429 = vadd.f32 0.0, %v3428
        %v3430 = vpop.f32.mrf.mxu0
        %v3431 = vpop.f32.mrf.mxu0
        %v3432 = vadd.f32 0.0, %v3431
        %v3433 = vpop.f32.mrf.mxu0
        %3434 = vmatprep.mubr.bf16.mxu0 0
        %3435 = vmatmul.mubr.bf16.gmra.mxu0 %v3356
        %v3436 = vpop.f32.mrf.mxu0
        %v3437 = vadd.f32 0.0, %v3436
        %v3438 = vpop.f32.mrf.mxu0
        %v3439 = vpop.f32.mrf.mxu0
        %v3440 = vadd.f32 0.0, %v3439
        %v3441 = vpop.f32.mrf.mxu0
        %3442 = vmatprep.mubr.bf16.mxu0 0
        %3443 = vmatmul.mubr.bf16.gmra.mxu0 %v3359
        %v3444 = vpop.f32.mrf.mxu0
        %v3445 = vadd.f32 0.0, %v3444
        %v3446 = vpop.f32.mrf.mxu0
        %v3447 = vpop.f32.mrf.mxu0
        %v3448 = vadd.f32 0.0, %v3447
        %v3449 = vpop.f32.mrf.mxu0
        %3450 = vmatprep.mubr.bf16.mxu0 0
        %3451 = vmatmul.mubr.bf16.gmra.mxu0 %v3362
        %v3452 = vpop.f32.mrf.mxu0
        %v3453 = vadd.f32 0.0, %v3452
        %v3454 = vpop.f32.mrf.mxu0
        %v3455 = vpop.f32.mrf.mxu0
        %v3456 = vadd.f32 0.0, %v3455
        %v3457 = vpop.f32.mrf.mxu0
        %3458 = vmatprep.mubr.bf16.mxu0 0
        %3459 = vmatmul.mubr.bf16.gmra.mxu0 %v3365
        %v3460 = vpop.f32.mrf.mxu0
        %v3461 = vadd.f32 0.0, %v3460
        %v3462 = vpop.f32.mrf.mxu0
        %v3463 = vpop.f32.mrf.mxu0
        %v3464 = vadd.f32 0.0, %v3463
        %v3465 = vpop.f32.mrf.mxu0
        %3466 = vdwg.mxu0
        %v3467 = vadd.f32 %v3213, %v3405
        %v3468 = vadd.f32 %v3214, %v3408
        %v3469 = vadd.f32 %v3215, %v3413
        %v3470 = vadd.f32 %v3216, %v3416
        %v3471 = vadd.f32 %v3217, %v3421
        %v3472 = vadd.f32 %v3218, %v3424
        %v3473 = vadd.f32 %v3219, %v3429
        %v3474 = vadd.f32 %v3220, %v3432
        %v3475 = vadd.f32 %v3221, %v3437
        %v3476 = vadd.f32 %v3222, %v3440
        %v3477 = vadd.f32 %v3223, %v3445
        %v3478 = vadd.f32 %v3224, %v3448
        %v3479 = vadd.f32 %v3225, %v3453
        %v3480 = vadd.f32 %v3226, %v3456
        %v3481 = vadd.f32 %v3227, %v3461
        %v3482 = vadd.f32 %v3228, %v3464
        %v3483 = vld [vmem:[%s6] sm:$0x1]
        %v3485 = vlaneseq
        %v3486 = vshrl.u32 %v3485, 7
        %v3487 = vsub.s32 0, %v3486
        %v3488 = vrot.slane %v3483, %v3487
        %v3490 = vadd.f32 %v3467, %v3488
        %v3491 = vadd.f32 %v3468, %v3488
        %v3492 = vadd.f32 %v3469, %v3488
        %v3493 = vadd.f32 %v3470, %v3488
        %v3494 = vadd.f32 %v3471, %v3488
        %v3495 = vadd.f32 %v3472, %v3488
        %v3496 = vadd.f32 %v3473, %v3488
        %v3497 = vadd.f32 %v3474, %v3488
        %v3498 = vadd.f32 %v3475, %v3488
        %v3499 = vadd.f32 %v3476, %v3488
        %v3500 = vadd.f32 %v3477, %v3488
        %v3501 = vadd.f32 %v3478, %v3488
        %v3502 = vadd.f32 %v3479, %v3488
        %v3503 = vadd.f32 %v3480, %v3488
        %v3504 = vadd.f32 %v3481, %v3488
        %v3505 = vadd.f32 %v3482, %v3488
        %v3506 = vmax.f32 %v3490, 0.0
        %v3507 = vmax.f32 %v3491, 0.0
        %v3508 = vmax.f32 %v3492, 0.0
        %v3509 = vmax.f32 %v3493, 0.0
        %v3510 = vmax.f32 %v3494, 0.0
        %v3511 = vmax.f32 %v3495, 0.0
        %v3512 = vmax.f32 %v3496, 0.0
        %v3513 = vmax.f32 %v3497, 0.0
        %v3514 = vmax.f32 %v3498, 0.0
        %v3515 = vmax.f32 %v3499, 0.0
        %v3516 = vmax.f32 %v3500, 0.0
        %v3517 = vmax.f32 %v3501, 0.0
        %v3518 = vmax.f32 %v3502, 0.0
        %v3519 = vmax.f32 %v3503, 0.0
        %v3520 = vmax.f32 %v3504, 0.0
        %v3521 = vmax.f32 %v3505, 0.0
        %v3522 = vpack.c.bf16 %v3507, %v3506
        %v3523 = vpack.c.bf16 %v3509, %v3508
        %v3524 = vpack.c.bf16 %v3511, %v3510
        %v3525 = vpack.c.bf16 %v3513, %v3512
        %v3526 = vpack.c.bf16 %v3515, %v3514
        %v3527 = vpack.c.bf16 %v3517, %v3516
        %v3528 = vpack.c.bf16 %v3519, %v3518
        %v3529 = vpack.c.bf16 %v3521, %v3520
        %v3530 = vld [vmem:[%s4] sm:$0x3]
        %v3531 = vld [vmem:[%s7] sm:$0x1]
        %v3533 = vlaneseq
        %v3534 = vshrl.u32 %v3533, 7
        %v3535 = vsub.s32 0, %v3534
        %v3536 = vrot.slane %v3531, %v3535
        %v3539 = vsel %vm1275, %v3522, 0
        %v3542 = vsel %vm1275, %v3523, 0
        %v3545 = vsel %vm1275, %v3524, 0
        %v3548 = vsel %vm1275, %v3525, 0
        %v3551 = vsel %vm1275, %v3526, 0
        %v3554 = vsel %vm1275, %v3527, 0
        %v3557 = vsel %vm1275, %v3528, 0
        %v3560 = vsel %vm1275, %v3529, 0
        %v3563 = vsel %vm1300, %v3530, 0
        %3565 = vmatprep.subr.bf16.mxu0 0
        %3566 = vmatpush1.bf16.msra.mxu0 0
        %3567 = vmatprep.subr.bf16.mxu0 0
        %3568 = vmatpush1.bf16.msra.mxu0 0
        %3569 = vmatprep.subr.bf16.mxu0 0
        %3570 = vmatpush1.bf16.msra.mxu0 0
        %3571 = vmatprep.subr.bf16.mxu0 0
        %3572 = vmatpush1.bf16.msra.mxu0 0
        %3573 = vmatprep.subr.bf16.mxu0 0
        %3574 = vmatpush1.bf16.msra.mxu0 0
        %3575 = vmatprep.subr.bf16.mxu0 0
        %3576 = vmatpush1.bf16.msra.mxu0 0
        %3577 = vmatprep.subr.bf16.mxu0 0
        %3578 = vmatpush1.bf16.msra.mxu0 0
        %3579 = vmatprep.subr.bf16.mxu0 0
        %3580 = vmatpush1.bf16.msra.mxu0 %v3563
        %3581 = vmatprep.subr.bf16.mxu0 0
        %3582 = vmatpush2.bf16.msra.mxu0 0
        %3583 = vmatprep.subr.bf16.mxu0 0
        %3584 = vmatpush2.bf16.msra.mxu0 0
        %3585 = vmatprep.subr.bf16.mxu0 0
        %3586 = vmatpush2.bf16.msra.mxu0 0
        %3587 = vmatprep.subr.bf16.mxu0 0
        %3588 = vmatpush2.bf16.msra.mxu0 0
        %3589 = vmatprep.subr.bf16.mxu0 0
        %3590 = vmatpush2.bf16.msra.mxu0 0
        %3591 = vmatprep.subr.bf16.mxu0 0
        %3592 = vmatpush2.bf16.msra.mxu0 0
        %3593 = vmatprep.subr.bf16.mxu0 0
        %3594 = vmatpush2.bf16.msra.mxu0 0
        %3595 = vmatprep.subr.bf16.mxu0 0
        %3596 = vmatpush2.bf16.msra.mxu0 0
        %3597 = vmatprep.mubr.bf16.mxu0 0
        %3598 = vmatmul.mubr.bf16.gmra.mxu0 %v3539
        %v3599 = vpop.f32.mrf.mxu0
        %v3600 = vadd.f32 %v3536, %v3599
        %v3601 = vpop.f32.mrf.mxu0
        %v3602 = vpop.f32.mrf.mxu0
        %v3603 = vadd.f32 %v3536, %v3602
        %v3604 = vpop.f32.mrf.mxu0
        %3605 = vmatprep.mubr.bf16.mxu0 0
        %3606 = vmatmul.mubr.bf16.gmra.mxu0 %v3542
        %v3607 = vpop.f32.mrf.mxu0
        %v3608 = vadd.f32 %v3536, %v3607
        %v3609 = vpop.f32.mrf.mxu0
        %v3610 = vpop.f32.mrf.mxu0
        %v3611 = vadd.f32 %v3536, %v3610
        %v3612 = vpop.f32.mrf.mxu0
        %3613 = vmatprep.mubr.bf16.mxu0 0
        %3614 = vmatmul.mubr.bf16.gmra.mxu0 %v3545
        %v3615 = vpop.f32.mrf.mxu0
        %v3616 = vadd.f32 %v3536, %v3615
        %v3617 = vpop.f32.mrf.mxu0
        %v3618 = vpop.f32.mrf.mxu0
        %v3619 = vadd.f32 %v3536, %v3618
        %v3620 = vpop.f32.mrf.mxu0
        %3621 = vmatprep.mubr.bf16.mxu0 0
        %3622 = vmatmul.mubr.bf16.gmra.mxu0 %v3548
        %v3623 = vpop.f32.mrf.mxu0
        %v3624 = vadd.f32 %v3536, %v3623
        %v3625 = vpop.f32.mrf.mxu0
        %v3626 = vpop.f32.mrf.mxu0
        %v3627 = vadd.f32 %v3536, %v3626
        %v3628 = vpop.f32.mrf.mxu0
        %3629 = vmatprep.mubr.bf16.mxu0 0
        %3630 = vmatmul.mubr.bf16.gmra.mxu0 %v3551
        %v3631 = vpop.f32.mrf.mxu0
        %v3632 = vadd.f32 %v3536, %v3631
        %v3633 = vpop.f32.mrf.mxu0
        %v3634 = vpop.f32.mrf.mxu0
        %v3635 = vadd.f32 %v3536, %v3634
        %v3636 = vpop.f32.mrf.mxu0
        %3637 = vmatprep.mubr.bf16.mxu0 0
        %3638 = vmatmul.mubr.bf16.gmra.mxu0 %v3554
        %v3639 = vpop.f32.mrf.mxu0
        %v3640 = vadd.f32 %v3536, %v3639
        %v3641 = vpop.f32.mrf.mxu0
        %v3642 = vpop.f32.mrf.mxu0
        %v3643 = vadd.f32 %v3536, %v3642
        %v3644 = vpop.f32.mrf.mxu0
        %3645 = vmatprep.mubr.bf16.mxu0 0
        %3646 = vmatmul.mubr.bf16.gmra.mxu0 %v3557
        %v3647 = vpop.f32.mrf.mxu0
        %v3648 = vadd.f32 %v3536, %v3647
        %v3649 = vpop.f32.mrf.mxu0
        %v3650 = vpop.f32.mrf.mxu0
        %v3651 = vadd.f32 %v3536, %v3650
        %v3652 = vpop.f32.mrf.mxu0
        %3653 = vmatprep.mubr.bf16.mxu0 0
        %3654 = vmatmul.mubr.bf16.gmra.mxu0 %v3560
        %v3655 = vpop.f32.mrf.mxu0
        %v3656 = vadd.f32 %v3536, %v3655
        %v3657 = vpop.f32.mrf.mxu0
        %v3658 = vpop.f32.mrf.mxu0
        %v3659 = vadd.f32 %v3536, %v3658
        %v3660 = vpop.f32.mrf.mxu0
        %3661 = vdwg.mxu0
        %v3662 = vadd.f32 %v3600, %v373
        %v3663 = vadd.f32 %v3603, %v374
        %v3664 = vadd.f32 %v3608, %v375
        %v3665 = vadd.f32 %v3611, %v376
        %v3666 = vadd.f32 %v3616, %v377
        %v3667 = vadd.f32 %v3619, %v378
        %v3668 = vadd.f32 %v3624, %v379
        %v3669 = vadd.f32 %v3627, %v380
        %v3670 = vadd.f32 %v3632, %v381
        %v3671 = vadd.f32 %v3635, %v382
        %v3672 = vadd.f32 %v3640, %v383
        %v3673 = vadd.f32 %v3643, %v384
        %v3674 = vadd.f32 %v3648, %v385
        %v3675 = vadd.f32 %v3651, %v386
        %v3676 = vadd.f32 %v3656, %v387
        %v3677 = vadd.f32 %v3659, %v388
        %v3678 = vmax.f32 %v3662, 0.0
        %v3679 = vmax.f32 %v3663, 0.0
        %v3680 = vmax.f32 %v3664, 0.0
        %v3681 = vmax.f32 %v3665, 0.0
        %v3682 = vmax.f32 %v3666, 0.0
        %v3683 = vmax.f32 %v3667, 0.0
        %v3684 = vmax.f32 %v3668, 0.0
        %v3685 = vmax.f32 %v3669, 0.0
        %v3686 = vmax.f32 %v3670, 0.0
        %v3687 = vmax.f32 %v3671, 0.0
        %v3688 = vmax.f32 %v3672, 0.0
        %v3689 = vmax.f32 %v3673, 0.0
        %v3690 = vmax.f32 %v3674, 0.0
        %v3691 = vmax.f32 %v3675, 0.0
        %v3692 = vmax.f32 %v3676, 0.0
        %v3693 = vmax.f32 %v3677, 0.0
        %3694 = vst.msk [vmem:[%s350] sm:$0xff] %vm412, %v3678
        %3695 = vst.msk [vmem:[%s350 + $0x8] sm:$0xff] %vm412, %v3679
        %3696 = vst.msk [vmem:[%s350 + $0x10] sm:$0xff] %vm412, %v3680
        %3697 = vst.msk [vmem:[%s350 + $0x18] sm:$0xff] %vm412, %v3681
        %3698 = vst.msk [vmem:[%s350 + $0x20] sm:$0xff] %vm412, %v3682
        %3699 = vst.msk [vmem:[%s350 + $0x28] sm:$0xff] %vm412, %v3683
        %3700 = vst.msk [vmem:[%s350 + $0x30] sm:$0xff] %vm412, %v3684
        %3701 = vst.msk [vmem:[%s350 + $0x38] sm:$0xff] %vm412, %v3685
        %3702 = vst.msk [vmem:[%s350 + $0x40] sm:$0xff] %vm412, %v3686
        %3703 = vst.msk [vmem:[%s350 + $0x48] sm:$0xff] %vm412, %v3687
        %3704 = vst.msk [vmem:[%s350 + $0x50] sm:$0xff] %vm412, %v3688
        %3705 = vst.msk [vmem:[%s350 + $0x58] sm:$0xff] %vm412, %v3689
        %3706 = vst.msk [vmem:[%s350 + $0x60] sm:$0xff] %vm412, %v3690
        %3707 = vst.msk [vmem:[%s350 + $0x68] sm:$0xff] %vm412, %v3691
        %3708 = vst.msk [vmem:[%s350 + $0x70] sm:$0xff] %vm412, %v3692
        %3709 = vst.msk [vmem:[%s350 + $0x78] sm:$0xff] %vm412, %v3693
        %s3710 = sand.u32 %s226, 1
        %s3711 = scalar_lea.sflag [#allocation4], %s3710
        %s3712 = sand.u32 %s226, 1
        %s3713 = smul.addr %s3712, 128
        %s3714 = scalar_lea.vmem [#allocation3], %s3713
        // Predicated region
        $region53: #{bottleneck_pallas.1} parent=51 // pred_check
          %p3715 = pneg %p236
        $region54: #{bottleneck_pallas.1} parent=51 // pred_check_branch
          %3717 = sbr.rel (%p3715) target = $region56
        $region55: #{bottleneck_pallas.1} parent=51 // pred_region
          %s3718 = smul.u32 8, %s27
          %s3720 = ssub.s32 2048, 2048
          %3721 = vsyncadd %s3711, %s3720
          %s3722 = smul.addr %s3718, 2
          %s3723 = smul.addr %s26, 32
          %s3724 = sadd.s32 %s3722, %s3723
          %s3725 = smul.addr %s3724, 128
          %s3726 = scalar_lea.hbm %s8, %s3725
          %s3727 = sshll.u32 %s3714, 4
          %s3728 = int_to_ptr.vmem [resolvable:$true] %s3727
          %3733 = dma.vmem_to_hbm [thread:$0]  %s3728, 2048, %s3726, %s3711, 128, 128, 8
        $region56: #{bottleneck_pallas.1} parent=51 // pred_fallthru
          _
      $region52: #{bottleneck_pallas.1} parent=5 // pred_fallthru
        _
      %p3734 = scmp.le.s32.totalorder 2, %s17
      // Predicated region
      $region57: #{bottleneck_pallas.1} parent=5 // pred_check
        %p3735 = pneg %p3734
      $region58: #{bottleneck_pallas.1} parent=5 // pred_check_branch
        %3737 = sbr.rel (%p3735) target = $region60
      $region59: #{bottleneck_pallas.1} parent=5 // pred_region
        %s3738 = ssub.s32 %s17, 2
        // Predicated region
        $region61: #{bottleneck_pallas.1} parent=59 // pred_check
          %p3739 = pneg %p242
        $region62: #{bottleneck_pallas.1} parent=59 // pred_check_branch
          %3741 = sbr.rel (%p3739) target = $region64
        $region63: #{bottleneck_pallas.1} parent=59 // pred_region
          %s3742 = sand.u32 %s227, 1
          %s3743 = scalar_lea.sflag [#allocation4], %s3742
          %s3744 = sand.u32 %s227, 1
          %s3745 = smul.addr %s3744, 128
          %s3746 = scalar_lea.vmem [#allocation3], %s3745
          %3747 = dma.done %s3743, 2048
        $region64: #{bottleneck_pallas.1} parent=59 // pred_fallthru
          _
      $region60: #{bottleneck_pallas.1} parent=5 // pred_fallthru
        _
    $region6: #{bottleneck_pallas.1} parent=1 // loop_footer
      %s21 = sadd.s32 1, %s17
    $region7: #{bottleneck_pallas.1} parent=1 // loop_footer_branch
      %16 = sbr.rel target = $region3
    $region8: #{bottleneck_pallas.1} parent=1 // loop_exit
      _
    %3748 = vsyncpa [#allocation4], 1
    %s3749 = scalar_lea.sflag [#allocation4], 1
    %3750 = vsyncpa %s3749, 1

</llo_original>
